<compile_context>
chip_gen: v7x
topology: tpu7x:2x2x1
jax: 0.10.0
libtpu: 0.0.40
codegen_flags: <defaults>
</compile_context>

<pallas_src>
import jax
import jax.numpy as jnp
from jax import lax
from jax.experimental import pallas as pl
from jax.experimental.pallas import tpu as pltpu

_LANES = 128  # lane-dense output row width


def w2v_kernel(in_lab_ref, pos_lab_ref, neg_lab_ref,   # scalar-prefetch refs (SMEM)
               w_in_hbm, w_out_hbm,                    # tables, left in HBM
               out_ref,                                # [1, 1, 128] VMEM output block
               in_buf, ctx_buf, sems):                 # scratch
    P = pos_lab_ref.shape[1]
    N = neg_lab_ref.shape[1]
    b = pl.program_id(0)

    # ---- DMA row-gather: center row from W_in, P+N context rows from W_out ----
    center = in_lab_ref[b]
    in_cp = pltpu.make_async_copy(
        w_in_hbm.at[pl.ds(center, 1), :], in_buf, sems.at[0])
    in_cp.start()

    # TODO(synk): for large P+N switch the unrolled Python loop to pl.loop with
    # dynamically indexed semaphore/buffer slots; at demo sizes unrolling is fine.
    copies = []
    for j in range(P):
        lab = pos_lab_ref[b, j]
        cp = pltpu.make_async_copy(
            w_out_hbm.at[pl.ds(lab, 1), :],
            ctx_buf.at[pl.ds(j, 1), :],
            sems.at[1 + j])
        cp.start()
        copies.append(cp)
    for j in range(N):
        lab = neg_lab_ref[b, j]
        cp = pltpu.make_async_copy(
            w_out_hbm.at[pl.ds(lab, 1), :],
            ctx_buf.at[pl.ds(P + j, 1), :],
            sems.at[1 + P + j])
        cp.start()
        copies.append(cp)

    in_cp.wait()
    for cp in copies:
        cp.wait()

    # ---- compute: dots along E, signed logsigmoid, reduce ----
    in_row = in_buf[...].astype(jnp.float32)                       # [1, E]
    ctx = ctx_buf[...].astype(jnp.float32)                         # [P+N, E]

    dots = jnp.sum(ctx * in_row, axis=-1, keepdims=True)           # [P+N, 1]
    row_id = lax.broadcasted_iota(jnp.int32, (P + N, 1), 0)
    sign = jnp.where(row_id < P, 1.0, -1.0)                        # +1 pos, -1 neg
    z = sign * dots
    # numerically stable logsigmoid(z) = min(z, 0) - log1p(exp(-|z|))
    logsig = jnp.minimum(z, 0.0) - jnp.log1p(jnp.exp(-jnp.abs(z)))
    loss = -jnp.sum(logsig, axis=0, keepdims=True)                 # [1, 1]

    out_ref[...] = jnp.broadcast_to(
        loss.reshape(1, 1, 1), out_ref.shape).astype(out_ref.dtype)


def word2vec_loss(input_labels, positive_labels, negative_labels, w_in, w_out):
    """Matches EmbeddingModel.forward: returns per-example loss of shape [B]."""
    B = input_labels.shape[0]
    P = positive_labels.shape[1]
    N = negative_labels.shape[1]
    E = w_in.shape[1]
    table_dtype = w_in.dtype

    grid_spec = pltpu.PrefetchScalarGridSpec(
        num_scalar_prefetch=3,                  # labels -> SMEM, drive DMA gathers
        grid=(B,),
        in_specs=[
            pl.BlockSpec(memory_space=pl.ANY),  # W_in stays in HBM
            pl.BlockSpec(memory_space=pl.ANY),  # W_out stays in HBM
        ],
        # lane-dense (1, 1, 128) output block per batch element
        out_specs=pl.BlockSpec((1, 1, _LANES), lambda b, *_: (b, 0, 0)),
        scratch_shapes=[
            pltpu.VMEM((1, E), table_dtype),        # center-word row
            pltpu.VMEM((P + N, E), table_dtype),    # pos+neg context rows
            pltpu.SemaphoreType.DMA((1 + P + N,)),  # one slot per row DMA
        ],
    )

    out = pl.pallas_call(
        w2v_kernel,
        grid_spec=grid_spec,
        out_shape=jax.ShapeDtypeStruct((B, 1, _LANES), jnp.float32),
        compiler_params=pltpu.CompilerParams(
            dimension_semantics=("parallel",)),  # shard batch across TCs (v7x megacore)
    )(
        input_labels.astype(jnp.int32),
        positive_labels.astype(jnp.int32),
        negative_labels.astype(jnp.int32),
        w_in,   # native dtype, no wrapper-side up-cast
        w_out,
    )
    return out[:, 0, 0]


def word2vec_loss_ref(input_labels, positive_labels, negative_labels, w_in, w_out):
    # pure-JAX reference of the PyTorch forward
    w_in = w_in.astype(jnp.float32)
    w_out = w_out.astype(jnp.float32)
    in_emb = w_in[input_labels]                    # [B, E]
    pos_emb = w_out[positive_labels]               # [B, P, E]
    neg_emb = w_out[negative_labels]               # [B, N, E]
    pos_dot = jnp.einsum('bpe,be->bp', pos_emb, in_emb)
    neg_dot = jnp.einsum('bne,be->bn', neg_emb, -in_emb)
    log_pos = jax.nn.log_sigmoid(pos_dot).sum(1)
    log_neg = jax.nn.log_sigmoid(neg_dot).sum(1)
    return -(log_pos + log_neg)


if __name__ == "__main__":
    VOCAB = 512
    EMBED = 128               # lane-width embedding keeps row DMAs / dots lane-dense
    B = 4
    WINDOW = 3
    K = 5
    P = 2 * WINDOW            # positive context size
    N = K * 2 * WINDOW        # negative sample count

    key = jax.random.PRNGKey(0)
    k_in, k_out, k_c, k_p, k_n = jax.random.split(key, 5)

    # nn.Embedding default init: N(0, 1)
    w_in = jax.random.normal(k_in, (VOCAB, EMBED), dtype=jnp.float32)
    w_out = jax.random.normal(k_out, (VOCAB, EMBED), dtype=jnp.float32)

    input_labels = jax.random.randint(k_c, (B,), 0, VOCAB, dtype=jnp.int32)
    positive_labels = jax.random.randint(k_p, (B, P), 0, VOCAB, dtype=jnp.int32)
    negative_labels = jax.random.randint(k_n, (B, N), 0, VOCAB, dtype=jnp.int32)

    loss = word2vec_loss(input_labels, positive_labels, negative_labels, w_in, w_out)
    loss = jax.block_until_ready(loss)

    loss_ref = word2vec_loss_ref(input_labels, positive_labels, negative_labels, w_in, w_out)
    assert loss.shape == (B,)
    assert jnp.allclose(loss, loss_ref, atol=1e-4, rtol=1e-4), (loss, loss_ref)

    print("KERNEL_OK")
</pallas_src>

<mosaic_0001>
module attributes {stable_mosaic.version = 11 : i64} {
  func.func @w2v_kernel(%arg0: i32, %arg1: memref<4xi32, #tpu.memory_space<smem>>, %arg2: memref<4x6xi32, #tpu.memory_space<smem>>, %arg3: memref<4x30xi32, #tpu.memory_space<smem>>, %arg4: memref<512x128xf32, #tpu.memory_space<any>>, %arg5: memref<512x128xf32, #tpu.memory_space<any>>, %arg6: memref<1x1x128xf32, #tpu.memory_space<vmem>>, %arg7: memref<1x128xf32, #tpu.memory_space<vmem>>, %arg8: memref<36x128xf32, #tpu.memory_space<vmem>>, %arg9: memref<37x!tpu.dma_semaphore, #tpu.memory_space<semaphore_mem>>) attributes {dimension_semantics = [#tpu.dimension_semantics<parallel>], iteration_bounds = array<i64: 4>, scalar_prefetch = 3 : i64, scratch_operands = 3 : i64, tpu.core_type = #tpu.core_type<tc>, window_params = [{}, {}, {transform_indices = @transform_2, window_bounds = array<i64: 1, 1, 128>}]} {
    %0 = arith.index_cast %arg0 : i32 to index
    %1 = memref.load %arg1[%0] : memref<4xi32, #tpu.memory_space<smem>>
    %c0_i32 = arith.constant 0 : i32
    %c0_i32_0 = arith.constant 0 : i32
    %2 = tpu.memref_slice %arg4[%1, %c0_i32_0] : memref<512x128xf32, #tpu.memory_space<any>> -> memref<1x128xf32, #tpu.memory_space<any>>
    %3 = tpu.memref_slice %arg9[%c0_i32] : memref<37x!tpu.dma_semaphore, #tpu.memory_space<semaphore_mem>> -> memref<1x!tpu.dma_semaphore, #tpu.memory_space<semaphore_mem>>
    %4 = tpu.memref_squeeze %3 : memref<1x!tpu.dma_semaphore, #tpu.memory_space<semaphore_mem>> -> memref<!tpu.dma_semaphore, #tpu.memory_space<semaphore_mem>>
    tpu.enqueue_dma source(%2 : memref<1x128xf32, #tpu.memory_space<any>>) target(%arg7 : memref<1x128xf32, #tpu.memory_space<vmem>>) target_semaphore(%4 : memref<!tpu.dma_semaphore, #tpu.memory_space<semaphore_mem>>)
    %5 = arith.index_cast %arg0 : i32 to index
    %c0 = arith.constant 0 : index
    %6 = memref.load %arg2[%5, %c0] : memref<4x6xi32, #tpu.memory_space<smem>>
    %c1_i32 = arith.constant 1 : i32
    %c0_i32_1 = arith.constant 0 : i32
    %7 = tpu.memref_slice %arg5[%6, %c0_i32_1] : memref<512x128xf32, #tpu.memory_space<any>> -> memref<1x128xf32, #tpu.memory_space<any>>
    %c0_i32_2 = arith.constant 0 : i32
    %c0_i32_3 = arith.constant 0 : i32
    %8 = tpu.memref_slice %arg8[%c0_i32_2, %c0_i32_3] : memref<36x128xf32, #tpu.memory_space<vmem>> -> memref<1x128xf32, #tpu.memory_space<vmem>>
    %9 = tpu.memref_slice %arg9[%c1_i32] : memref<37x!tpu.dma_semaphore, #tpu.memory_space<semaphore_mem>> -> memref<1x!tpu.dma_semaphore, #tpu.memory_space<semaphore_mem>>
    %10 = tpu.memref_squeeze %9 : memref<1x!tpu.dma_semaphore, #tpu.memory_space<semaphore_mem>> -> memref<!tpu.dma_semaphore, #tpu.memory_space<semaphore_mem>>
    tpu.enqueue_dma source(%7 : memref<1x128xf32, #tpu.memory_space<any>>) target(%8 : memref<1x128xf32, #tpu.memory_space<vmem>>) target_semaphore(%10 : memref<!tpu.dma_semaphore, #tpu.memory_space<semaphore_mem>>)
    %11 = arith.index_cast %arg0 : i32 to index
    %c1 = arith.constant 1 : index
    %12 = memref.load %arg2[%11, %c1] : memref<4x6xi32, #tpu.memory_space<smem>>
    %c2_i32 = arith.constant 2 : i32
    %c0_i32_4 = arith.constant 0 : i32
    %13 = tpu.memref_slice %arg5[%12, %c0_i32_4] : memref<512x128xf32, #tpu.memory_space<any>> -> memref<1x128xf32, #tpu.memory_space<any>>
    %c1_i32_5 = arith.constant 1 : i32
    %c0_i32_6 = arith.constant 0 : i32
    %14 = tpu.memref_slice %arg8[%c1_i32_5, %c0_i32_6] : memref<36x128xf32, #tpu.memory_space<vmem>> -> memref<1x128xf32, #tpu.memory_space<vmem>>
    %15 = tpu.memref_slice %arg9[%c2_i32] : memref<37x!tpu.dma_semaphore, #tpu.memory_space<semaphore_mem>> -> memref<1x!tpu.dma_semaphore, #tpu.memory_space<semaphore_mem>>
    %16 = tpu.memref_squeeze %15 : memref<1x!tpu.dma_semaphore, #tpu.memory_space<semaphore_mem>> -> memref<!tpu.dma_semaphore, #tpu.memory_space<semaphore_mem>>
    tpu.enqueue_dma source(%13 : memref<1x128xf32, #tpu.memory_space<any>>) target(%14 : memref<1x128xf32, #tpu.memory_space<vmem>>) target_semaphore(%16 : memref<!tpu.dma_semaphore, #tpu.memory_space<semaphore_mem>>)
    %17 = arith.index_cast %arg0 : i32 to index
    %c2 = arith.constant 2 : index
    %18 = memref.load %arg2[%17, %c2] : memref<4x6xi32, #tpu.memory_space<smem>>
    %c3_i32 = arith.constant 3 : i32
    %c0_i32_7 = arith.constant 0 : i32
    %19 = tpu.memref_slice %arg5[%18, %c0_i32_7] : memref<512x128xf32, #tpu.memory_space<any>> -> memref<1x128xf32, #tpu.memory_space<any>>
    %c2_i32_8 = arith.constant 2 : i32
    %c0_i32_9 = arith.constant 0 : i32
    %20 = tpu.memref_slice %arg8[%c2_i32_8, %c0_i32_9] : memref<36x128xf32, #tpu.memory_space<vmem>> -> memref<1x128xf32, #tpu.memory_space<vmem>>
    %21 = tpu.memref_slice %arg9[%c3_i32] : memref<37x!tpu.dma_semaphore, #tpu.memory_space<semaphore_mem>> -> memref<1x!tpu.dma_semaphore, #tpu.memory_space<semaphore_mem>>
    %22 = tpu.memref_squeeze %21 : memref<1x!tpu.dma_semaphore, #tpu.memory_space<semaphore_mem>> -> memref<!tpu.dma_semaphore, #tpu.memory_space<semaphore_mem>>
    tpu.enqueue_dma source(%19 : memref<1x128xf32, #tpu.memory_space<any>>) target(%20 : memref<1x128xf32, #tpu.memory_space<vmem>>) target_semaphore(%22 : memref<!tpu.dma_semaphore, #tpu.memory_space<semaphore_mem>>)
    %23 = arith.index_cast %arg0 : i32 to index
    %c3 = arith.constant 3 : index
    %24 = memref.load %arg2[%23, %c3] : memref<4x6xi32, #tpu.memory_space<smem>>
    %c4_i32 = arith.constant 4 : i32
    %c0_i32_10 = arith.constant 0 : i32
    %25 = tpu.memref_slice %arg5[%24, %c0_i32_10] : memref<512x128xf32, #tpu.memory_space<any>> -> memref<1x128xf32, #tpu.memory_space<any>>
    %c3_i32_11 = arith.constant 3 : i32
    %c0_i32_12 = arith.constant 0 : i32
    %26 = tpu.memref_slice %arg8[%c3_i32_11, %c0_i32_12] : memref<36x128xf32, #tpu.memory_space<vmem>> -> memref<1x128xf32, #tpu.memory_space<vmem>>
    %27 = tpu.memref_slice %arg9[%c4_i32] : memref<37x!tpu.dma_semaphore, #tpu.memory_space<semaphore_mem>> -> memref<1x!tpu.dma_semaphore, #tpu.memory_space<semaphore_mem>>
    %28 = tpu.memref_squeeze %27 : memref<1x!tpu.dma_semaphore, #tpu.memory_space<semaphore_mem>> -> memref<!tpu.dma_semaphore, #tpu.memory_space<semaphore_mem>>
    tpu.enqueue_dma source(%25 : memref<1x128xf32, #tpu.memory_space<any>>) target(%26 : memref<1x128xf32, #tpu.memory_space<vmem>>) target_semaphore(%28 : memref<!tpu.dma_semaphore, #tpu.memory_space<semaphore_mem>>)
    %29 = arith.index_cast %arg0 : i32 to index
    %c4 = arith.constant 4 : index
    %30 = memref.load %arg2[%29, %c4] : memref<4x6xi32, #tpu.memory_space<smem>>
    %c5_i32 = arith.constant 5 : i32
    %c0_i32_13 = arith.constant 0 : i32
    %31 = tpu.memref_slice %arg5[%30, %c0_i32_13] : memref<512x128xf32, #tpu.memory_space<any>> -> memref<1x128xf32, #tpu.memory_space<any>>
    %c4_i32_14 = arith.constant 4 : i32
    %c0_i32_15 = arith.constant 0 : i32
    %32 = tpu.memref_slice %arg8[%c4_i32_14, %c0_i32_15] : memref<36x128xf32, #tpu.memory_space<vmem>> -> memref<1x128xf32, #tpu.memory_space<vmem>>
    %33 = tpu.memref_slice %arg9[%c5_i32] : memref<37x!tpu.dma_semaphore, #tpu.memory_space<semaphore_mem>> -> memref<1x!tpu.dma_semaphore, #tpu.memory_space<semaphore_mem>>
    %34 = tpu.memref_squeeze %33 : memref<1x!tpu.dma_semaphore, #tpu.memory_space<semaphore_mem>> -> memref<!tpu.dma_semaphore, #tpu.memory_space<semaphore_mem>>
    tpu.enqueue_dma source(%31 : memref<1x128xf32, #tpu.memory_space<any>>) target(%32 : memref<1x128xf32, #tpu.memory_space<vmem>>) target_semaphore(%34 : memref<!tpu.dma_semaphore, #tpu.memory_space<semaphore_mem>>)
    %35 = arith.index_cast %arg0 : i32 to index
    %c5 = arith.constant 5 : index
    %36 = memref.load %arg2[%35, %c5] : memref<4x6xi32, #tpu.memory_space<smem>>
    %c6_i32 = arith.constant 6 : i32
    %c0_i32_16 = arith.constant 0 : i32
    %37 = tpu.memref_slice %arg5[%36, %c0_i32_16] : memref<512x128xf32, #tpu.memory_space<any>> -> memref<1x128xf32, #tpu.memory_space<any>>
    %c5_i32_17 = arith.constant 5 : i32
    %c0_i32_18 = arith.constant 0 : i32
    %38 = tpu.memref_slice %arg8[%c5_i32_17, %c0_i32_18] : memref<36x128xf32, #tpu.memory_space<vmem>> -> memref<1x128xf32, #tpu.memory_space<vmem>>
    %39 = tpu.memref_slice %arg9[%c6_i32] : memref<37x!tpu.dma_semaphore, #tpu.memory_space<semaphore_mem>> -> memref<1x!tpu.dma_semaphore, #tpu.memory_space<semaphore_mem>>
    %40 = tpu.memref_squeeze %39 : memref<1x!tpu.dma_semaphore, #tpu.memory_space<semaphore_mem>> -> memref<!tpu.dma_semaphore, #tpu.memory_space<semaphore_mem>>
    tpu.enqueue_dma source(%37 : memref<1x128xf32, #tpu.memory_space<any>>) target(%38 : memref<1x128xf32, #tpu.memory_space<vmem>>) target_semaphore(%40 : memref<!tpu.dma_semaphore, #tpu.memory_space<semaphore_mem>>)
    %41 = arith.index_cast %arg0 : i32 to index
    %c0_19 = arith.constant 0 : index
    %42 = memref.load %arg3[%41, %c0_19] : memref<4x30xi32, #tpu.memory_space<smem>>
    %c7_i32 = arith.constant 7 : i32
    %c0_i32_20 = arith.constant 0 : i32
    %43 = tpu.memref_slice %arg5[%42, %c0_i32_20] : memref<512x128xf32, #tpu.memory_space<any>> -> memref<1x128xf32, #tpu.memory_space<any>>
    %c6_i32_21 = arith.constant 6 : i32
    %c0_i32_22 = arith.constant 0 : i32
    %44 = tpu.memref_slice %arg8[%c6_i32_21, %c0_i32_22] : memref<36x128xf32, #tpu.memory_space<vmem>> -> memref<1x128xf32, #tpu.memory_space<vmem>>
    %45 = tpu.memref_slice %arg9[%c7_i32] : memref<37x!tpu.dma_semaphore, #tpu.memory_space<semaphore_mem>> -> memref<1x!tpu.dma_semaphore, #tpu.memory_space<semaphore_mem>>
    %46 = tpu.memref_squeeze %45 : memref<1x!tpu.dma_semaphore, #tpu.memory_space<semaphore_mem>> -> memref<!tpu.dma_semaphore, #tpu.memory_space<semaphore_mem>>
    tpu.enqueue_dma source(%43 : memref<1x128xf32, #tpu.memory_space<any>>) target(%44 : memref<1x128xf32, #tpu.memory_space<vmem>>) target_semaphore(%46 : memref<!tpu.dma_semaphore, #tpu.memory_space<semaphore_mem>>)
    %47 = arith.index_cast %arg0 : i32 to index
    %c1_23 = arith.constant 1 : index
    %48 = memref.load %arg3[%47, %c1_23] : memref<4x30xi32, #tpu.memory_space<smem>>
    %c8_i32 = arith.constant 8 : i32
    %c0_i32_24 = arith.constant 0 : i32
    %49 = tpu.memref_slice %arg5[%48, %c0_i32_24] : memref<512x128xf32, #tpu.memory_space<any>> -> memref<1x128xf32, #tpu.memory_space<any>>
    %c7_i32_25 = arith.constant 7 : i32
    %c0_i32_26 = arith.constant 0 : i32
    %50 = tpu.memref_slice %arg8[%c7_i32_25, %c0_i32_26] : memref<36x128xf32, #tpu.memory_space<vmem>> -> memref<1x128xf32, #tpu.memory_space<vmem>>
    %51 = tpu.memref_slice %arg9[%c8_i32] : memref<37x!tpu.dma_semaphore, #tpu.memory_space<semaphore_mem>> -> memref<1x!tpu.dma_semaphore, #tpu.memory_space<semaphore_mem>>
    %52 = tpu.memref_squeeze %51 : memref<1x!tpu.dma_semaphore, #tpu.memory_space<semaphore_mem>> -> memref<!tpu.dma_semaphore, #tpu.memory_space<semaphore_mem>>
    tpu.enqueue_dma source(%49 : memref<1x128xf32, #tpu.memory_space<any>>) target(%50 : memref<1x128xf32, #tpu.memory_space<vmem>>) target_semaphore(%52 : memref<!tpu.dma_semaphore, #tpu.memory_space<semaphore_mem>>)
    %53 = arith.index_cast %arg0 : i32 to index
    %c2_27 = arith.constant 2 : index
    %54 = memref.load %arg3[%53, %c2_27] : memref<4x30xi32, #tpu.memory_space<smem>>
    %c9_i32 = arith.constant 9 : i32
    %c0_i32_28 = arith.constant 0 : i32
    %55 = tpu.memref_slice %arg5[%54, %c0_i32_28] : memref<512x128xf32, #tpu.memory_space<any>> -> memref<1x128xf32, #tpu.memory_space<any>>
    %c8_i32_29 = arith.constant 8 : i32
    %c0_i32_30 = arith.constant 0 : i32
    %56 = tpu.memref_slice %arg8[%c8_i32_29, %c0_i32_30] : memref<36x128xf32, #tpu.memory_space<vmem>> -> memref<1x128xf32, #tpu.memory_space<vmem>>
    %57 = tpu.memref_slice %arg9[%c9_i32] : memref<37x!tpu.dma_semaphore, #tpu.memory_space<semaphore_mem>> -> memref<1x!tpu.dma_semaphore, #tpu.memory_space<semaphore_mem>>
    %58 = tpu.memref_squeeze %57 : memref<1x!tpu.dma_semaphore, #tpu.memory_space<semaphore_mem>> -> memref<!tpu.dma_semaphore, #tpu.memory_space<semaphore_mem>>
    tpu.enqueue_dma source(%55 : memref<1x128xf32, #tpu.memory_space<any>>) target(%56 : memref<1x128xf32, #tpu.memory_space<vmem>>) target_semaphore(%58 : memref<!tpu.dma_semaphore, #tpu.memory_space<semaphore_mem>>)
    %59 = arith.index_cast %arg0 : i32 to index
    %c3_31 = arith.constant 3 : index
    %60 = memref.load %arg3[%59, %c3_31] : memref<4x30xi32, #tpu.memory_space<smem>>
    %c10_i32 = arith.constant 10 : i32
    %c0_i32_32 = arith.constant 0 : i32
    %61 = tpu.memref_slice %arg5[%60, %c0_i32_32] : memref<512x128xf32, #tpu.memory_space<any>> -> memref<1x128xf32, #tpu.memory_space<any>>
    %c9_i32_33 = arith.constant 9 : i32
    %c0_i32_34 = arith.constant 0 : i32
    %62 = tpu.memref_slice %arg8[%c9_i32_33, %c0_i32_34] : memref<36x128xf32, #tpu.memory_space<vmem>> -> memref<1x128xf32, #tpu.memory_space<vmem>>
    %63 = tpu.memref_slice %arg9[%c10_i32] : memref<37x!tpu.dma_semaphore, #tpu.memory_space<semaphore_mem>> -> memref<1x!tpu.dma_semaphore, #tpu.memory_space<semaphore_mem>>
    %64 = tpu.memref_squeeze %63 : memref<1x!tpu.dma_semaphore, #tpu.memory_space<semaphore_mem>> -> memref<!tpu.dma_semaphore, #tpu.memory_space<semaphore_mem>>
    tpu.enqueue_dma source(%61 : memref<1x128xf32, #tpu.memory_space<any>>) target(%62 : memref<1x128xf32, #tpu.memory_space<vmem>>) target_semaphore(%64 : memref<!tpu.dma_semaphore, #tpu.memory_space<semaphore_mem>>)
    %65 = arith.index_cast %arg0 : i32 to index
    %c4_35 = arith.constant 4 : index
    %66 = memref.load %arg3[%65, %c4_35] : memref<4x30xi32, #tpu.memory_space<smem>>
    %c11_i32 = arith.constant 11 : i32
    %c0_i32_36 = arith.constant 0 : i32
    %67 = tpu.memref_slice %arg5[%66, %c0_i32_36] : memref<512x128xf32, #tpu.memory_space<any>> -> memref<1x128xf32, #tpu.memory_space<any>>
    %c10_i32_37 = arith.constant 10 : i32
    %c0_i32_38 = arith.constant 0 : i32
    %68 = tpu.memref_slice %arg8[%c10_i32_37, %c0_i32_38] : memref<36x128xf32, #tpu.memory_space<vmem>> -> memref<1x128xf32, #tpu.memory_space<vmem>>
    %69 = tpu.memref_slice %arg9[%c11_i32] : memref<37x!tpu.dma_semaphore, #tpu.memory_space<semaphore_mem>> -> memref<1x!tpu.dma_semaphore, #tpu.memory_space<semaphore_mem>>
    %70 = tpu.memref_squeeze %69 : memref<1x!tpu.dma_semaphore, #tpu.memory_space<semaphore_mem>> -> memref<!tpu.dma_semaphore, #tpu.memory_space<semaphore_mem>>
    tpu.enqueue_dma source(%67 : memref<1x128xf32, #tpu.memory_space<any>>) target(%68 : memref<1x128xf32, #tpu.memory_space<vmem>>) target_semaphore(%70 : memref<!tpu.dma_semaphore, #tpu.memory_space<semaphore_mem>>)
    %71 = arith.index_cast %arg0 : i32 to index
    %c5_39 = arith.constant 5 : index
    %72 = memref.load %arg3[%71, %c5_39] : memref<4x30xi32, #tpu.memory_space<smem>>
    %c12_i32 = arith.constant 12 : i32
    %c0_i32_40 = arith.constant 0 : i32
    %73 = tpu.memref_slice %arg5[%72, %c0_i32_40] : memref<512x128xf32, #tpu.memory_space<any>> -> memref<1x128xf32, #tpu.memory_space<any>>
    %c11_i32_41 = arith.constant 11 : i32
    %c0_i32_42 = arith.constant 0 : i32
    %74 = tpu.memref_slice %arg8[%c11_i32_41, %c0_i32_42] : memref<36x128xf32, #tpu.memory_space<vmem>> -> memref<1x128xf32, #tpu.memory_space<vmem>>
    %75 = tpu.memref_slice %arg9[%c12_i32] : memref<37x!tpu.dma_semaphore, #tpu.memory_space<semaphore_mem>> -> memref<1x!tpu.dma_semaphore, #tpu.memory_space<semaphore_mem>>
    %76 = tpu.memref_squeeze %75 : memref<1x!tpu.dma_semaphore, #tpu.memory_space<semaphore_mem>> -> memref<!tpu.dma_semaphore, #tpu.memory_space<semaphore_mem>>
    tpu.enqueue_dma source(%73 : memref<1x128xf32, #tpu.memory_space<any>>) target(%74 : memref<1x128xf32, #tpu.memory_space<vmem>>) target_semaphore(%76 : memref<!tpu.dma_semaphore, #tpu.memory_space<semaphore_mem>>)
    %77 = arith.index_cast %arg0 : i32 to index
    %c6 = arith.constant 6 : index
    %78 = memref.load %arg3[%77, %c6] : memref<4x30xi32, #tpu.memory_space<smem>>
    %c13_i32 = arith.constant 13 : i32
    %c0_i32_43 = arith.constant 0 : i32
    %79 = tpu.memref_slice %arg5[%78, %c0_i32_43] : memref<512x128xf32, #tpu.memory_space<any>> -> memref<1x128xf32, #tpu.memory_space<any>>
    %c12_i32_44 = arith.constant 12 : i32
    %c0_i32_45 = arith.constant 0 : i32
    %80 = tpu.memref_slice %arg8[%c12_i32_44, %c0_i32_45] : memref<36x128xf32, #tpu.memory_space<vmem>> -> memref<1x128xf32, #tpu.memory_space<vmem>>
    %81 = tpu.memref_slice %arg9[%c13_i32] : memref<37x!tpu.dma_semaphore, #tpu.memory_space<semaphore_mem>> -> memref<1x!tpu.dma_semaphore, #tpu.memory_space<semaphore_mem>>
    %82 = tpu.memref_squeeze %81 : memref<1x!tpu.dma_semaphore, #tpu.memory_space<semaphore_mem>> -> memref<!tpu.dma_semaphore, #tpu.memory_space<semaphore_mem>>
    tpu.enqueue_dma source(%79 : memref<1x128xf32, #tpu.memory_space<any>>) target(%80 : memref<1x128xf32, #tpu.memory_space<vmem>>) target_semaphore(%82 : memref<!tpu.dma_semaphore, #tpu.memory_space<semaphore_mem>>)
    %83 = arith.index_cast %arg0 : i32 to index
    %c7 = arith.constant 7 : index
    %84 = memref.load %arg3[%83, %c7] : memref<4x30xi32, #tpu.memory_space<smem>>
    %c14_i32 = arith.constant 14 : i32
    %c0_i32_46 = arith.constant 0 : i32
    %85 = tpu.memref_slice %arg5[%84, %c0_i32_46] : memref<512x128xf32, #tpu.memory_space<any>> -> memref<1x128xf32, #tpu.memory_space<any>>
    %c13_i32_47 = arith.constant 13 : i32
    %c0_i32_48 = arith.constant 0 : i32
    %86 = tpu.memref_slice %arg8[%c13_i32_47, %c0_i32_48] : memref<36x128xf32, #tpu.memory_space<vmem>> -> memref<1x128xf32, #tpu.memory_space<vmem>>
    %87 = tpu.memref_slice %arg9[%c14_i32] : memref<37x!tpu.dma_semaphore, #tpu.memory_space<semaphore_mem>> -> memref<1x!tpu.dma_semaphore, #tpu.memory_space<semaphore_mem>>
    %88 = tpu.memref_squeeze %87 : memref<1x!tpu.dma_semaphore, #tpu.memory_space<semaphore_mem>> -> memref<!tpu.dma_semaphore, #tpu.memory_space<semaphore_mem>>
    tpu.enqueue_dma source(%85 : memref<1x128xf32, #tpu.memory_space<any>>) target(%86 : memref<1x128xf32, #tpu.memory_space<vmem>>) target_semaphore(%88 : memref<!tpu.dma_semaphore, #tpu.memory_space<semaphore_mem>>)
    %89 = arith.index_cast %arg0 : i32 to index
    %c8 = arith.constant 8 : index
    %90 = memref.load %arg3[%89, %c8] : memref<4x30xi32, #tpu.memory_space<smem>>
    %c15_i32 = arith.constant 15 : i32
    %c0_i32_49 = arith.constant 0 : i32
    %91 = tpu.memref_slice %arg5[%90, %c0_i32_49] : memref<512x128xf32, #tpu.memory_space<any>> -> memref<1x128xf32, #tpu.memory_space<any>>
    %c14_i32_50 = arith.constant 14 : i32
    %c0_i32_51 = arith.constant 0 : i32
    %92 = tpu.memref_slice %arg8[%c14_i32_50, %c0_i32_51] : memref<36x128xf32, #tpu.memory_space<vmem>> -> memref<1x128xf32, #tpu.memory_space<vmem>>
    %93 = tpu.memref_slice %arg9[%c15_i32] : memref<37x!tpu.dma_semaphore, #tpu.memory_space<semaphore_mem>> -> memref<1x!tpu.dma_semaphore, #tpu.memory_space<semaphore_mem>>
    %94 = tpu.memref_squeeze %93 : memref<1x!tpu.dma_semaphore, #tpu.memory_space<semaphore_mem>> -> memref<!tpu.dma_semaphore, #tpu.memory_space<semaphore_mem>>
    tpu.enqueue_dma source(%91 : memref<1x128xf32, #tpu.memory_space<any>>) target(%92 : memref<1x128xf32, #tpu.memory_space<vmem>>) target_semaphore(%94 : memref<!tpu.dma_semaphore, #tpu.memory_space<semaphore_mem>>)
    %95 = arith.index_cast %arg0 : i32 to index
    %c9 = arith.constant 9 : index
    %96 = memref.load %arg3[%95, %c9] : memref<4x30xi32, #tpu.memory_space<smem>>
    %c16_i32 = arith.constant 16 : i32
    %c0_i32_52 = arith.constant 0 : i32
    %97 = tpu.memref_slice %arg5[%96, %c0_i32_52] : memref<512x128xf32, #tpu.memory_space<any>> -> memref<1x128xf32, #tpu.memory_space<any>>
    %c15_i32_53 = arith.constant 15 : i32
    %c0_i32_54 = arith.constant 0 : i32
    %98 = tpu.memref_slice %arg8[%c15_i32_53, %c0_i32_54] : memref<36x128xf32, #tpu.memory_space<vmem>> -> memref<1x128xf32, #tpu.memory_space<vmem>>
    %99 = tpu.memref_slice %arg9[%c16_i32] : memref<37x!tpu.dma_semaphore, #tpu.memory_space<semaphore_mem>> -> memref<1x!tpu.dma_semaphore, #tpu.memory_space<semaphore_mem>>
    %100 = tpu.memref_squeeze %99 : memref<1x!tpu.dma_semaphore, #tpu.memory_space<semaphore_mem>> -> memref<!tpu.dma_semaphore, #tpu.memory_space<semaphore_mem>>
    tpu.enqueue_dma source(%97 : memref<1x128xf32, #tpu.memory_space<any>>) target(%98 : memref<1x128xf32, #tpu.memory_space<vmem>>) target_semaphore(%100 : memref<!tpu.dma_semaphore, #tpu.memory_space<semaphore_mem>>)
    %101 = arith.index_cast %arg0 : i32 to index
    %c10 = arith.constant 10 : index
    %102 = memref.load %arg3[%101, %c10] : memref<4x30xi32, #tpu.memory_space<smem>>
    %c17_i32 = arith.constant 17 : i32
    %c0_i32_55 = arith.constant 0 : i32
    %103 = tpu.memref_slice %arg5[%102, %c0_i32_55] : memref<512x128xf32, #tpu.memory_space<any>> -> memref<1x128xf32, #tpu.memory_space<any>>
    %c16_i32_56 = arith.constant 16 : i32
    %c0_i32_57 = arith.constant 0 : i32
    %104 = tpu.memref_slice %arg8[%c16_i32_56, %c0_i32_57] : memref<36x128xf32, #tpu.memory_space<vmem>> -> memref<1x128xf32, #tpu.memory_space<vmem>>
    %105 = tpu.memref_slice %arg9[%c17_i32] : memref<37x!tpu.dma_semaphore, #tpu.memory_space<semaphore_mem>> -> memref<1x!tpu.dma_semaphore, #tpu.memory_space<semaphore_mem>>
    %106 = tpu.memref_squeeze %105 : memref<1x!tpu.dma_semaphore, #tpu.memory_space<semaphore_mem>> -> memref<!tpu.dma_semaphore, #tpu.memory_space<semaphore_mem>>
    tpu.enqueue_dma source(%103 : memref<1x128xf32, #tpu.memory_space<any>>) target(%104 : memref<1x128xf32, #tpu.memory_space<vmem>>) target_semaphore(%106 : memref<!tpu.dma_semaphore, #tpu.memory_space<semaphore_mem>>)
    %107 = arith.index_cast %arg0 : i32 to index
    %c11 = arith.constant 11 : index
    %108 = memref.load %arg3[%107, %c11] : memref<4x30xi32, #tpu.memory_space<smem>>
    %c18_i32 = arith.constant 18 : i32
    %c0_i32_58 = arith.constant 0 : i32
    %109 = tpu.memref_slice %arg5[%108, %c0_i32_58] : memref<512x128xf32, #tpu.memory_space<any>> -> memref<1x128xf32, #tpu.memory_space<any>>
    %c17_i32_59 = arith.constant 17 : i32
    %c0_i32_60 = arith.constant 0 : i32
    %110 = tpu.memref_slice %arg8[%c17_i32_59, %c0_i32_60] : memref<36x128xf32, #tpu.memory_space<vmem>> -> memref<1x128xf32, #tpu.memory_space<vmem>>
    %111 = tpu.memref_slice %arg9[%c18_i32] : memref<37x!tpu.dma_semaphore, #tpu.memory_space<semaphore_mem>> -> memref<1x!tpu.dma_semaphore, #tpu.memory_space<semaphore_mem>>
    %112 = tpu.memref_squeeze %111 : memref<1x!tpu.dma_semaphore, #tpu.memory_space<semaphore_mem>> -> memref<!tpu.dma_semaphore, #tpu.memory_space<semaphore_mem>>
    tpu.enqueue_dma source(%109 : memref<1x128xf32, #tpu.memory_space<any>>) target(%110 : memref<1x128xf32, #tpu.memory_space<vmem>>) target_semaphore(%112 : memref<!tpu.dma_semaphore, #tpu.memory_space<semaphore_mem>>)
    %113 = arith.index_cast %arg0 : i32 to index
    %c12 = arith.constant 12 : index
    %114 = memref.load %arg3[%113, %c12] : memref<4x30xi32, #tpu.memory_space<smem>>
    %c19_i32 = arith.constant 19 : i32
    %c0_i32_61 = arith.constant 0 : i32
    %115 = tpu.memref_slice %arg5[%114, %c0_i32_61] : memref<512x128xf32, #tpu.memory_space<any>> -> memref<1x128xf32, #tpu.memory_space<any>>
    %c18_i32_62 = arith.constant 18 : i32
    %c0_i32_63 = arith.constant 0 : i32
    %116 = tpu.memref_slice %arg8[%c18_i32_62, %c0_i32_63] : memref<36x128xf32, #tpu.memory_space<vmem>> -> memref<1x128xf32, #tpu.memory_space<vmem>>
    %117 = tpu.memref_slice %arg9[%c19_i32] : memref<37x!tpu.dma_semaphore, #tpu.memory_space<semaphore_mem>> -> memref<1x!tpu.dma_semaphore, #tpu.memory_space<semaphore_mem>>
    %118 = tpu.memref_squeeze %117 : memref<1x!tpu.dma_semaphore, #tpu.memory_space<semaphore_mem>> -> memref<!tpu.dma_semaphore, #tpu.memory_space<semaphore_mem>>
    tpu.enqueue_dma source(%115 : memref<1x128xf32, #tpu.memory_space<any>>) target(%116 : memref<1x128xf32, #tpu.memory_space<vmem>>) target_semaphore(%118 : memref<!tpu.dma_semaphore, #tpu.memory_space<semaphore_mem>>)
    %119 = arith.index_cast %arg0 : i32 to index
    %c13 = arith.constant 13 : index
    %120 = memref.load %arg3[%119, %c13] : memref<4x30xi32, #tpu.memory_space<smem>>
    %c20_i32 = arith.constant 20 : i32
    %c0_i32_64 = arith.constant 0 : i32
    %121 = tpu.memref_slice %arg5[%120, %c0_i32_64] : memref<512x128xf32, #tpu.memory_space<any>> -> memref<1x128xf32, #tpu.memory_space<any>>
    %c19_i32_65 = arith.constant 19 : i32
    %c0_i32_66 = arith.constant 0 : i32
    %122 = tpu.memref_slice %arg8[%c19_i32_65, %c0_i32_66] : memref<36x128xf32, #tpu.memory_space<vmem>> -> memref<1x128xf32, #tpu.memory_space<vmem>>
    %123 = tpu.memref_slice %arg9[%c20_i32] : memref<37x!tpu.dma_semaphore, #tpu.memory_space<semaphore_mem>> -> memref<1x!tpu.dma_semaphore, #tpu.memory_space<semaphore_mem>>
    %124 = tpu.memref_squeeze %123 : memref<1x!tpu.dma_semaphore, #tpu.memory_space<semaphore_mem>> -> memref<!tpu.dma_semaphore, #tpu.memory_space<semaphore_mem>>
    tpu.enqueue_dma source(%121 : memref<1x128xf32, #tpu.memory_space<any>>) target(%122 : memref<1x128xf32, #tpu.memory_space<vmem>>) target_semaphore(%124 : memref<!tpu.dma_semaphore, #tpu.memory_space<semaphore_mem>>)
    %125 = arith.index_cast %arg0 : i32 to index
    %c14 = arith.constant 14 : index
    %126 = memref.load %arg3[%125, %c14] : memref<4x30xi32, #tpu.memory_space<smem>>
    %c21_i32 = arith.constant 21 : i32
    %c0_i32_67 = arith.constant 0 : i32
    %127 = tpu.memref_slice %arg5[%126, %c0_i32_67] : memref<512x128xf32, #tpu.memory_space<any>> -> memref<1x128xf32, #tpu.memory_space<any>>
    %c20_i32_68 = arith.constant 20 : i32
    %c0_i32_69 = arith.constant 0 : i32
    %128 = tpu.memref_slice %arg8[%c20_i32_68, %c0_i32_69] : memref<36x128xf32, #tpu.memory_space<vmem>> -> memref<1x128xf32, #tpu.memory_space<vmem>>
    %129 = tpu.memref_slice %arg9[%c21_i32] : memref<37x!tpu.dma_semaphore, #tpu.memory_space<semaphore_mem>> -> memref<1x!tpu.dma_semaphore, #tpu.memory_space<semaphore_mem>>
    %130 = tpu.memref_squeeze %129 : memref<1x!tpu.dma_semaphore, #tpu.memory_space<semaphore_mem>> -> memref<!tpu.dma_semaphore, #tpu.memory_space<semaphore_mem>>
    tpu.enqueue_dma source(%127 : memref<1x128xf32, #tpu.memory_space<any>>) target(%128 : memref<1x128xf32, #tpu.memory_space<vmem>>) target_semaphore(%130 : memref<!tpu.dma_semaphore, #tpu.memory_space<semaphore_mem>>)
    %131 = arith.index_cast %arg0 : i32 to index
    %c15 = arith.constant 15 : index
    %132 = memref.load %arg3[%131, %c15] : memref<4x30xi32, #tpu.memory_space<smem>>
    %c22_i32 = arith.constant 22 : i32
    %c0_i32_70 = arith.constant 0 : i32
    %133 = tpu.memref_slice %arg5[%132, %c0_i32_70] : memref<512x128xf32, #tpu.memory_space<any>> -> memref<1x128xf32, #tpu.memory_space<any>>
    %c21_i32_71 = arith.constant 21 : i32
    %c0_i32_72 = arith.constant 0 : i32
    %134 = tpu.memref_slice %arg8[%c21_i32_71, %c0_i32_72] : memref<36x128xf32, #tpu.memory_space<vmem>> -> memref<1x128xf32, #tpu.memory_space<vmem>>
    %135 = tpu.memref_slice %arg9[%c22_i32] : memref<37x!tpu.dma_semaphore, #tpu.memory_space<semaphore_mem>> -> memref<1x!tpu.dma_semaphore, #tpu.memory_space<semaphore_mem>>
    %136 = tpu.memref_squeeze %135 : memref<1x!tpu.dma_semaphore, #tpu.memory_space<semaphore_mem>> -> memref<!tpu.dma_semaphore, #tpu.memory_space<semaphore_mem>>
    tpu.enqueue_dma source(%133 : memref<1x128xf32, #tpu.memory_space<any>>) target(%134 : memref<1x128xf32, #tpu.memory_space<vmem>>) target_semaphore(%136 : memref<!tpu.dma_semaphore, #tpu.memory_space<semaphore_mem>>)
    %137 = arith.index_cast %arg0 : i32 to index
    %c16 = arith.constant 16 : index
    %138 = memref.load %arg3[%137, %c16] : memref<4x30xi32, #tpu.memory_space<smem>>
    %c23_i32 = arith.constant 23 : i32
    %c0_i32_73 = arith.constant 0 : i32
    %139 = tpu.memref_slice %arg5[%138, %c0_i32_73] : memref<512x128xf32, #tpu.memory_space<any>> -> memref<1x128xf32, #tpu.memory_space<any>>
    %c22_i32_74 = arith.constant 22 : i32
    %c0_i32_75 = arith.constant 0 : i32
    %140 = tpu.memref_slice %arg8[%c22_i32_74, %c0_i32_75] : memref<36x128xf32, #tpu.memory_space<vmem>> -> memref<1x128xf32, #tpu.memory_space<vmem>>
    %141 = tpu.memref_slice %arg9[%c23_i32] : memref<37x!tpu.dma_semaphore, #tpu.memory_space<semaphore_mem>> -> memref<1x!tpu.dma_semaphore, #tpu.memory_space<semaphore_mem>>
    %142 = tpu.memref_squeeze %141 : memref<1x!tpu.dma_semaphore, #tpu.memory_space<semaphore_mem>> -> memref<!tpu.dma_semaphore, #tpu.memory_space<semaphore_mem>>
    tpu.enqueue_dma source(%139 : memref<1x128xf32, #tpu.memory_space<any>>) target(%140 : memref<1x128xf32, #tpu.memory_space<vmem>>) target_semaphore(%142 : memref<!tpu.dma_semaphore, #tpu.memory_space<semaphore_mem>>)
    %143 = arith.index_cast %arg0 : i32 to index
    %c17 = arith.constant 17 : index
    %144 = memref.load %arg3[%143, %c17] : memref<4x30xi32, #tpu.memory_space<smem>>
    %c24_i32 = arith.constant 24 : i32
    %c0_i32_76 = arith.constant 0 : i32
    %145 = tpu.memref_slice %arg5[%144, %c0_i32_76] : memref<512x128xf32, #tpu.memory_space<any>> -> memref<1x128xf32, #tpu.memory_space<any>>
    %c23_i32_77 = arith.constant 23 : i32
    %c0_i32_78 = arith.constant 0 : i32
    %146 = tpu.memref_slice %arg8[%c23_i32_77, %c0_i32_78] : memref<36x128xf32, #tpu.memory_space<vmem>> -> memref<1x128xf32, #tpu.memory_space<vmem>>
    %147 = tpu.memref_slice %arg9[%c24_i32] : memref<37x!tpu.dma_semaphore, #tpu.memory_space<semaphore_mem>> -> memref<1x!tpu.dma_semaphore, #tpu.memory_space<semaphore_mem>>
    %148 = tpu.memref_squeeze %147 : memref<1x!tpu.dma_semaphore, #tpu.memory_space<semaphore_mem>> -> memref<!tpu.dma_semaphore, #tpu.memory_space<semaphore_mem>>
    tpu.enqueue_dma source(%145 : memref<1x128xf32, #tpu.memory_space<any>>) target(%146 : memref<1x128xf32, #tpu.memory_space<vmem>>) target_semaphore(%148 : memref<!tpu.dma_semaphore, #tpu.memory_space<semaphore_mem>>)
    %149 = arith.index_cast %arg0 : i32 to index
    %c18 = arith.constant 18 : index
    %150 = memref.load %arg3[%149, %c18] : memref<4x30xi32, #tpu.memory_space<smem>>
    %c25_i32 = arith.constant 25 : i32
    %c0_i32_79 = arith.constant 0 : i32
    %151 = tpu.memref_slice %arg5[%150, %c0_i32_79] : memref<512x128xf32, #tpu.memory_space<any>> -> memref<1x128xf32, #tpu.memory_space<any>>
    %c24_i32_80 = arith.constant 24 : i32
    %c0_i32_81 = arith.constant 0 : i32
    %152 = tpu.memref_slice %arg8[%c24_i32_80, %c0_i32_81] : memref<36x128xf32, #tpu.memory_space<vmem>> -> memref<1x128xf32, #tpu.memory_space<vmem>>
    %153 = tpu.memref_slice %arg9[%c25_i32] : memref<37x!tpu.dma_semaphore, #tpu.memory_space<semaphore_mem>> -> memref<1x!tpu.dma_semaphore, #tpu.memory_space<semaphore_mem>>
    %154 = tpu.memref_squeeze %153 : memref<1x!tpu.dma_semaphore, #tpu.memory_space<semaphore_mem>> -> memref<!tpu.dma_semaphore, #tpu.memory_space<semaphore_mem>>
    tpu.enqueue_dma source(%151 : memref<1x128xf32, #tpu.memory_space<any>>) target(%152 : memref<1x128xf32, #tpu.memory_space<vmem>>) target_semaphore(%154 : memref<!tpu.dma_semaphore, #tpu.memory_space<semaphore_mem>>)
    %155 = arith.index_cast %arg0 : i32 to index
    %c19 = arith.constant 19 : index
    %156 = memref.load %arg3[%155, %c19] : memref<4x30xi32, #tpu.memory_space<smem>>
    %c26_i32 = arith.constant 26 : i32
    %c0_i32_82 = arith.constant 0 : i32
    %157 = tpu.memref_slice %arg5[%156, %c0_i32_82] : memref<512x128xf32, #tpu.memory_space<any>> -> memref<1x128xf32, #tpu.memory_space<any>>
    %c25_i32_83 = arith.constant 25 : i32
    %c0_i32_84 = arith.constant 0 : i32
    %158 = tpu.memref_slice %arg8[%c25_i32_83, %c0_i32_84] : memref<36x128xf32, #tpu.memory_space<vmem>> -> memref<1x128xf32, #tpu.memory_space<vmem>>
    %159 = tpu.memref_slice %arg9[%c26_i32] : memref<37x!tpu.dma_semaphore, #tpu.memory_space<semaphore_mem>> -> memref<1x!tpu.dma_semaphore, #tpu.memory_space<semaphore_mem>>
    %160 = tpu.memref_squeeze %159 : memref<1x!tpu.dma_semaphore, #tpu.memory_space<semaphore_mem>> -> memref<!tpu.dma_semaphore, #tpu.memory_space<semaphore_mem>>
    tpu.enqueue_dma source(%157 : memref<1x128xf32, #tpu.memory_space<any>>) target(%158 : memref<1x128xf32, #tpu.memory_space<vmem>>) target_semaphore(%160 : memref<!tpu.dma_semaphore, #tpu.memory_space<semaphore_mem>>)
    %161 = arith.index_cast %arg0 : i32 to index
    %c20 = arith.constant 20 : index
    %162 = memref.load %arg3[%161, %c20] : memref<4x30xi32, #tpu.memory_space<smem>>
    %c27_i32 = arith.constant 27 : i32
    %c0_i32_85 = arith.constant 0 : i32
    %163 = tpu.memref_slice %arg5[%162, %c0_i32_85] : memref<512x128xf32, #tpu.memory_space<any>> -> memref<1x128xf32, #tpu.memory_space<any>>
    %c26_i32_86 = arith.constant 26 : i32
    %c0_i32_87 = arith.constant 0 : i32
    %164 = tpu.memref_slice %arg8[%c26_i32_86, %c0_i32_87] : memref<36x128xf32, #tpu.memory_space<vmem>> -> memref<1x128xf32, #tpu.memory_space<vmem>>
    %165 = tpu.memref_slice %arg9[%c27_i32] : memref<37x!tpu.dma_semaphore, #tpu.memory_space<semaphore_mem>> -> memref<1x!tpu.dma_semaphore, #tpu.memory_space<semaphore_mem>>
    %166 = tpu.memref_squeeze %165 : memref<1x!tpu.dma_semaphore, #tpu.memory_space<semaphore_mem>> -> memref<!tpu.dma_semaphore, #tpu.memory_space<semaphore_mem>>
    tpu.enqueue_dma source(%163 : memref<1x128xf32, #tpu.memory_space<any>>) target(%164 : memref<1x128xf32, #tpu.memory_space<vmem>>) target_semaphore(%166 : memref<!tpu.dma_semaphore, #tpu.memory_space<semaphore_mem>>)
    %167 = arith.index_cast %arg0 : i32 to index
    %c21 = arith.constant 21 : index
    %168 = memref.load %arg3[%167, %c21] : memref<4x30xi32, #tpu.memory_space<smem>>
    %c28_i32 = arith.constant 28 : i32
    %c0_i32_88 = arith.constant 0 : i32
    %169 = tpu.memref_slice %arg5[%168, %c0_i32_88] : memref<512x128xf32, #tpu.memory_space<any>> -> memref<1x128xf32, #tpu.memory_space<any>>
    %c27_i32_89 = arith.constant 27 : i32
    %c0_i32_90 = arith.constant 0 : i32
    %170 = tpu.memref_slice %arg8[%c27_i32_89, %c0_i32_90] : memref<36x128xf32, #tpu.memory_space<vmem>> -> memref<1x128xf32, #tpu.memory_space<vmem>>
    %171 = tpu.memref_slice %arg9[%c28_i32] : memref<37x!tpu.dma_semaphore, #tpu.memory_space<semaphore_mem>> -> memref<1x!tpu.dma_semaphore, #tpu.memory_space<semaphore_mem>>
    %172 = tpu.memref_squeeze %171 : memref<1x!tpu.dma_semaphore, #tpu.memory_space<semaphore_mem>> -> memref<!tpu.dma_semaphore, #tpu.memory_space<semaphore_mem>>
    tpu.enqueue_dma source(%169 : memref<1x128xf32, #tpu.memory_space<any>>) target(%170 : memref<1x128xf32, #tpu.memory_space<vmem>>) target_semaphore(%172 : memref<!tpu.dma_semaphore, #tpu.memory_space<semaphore_mem>>)
    %173 = arith.index_cast %arg0 : i32 to index
    %c22 = arith.constant 22 : index
    %174 = memref.load %arg3[%173, %c22] : memref<4x30xi32, #tpu.memory_space<smem>>
    %c29_i32 = arith.constant 29 : i32
    %c0_i32_91 = arith.constant 0 : i32
    %175 = tpu.memref_slice %arg5[%174, %c0_i32_91] : memref<512x128xf32, #tpu.memory_space<any>> -> memref<1x128xf32, #tpu.memory_space<any>>
    %c28_i32_92 = arith.constant 28 : i32
    %c0_i32_93 = arith.constant 0 : i32
    %176 = tpu.memref_slice %arg8[%c28_i32_92, %c0_i32_93] : memref<36x128xf32, #tpu.memory_space<vmem>> -> memref<1x128xf32, #tpu.memory_space<vmem>>
    %177 = tpu.memref_slice %arg9[%c29_i32] : memref<37x!tpu.dma_semaphore, #tpu.memory_space<semaphore_mem>> -> memref<1x!tpu.dma_semaphore, #tpu.memory_space<semaphore_mem>>
    %178 = tpu.memref_squeeze %177 : memref<1x!tpu.dma_semaphore, #tpu.memory_space<semaphore_mem>> -> memref<!tpu.dma_semaphore, #tpu.memory_space<semaphore_mem>>
    tpu.enqueue_dma source(%175 : memref<1x128xf32, #tpu.memory_space<any>>) target(%176 : memref<1x128xf32, #tpu.memory_space<vmem>>) target_semaphore(%178 : memref<!tpu.dma_semaphore, #tpu.memory_space<semaphore_mem>>)
    %179 = arith.index_cast %arg0 : i32 to index
    %c23 = arith.constant 23 : index
    %180 = memref.load %arg3[%179, %c23] : memref<4x30xi32, #tpu.memory_space<smem>>
    %c30_i32 = arith.constant 30 : i32
    %c0_i32_94 = arith.constant 0 : i32
    %181 = tpu.memref_slice %arg5[%180, %c0_i32_94] : memref<512x128xf32, #tpu.memory_space<any>> -> memref<1x128xf32, #tpu.memory_space<any>>
    %c29_i32_95 = arith.constant 29 : i32
    %c0_i32_96 = arith.constant 0 : i32
    %182 = tpu.memref_slice %arg8[%c29_i32_95, %c0_i32_96] : memref<36x128xf32, #tpu.memory_space<vmem>> -> memref<1x128xf32, #tpu.memory_space<vmem>>
    %183 = tpu.memref_slice %arg9[%c30_i32] : memref<37x!tpu.dma_semaphore, #tpu.memory_space<semaphore_mem>> -> memref<1x!tpu.dma_semaphore, #tpu.memory_space<semaphore_mem>>
    %184 = tpu.memref_squeeze %183 : memref<1x!tpu.dma_semaphore, #tpu.memory_space<semaphore_mem>> -> memref<!tpu.dma_semaphore, #tpu.memory_space<semaphore_mem>>
    tpu.enqueue_dma source(%181 : memref<1x128xf32, #tpu.memory_space<any>>) target(%182 : memref<1x128xf32, #tpu.memory_space<vmem>>) target_semaphore(%184 : memref<!tpu.dma_semaphore, #tpu.memory_space<semaphore_mem>>)
    %185 = arith.index_cast %arg0 : i32 to index
    %c24 = arith.constant 24 : index
    %186 = memref.load %arg3[%185, %c24] : memref<4x30xi32, #tpu.memory_space<smem>>
    %c31_i32 = arith.constant 31 : i32
    %c0_i32_97 = arith.constant 0 : i32
    %187 = tpu.memref_slice %arg5[%186, %c0_i32_97] : memref<512x128xf32, #tpu.memory_space<any>> -> memref<1x128xf32, #tpu.memory_space<any>>
    %c30_i32_98 = arith.constant 30 : i32
    %c0_i32_99 = arith.constant 0 : i32
    %188 = tpu.memref_slice %arg8[%c30_i32_98, %c0_i32_99] : memref<36x128xf32, #tpu.memory_space<vmem>> -> memref<1x128xf32, #tpu.memory_space<vmem>>
    %189 = tpu.memref_slice %arg9[%c31_i32] : memref<37x!tpu.dma_semaphore, #tpu.memory_space<semaphore_mem>> -> memref<1x!tpu.dma_semaphore, #tpu.memory_space<semaphore_mem>>
    %190 = tpu.memref_squeeze %189 : memref<1x!tpu.dma_semaphore, #tpu.memory_space<semaphore_mem>> -> memref<!tpu.dma_semaphore, #tpu.memory_space<semaphore_mem>>
    tpu.enqueue_dma source(%187 : memref<1x128xf32, #tpu.memory_space<any>>) target(%188 : memref<1x128xf32, #tpu.memory_space<vmem>>) target_semaphore(%190 : memref<!tpu.dma_semaphore, #tpu.memory_space<semaphore_mem>>)
    %191 = arith.index_cast %arg0 : i32 to index
    %c25 = arith.constant 25 : index
    %192 = memref.load %arg3[%191, %c25] : memref<4x30xi32, #tpu.memory_space<smem>>
    %c32_i32 = arith.constant 32 : i32
    %c0_i32_100 = arith.constant 0 : i32
    %193 = tpu.memref_slice %arg5[%192, %c0_i32_100] : memref<512x128xf32, #tpu.memory_space<any>> -> memref<1x128xf32, #tpu.memory_space<any>>
    %c31_i32_101 = arith.constant 31 : i32
    %c0_i32_102 = arith.constant 0 : i32
    %194 = tpu.memref_slice %arg8[%c31_i32_101, %c0_i32_102] : memref<36x128xf32, #tpu.memory_space<vmem>> -> memref<1x128xf32, #tpu.memory_space<vmem>>
    %195 = tpu.memref_slice %arg9[%c32_i32] : memref<37x!tpu.dma_semaphore, #tpu.memory_space<semaphore_mem>> -> memref<1x!tpu.dma_semaphore, #tpu.memory_space<semaphore_mem>>
    %196 = tpu.memref_squeeze %195 : memref<1x!tpu.dma_semaphore, #tpu.memory_space<semaphore_mem>> -> memref<!tpu.dma_semaphore, #tpu.memory_space<semaphore_mem>>
    tpu.enqueue_dma source(%193 : memref<1x128xf32, #tpu.memory_space<any>>) target(%194 : memref<1x128xf32, #tpu.memory_space<vmem>>) target_semaphore(%196 : memref<!tpu.dma_semaphore, #tpu.memory_space<semaphore_mem>>)
    %197 = arith.index_cast %arg0 : i32 to index
    %c26 = arith.constant 26 : index
    %198 = memref.load %arg3[%197, %c26] : memref<4x30xi32, #tpu.memory_space<smem>>
    %c33_i32 = arith.constant 33 : i32
    %c0_i32_103 = arith.constant 0 : i32
    %199 = tpu.memref_slice %arg5[%198, %c0_i32_103] : memref<512x128xf32, #tpu.memory_space<any>> -> memref<1x128xf32, #tpu.memory_space<any>>
    %c32_i32_104 = arith.constant 32 : i32
    %c0_i32_105 = arith.constant 0 : i32
    %200 = tpu.memref_slice %arg8[%c32_i32_104, %c0_i32_105] : memref<36x128xf32, #tpu.memory_space<vmem>> -> memref<1x128xf32, #tpu.memory_space<vmem>>
    %201 = tpu.memref_slice %arg9[%c33_i32] : memref<37x!tpu.dma_semaphore, #tpu.memory_space<semaphore_mem>> -> memref<1x!tpu.dma_semaphore, #tpu.memory_space<semaphore_mem>>
    %202 = tpu.memref_squeeze %201 : memref<1x!tpu.dma_semaphore, #tpu.memory_space<semaphore_mem>> -> memref<!tpu.dma_semaphore, #tpu.memory_space<semaphore_mem>>
    tpu.enqueue_dma source(%199 : memref<1x128xf32, #tpu.memory_space<any>>) target(%200 : memref<1x128xf32, #tpu.memory_space<vmem>>) target_semaphore(%202 : memref<!tpu.dma_semaphore, #tpu.memory_space<semaphore_mem>>)
    %203 = arith.index_cast %arg0 : i32 to index
    %c27 = arith.constant 27 : index
    %204 = memref.load %arg3[%203, %c27] : memref<4x30xi32, #tpu.memory_space<smem>>
    %c34_i32 = arith.constant 34 : i32
    %c0_i32_106 = arith.constant 0 : i32
    %205 = tpu.memref_slice %arg5[%204, %c0_i32_106] : memref<512x128xf32, #tpu.memory_space<any>> -> memref<1x128xf32, #tpu.memory_space<any>>
    %c33_i32_107 = arith.constant 33 : i32
    %c0_i32_108 = arith.constant 0 : i32
    %206 = tpu.memref_slice %arg8[%c33_i32_107, %c0_i32_108] : memref<36x128xf32, #tpu.memory_space<vmem>> -> memref<1x128xf32, #tpu.memory_space<vmem>>
    %207 = tpu.memref_slice %arg9[%c34_i32] : memref<37x!tpu.dma_semaphore, #tpu.memory_space<semaphore_mem>> -> memref<1x!tpu.dma_semaphore, #tpu.memory_space<semaphore_mem>>
    %208 = tpu.memref_squeeze %207 : memref<1x!tpu.dma_semaphore, #tpu.memory_space<semaphore_mem>> -> memref<!tpu.dma_semaphore, #tpu.memory_space<semaphore_mem>>
    tpu.enqueue_dma source(%205 : memref<1x128xf32, #tpu.memory_space<any>>) target(%206 : memref<1x128xf32, #tpu.memory_space<vmem>>) target_semaphore(%208 : memref<!tpu.dma_semaphore, #tpu.memory_space<semaphore_mem>>)
    %209 = arith.index_cast %arg0 : i32 to index
    %c28 = arith.constant 28 : index
    %210 = memref.load %arg3[%209, %c28] : memref<4x30xi32, #tpu.memory_space<smem>>
    %c35_i32 = arith.constant 35 : i32
    %c0_i32_109 = arith.constant 0 : i32
    %211 = tpu.memref_slice %arg5[%210, %c0_i32_109] : memref<512x128xf32, #tpu.memory_space<any>> -> memref<1x128xf32, #tpu.memory_space<any>>
    %c34_i32_110 = arith.constant 34 : i32
    %c0_i32_111 = arith.constant 0 : i32
    %212 = tpu.memref_slice %arg8[%c34_i32_110, %c0_i32_111] : memref<36x128xf32, #tpu.memory_space<vmem>> -> memref<1x128xf32, #tpu.memory_space<vmem>>
    %213 = tpu.memref_slice %arg9[%c35_i32] : memref<37x!tpu.dma_semaphore, #tpu.memory_space<semaphore_mem>> -> memref<1x!tpu.dma_semaphore, #tpu.memory_space<semaphore_mem>>
    %214 = tpu.memref_squeeze %213 : memref<1x!tpu.dma_semaphore, #tpu.memory_space<semaphore_mem>> -> memref<!tpu.dma_semaphore, #tpu.memory_space<semaphore_mem>>
    tpu.enqueue_dma source(%211 : memref<1x128xf32, #tpu.memory_space<any>>) target(%212 : memref<1x128xf32, #tpu.memory_space<vmem>>) target_semaphore(%214 : memref<!tpu.dma_semaphore, #tpu.memory_space<semaphore_mem>>)
    %215 = arith.index_cast %arg0 : i32 to index
    %c29 = arith.constant 29 : index
    %216 = memref.load %arg3[%215, %c29] : memref<4x30xi32, #tpu.memory_space<smem>>
    %c36_i32 = arith.constant 36 : i32
    %c0_i32_112 = arith.constant 0 : i32
    %217 = tpu.memref_slice %arg5[%216, %c0_i32_112] : memref<512x128xf32, #tpu.memory_space<any>> -> memref<1x128xf32, #tpu.memory_space<any>>
    %c35_i32_113 = arith.constant 35 : i32
    %c0_i32_114 = arith.constant 0 : i32
    %218 = tpu.memref_slice %arg8[%c35_i32_113, %c0_i32_114] : memref<36x128xf32, #tpu.memory_space<vmem>> -> memref<1x128xf32, #tpu.memory_space<vmem>>
    %219 = tpu.memref_slice %arg9[%c36_i32] : memref<37x!tpu.dma_semaphore, #tpu.memory_space<semaphore_mem>> -> memref<1x!tpu.dma_semaphore, #tpu.memory_space<semaphore_mem>>
    %220 = tpu.memref_squeeze %219 : memref<1x!tpu.dma_semaphore, #tpu.memory_space<semaphore_mem>> -> memref<!tpu.dma_semaphore, #tpu.memory_space<semaphore_mem>>
    tpu.enqueue_dma source(%217 : memref<1x128xf32, #tpu.memory_space<any>>) target(%218 : memref<1x128xf32, #tpu.memory_space<vmem>>) target_semaphore(%220 : memref<!tpu.dma_semaphore, #tpu.memory_space<semaphore_mem>>)
    %c0_i32_115 = arith.constant 0 : i32
    %c0_i32_116 = arith.constant 0 : i32
    %221 = tpu.memref_slice %arg4[%1, %c0_i32_116] : memref<512x128xf32, #tpu.memory_space<any>> -> memref<1x128xf32, #tpu.memory_space<any>>
    %222 = tpu.memref_slice %arg9[%c0_i32_115] : memref<37x!tpu.dma_semaphore, #tpu.memory_space<semaphore_mem>> -> memref<1x!tpu.dma_semaphore, #tpu.memory_space<semaphore_mem>>
    %223 = tpu.memref_squeeze %222 : memref<1x!tpu.dma_semaphore, #tpu.memory_space<semaphore_mem>> -> memref<!tpu.dma_semaphore, #tpu.memory_space<semaphore_mem>>
    tpu.wait_dma2 semaphore(%223 : memref<!tpu.dma_semaphore, #tpu.memory_space<semaphore_mem>>) src(%221 : memref<1x128xf32, #tpu.memory_space<any>>) dst(%arg7 : memref<1x128xf32, #tpu.memory_space<vmem>>)
    %c1_i32_117 = arith.constant 1 : i32
    %c0_i32_118 = arith.constant 0 : i32
    %224 = tpu.memref_slice %arg5[%6, %c0_i32_118] : memref<512x128xf32, #tpu.memory_space<any>> -> memref<1x128xf32, #tpu.memory_space<any>>
    %c0_i32_119 = arith.constant 0 : i32
    %c0_i32_120 = arith.constant 0 : i32
    %225 = tpu.memref_slice %arg8[%c0_i32_119, %c0_i32_120] : memref<36x128xf32, #tpu.memory_space<vmem>> -> memref<1x128xf32, #tpu.memory_space<vmem>>
    %226 = tpu.memref_slice %arg9[%c1_i32_117] : memref<37x!tpu.dma_semaphore, #tpu.memory_space<semaphore_mem>> -> memref<1x!tpu.dma_semaphore, #tpu.memory_space<semaphore_mem>>
    %227 = tpu.memref_squeeze %226 : memref<1x!tpu.dma_semaphore, #tpu.memory_space<semaphore_mem>> -> memref<!tpu.dma_semaphore, #tpu.memory_space<semaphore_mem>>
    tpu.wait_dma2 semaphore(%227 : memref<!tpu.dma_semaphore, #tpu.memory_space<semaphore_mem>>) src(%224 : memref<1x128xf32, #tpu.memory_space<any>>) dst(%225 : memref<1x128xf32, #tpu.memory_space<vmem>>)
    %c2_i32_121 = arith.constant 2 : i32
    %c0_i32_122 = arith.constant 0 : i32
    %228 = tpu.memref_slice %arg5[%12, %c0_i32_122] : memref<512x128xf32, #tpu.memory_space<any>> -> memref<1x128xf32, #tpu.memory_space<any>>
    %c1_i32_123 = arith.constant 1 : i32
    %c0_i32_124 = arith.constant 0 : i32
    %229 = tpu.memref_slice %arg8[%c1_i32_123, %c0_i32_124] : memref<36x128xf32, #tpu.memory_space<vmem>> -> memref<1x128xf32, #tpu.memory_space<vmem>>
    %230 = tpu.memref_slice %arg9[%c2_i32_121] : memref<37x!tpu.dma_semaphore, #tpu.memory_space<semaphore_mem>> -> memref<1x!tpu.dma_semaphore, #tpu.memory_space<semaphore_mem>>
    %231 = tpu.memref_squeeze %230 : memref<1x!tpu.dma_semaphore, #tpu.memory_space<semaphore_mem>> -> memref<!tpu.dma_semaphore, #tpu.memory_space<semaphore_mem>>
    tpu.wait_dma2 semaphore(%231 : memref<!tpu.dma_semaphore, #tpu.memory_space<semaphore_mem>>) src(%228 : memref<1x128xf32, #tpu.memory_space<any>>) dst(%229 : memref<1x128xf32, #tpu.memory_space<vmem>>)
    %c3_i32_125 = arith.constant 3 : i32
    %c0_i32_126 = arith.constant 0 : i32
    %232 = tpu.memref_slice %arg5[%18, %c0_i32_126] : memref<512x128xf32, #tpu.memory_space<any>> -> memref<1x128xf32, #tpu.memory_space<any>>
    %c2_i32_127 = arith.constant 2 : i32
    %c0_i32_128 = arith.constant 0 : i32
    %233 = tpu.memref_slice %arg8[%c2_i32_127, %c0_i32_128] : memref<36x128xf32, #tpu.memory_space<vmem>> -> memref<1x128xf32, #tpu.memory_space<vmem>>
    %234 = tpu.memref_slice %arg9[%c3_i32_125] : memref<37x!tpu.dma_semaphore, #tpu.memory_space<semaphore_mem>> -> memref<1x!tpu.dma_semaphore, #tpu.memory_space<semaphore_mem>>
    %235 = tpu.memref_squeeze %234 : memref<1x!tpu.dma_semaphore, #tpu.memory_space<semaphore_mem>> -> memref<!tpu.dma_semaphore, #tpu.memory_space<semaphore_mem>>
    tpu.wait_dma2 semaphore(%235 : memref<!tpu.dma_semaphore, #tpu.memory_space<semaphore_mem>>) src(%232 : memref<1x128xf32, #tpu.memory_space<any>>) dst(%233 : memref<1x128xf32, #tpu.memory_space<vmem>>)
    %c4_i32_129 = arith.constant 4 : i32
    %c0_i32_130 = arith.constant 0 : i32
    %236 = tpu.memref_slice %arg5[%24, %c0_i32_130] : memref<512x128xf32, #tpu.memory_space<any>> -> memref<1x128xf32, #tpu.memory_space<any>>
    %c3_i32_131 = arith.constant 3 : i32
    %c0_i32_132 = arith.constant 0 : i32
    %237 = tpu.memref_slice %arg8[%c3_i32_131, %c0_i32_132] : memref<36x128xf32, #tpu.memory_space<vmem>> -> memref<1x128xf32, #tpu.memory_space<vmem>>
    %238 = tpu.memref_slice %arg9[%c4_i32_129] : memref<37x!tpu.dma_semaphore, #tpu.memory_space<semaphore_mem>> -> memref<1x!tpu.dma_semaphore, #tpu.memory_space<semaphore_mem>>
    %239 = tpu.memref_squeeze %238 : memref<1x!tpu.dma_semaphore, #tpu.memory_space<semaphore_mem>> -> memref<!tpu.dma_semaphore, #tpu.memory_space<semaphore_mem>>
    tpu.wait_dma2 semaphore(%239 : memref<!tpu.dma_semaphore, #tpu.memory_space<semaphore_mem>>) src(%236 : memref<1x128xf32, #tpu.memory_space<any>>) dst(%237 : memref<1x128xf32, #tpu.memory_space<vmem>>)
    %c5_i32_133 = arith.constant 5 : i32
    %c0_i32_134 = arith.constant 0 : i32
    %240 = tpu.memref_slice %arg5[%30, %c0_i32_134] : memref<512x128xf32, #tpu.memory_space<any>> -> memref<1x128xf32, #tpu.memory_space<any>>
    %c4_i32_135 = arith.constant 4 : i32
    %c0_i32_136 = arith.constant 0 : i32
    %241 = tpu.memref_slice %arg8[%c4_i32_135, %c0_i32_136] : memref<36x128xf32, #tpu.memory_space<vmem>> -> memref<1x128xf32, #tpu.memory_space<vmem>>
    %242 = tpu.memref_slice %arg9[%c5_i32_133] : memref<37x!tpu.dma_semaphore, #tpu.memory_space<semaphore_mem>> -> memref<1x!tpu.dma_semaphore, #tpu.memory_space<semaphore_mem>>
    %243 = tpu.memref_squeeze %242 : memref<1x!tpu.dma_semaphore, #tpu.memory_space<semaphore_mem>> -> memref<!tpu.dma_semaphore, #tpu.memory_space<semaphore_mem>>
    tpu.wait_dma2 semaphore(%243 : memref<!tpu.dma_semaphore, #tpu.memory_space<semaphore_mem>>) src(%240 : memref<1x128xf32, #tpu.memory_space<any>>) dst(%241 : memref<1x128xf32, #tpu.memory_space<vmem>>)
    %c6_i32_137 = arith.constant 6 : i32
    %c0_i32_138 = arith.constant 0 : i32
    %244 = tpu.memref_slice %arg5[%36, %c0_i32_138] : memref<512x128xf32, #tpu.memory_space<any>> -> memref<1x128xf32, #tpu.memory_space<any>>
    %c5_i32_139 = arith.constant 5 : i32
    %c0_i32_140 = arith.constant 0 : i32
    %245 = tpu.memref_slice %arg8[%c5_i32_139, %c0_i32_140] : memref<36x128xf32, #tpu.memory_space<vmem>> -> memref<1x128xf32, #tpu.memory_space<vmem>>
    %246 = tpu.memref_slice %arg9[%c6_i32_137] : memref<37x!tpu.dma_semaphore, #tpu.memory_space<semaphore_mem>> -> memref<1x!tpu.dma_semaphore, #tpu.memory_space<semaphore_mem>>
    %247 = tpu.memref_squeeze %246 : memref<1x!tpu.dma_semaphore, #tpu.memory_space<semaphore_mem>> -> memref<!tpu.dma_semaphore, #tpu.memory_space<semaphore_mem>>
    tpu.wait_dma2 semaphore(%247 : memref<!tpu.dma_semaphore, #tpu.memory_space<semaphore_mem>>) src(%244 : memref<1x128xf32, #tpu.memory_space<any>>) dst(%245 : memref<1x128xf32, #tpu.memory_space<vmem>>)
    %c7_i32_141 = arith.constant 7 : i32
    %c0_i32_142 = arith.constant 0 : i32
    %248 = tpu.memref_slice %arg5[%42, %c0_i32_142] : memref<512x128xf32, #tpu.memory_space<any>> -> memref<1x128xf32, #tpu.memory_space<any>>
    %c6_i32_143 = arith.constant 6 : i32
    %c0_i32_144 = arith.constant 0 : i32
    %249 = tpu.memref_slice %arg8[%c6_i32_143, %c0_i32_144] : memref<36x128xf32, #tpu.memory_space<vmem>> -> memref<1x128xf32, #tpu.memory_space<vmem>>
    %250 = tpu.memref_slice %arg9[%c7_i32_141] : memref<37x!tpu.dma_semaphore, #tpu.memory_space<semaphore_mem>> -> memref<1x!tpu.dma_semaphore, #tpu.memory_space<semaphore_mem>>
    %251 = tpu.memref_squeeze %250 : memref<1x!tpu.dma_semaphore, #tpu.memory_space<semaphore_mem>> -> memref<!tpu.dma_semaphore, #tpu.memory_space<semaphore_mem>>
    tpu.wait_dma2 semaphore(%251 : memref<!tpu.dma_semaphore, #tpu.memory_space<semaphore_mem>>) src(%248 : memref<1x128xf32, #tpu.memory_space<any>>) dst(%249 : memref<1x128xf32, #tpu.memory_space<vmem>>)
    %c8_i32_145 = arith.constant 8 : i32
    %c0_i32_146 = arith.constant 0 : i32
    %252 = tpu.memref_slice %arg5[%48, %c0_i32_146] : memref<512x128xf32, #tpu.memory_space<any>> -> memref<1x128xf32, #tpu.memory_space<any>>
    %c7_i32_147 = arith.constant 7 : i32
    %c0_i32_148 = arith.constant 0 : i32
    %253 = tpu.memref_slice %arg8[%c7_i32_147, %c0_i32_148] : memref<36x128xf32, #tpu.memory_space<vmem>> -> memref<1x128xf32, #tpu.memory_space<vmem>>
    %254 = tpu.memref_slice %arg9[%c8_i32_145] : memref<37x!tpu.dma_semaphore, #tpu.memory_space<semaphore_mem>> -> memref<1x!tpu.dma_semaphore, #tpu.memory_space<semaphore_mem>>
    %255 = tpu.memref_squeeze %254 : memref<1x!tpu.dma_semaphore, #tpu.memory_space<semaphore_mem>> -> memref<!tpu.dma_semaphore, #tpu.memory_space<semaphore_mem>>
    tpu.wait_dma2 semaphore(%255 : memref<!tpu.dma_semaphore, #tpu.memory_space<semaphore_mem>>) src(%252 : memref<1x128xf32, #tpu.memory_space<any>>) dst(%253 : memref<1x128xf32, #tpu.memory_space<vmem>>)
    %c9_i32_149 = arith.constant 9 : i32
    %c0_i32_150 = arith.constant 0 : i32
    %256 = tpu.memref_slice %arg5[%54, %c0_i32_150] : memref<512x128xf32, #tpu.memory_space<any>> -> memref<1x128xf32, #tpu.memory_space<any>>
    %c8_i32_151 = arith.constant 8 : i32
    %c0_i32_152 = arith.constant 0 : i32
    %257 = tpu.memref_slice %arg8[%c8_i32_151, %c0_i32_152] : memref<36x128xf32, #tpu.memory_space<vmem>> -> memref<1x128xf32, #tpu.memory_space<vmem>>
    %258 = tpu.memref_slice %arg9[%c9_i32_149] : memref<37x!tpu.dma_semaphore, #tpu.memory_space<semaphore_mem>> -> memref<1x!tpu.dma_semaphore, #tpu.memory_space<semaphore_mem>>
    %259 = tpu.memref_squeeze %258 : memref<1x!tpu.dma_semaphore, #tpu.memory_space<semaphore_mem>> -> memref<!tpu.dma_semaphore, #tpu.memory_space<semaphore_mem>>
    tpu.wait_dma2 semaphore(%259 : memref<!tpu.dma_semaphore, #tpu.memory_space<semaphore_mem>>) src(%256 : memref<1x128xf32, #tpu.memory_space<any>>) dst(%257 : memref<1x128xf32, #tpu.memory_space<vmem>>)
    %c10_i32_153 = arith.constant 10 : i32
    %c0_i32_154 = arith.constant 0 : i32
    %260 = tpu.memref_slice %arg5[%60, %c0_i32_154] : memref<512x128xf32, #tpu.memory_space<any>> -> memref<1x128xf32, #tpu.memory_space<any>>
    %c9_i32_155 = arith.constant 9 : i32
    %c0_i32_156 = arith.constant 0 : i32
    %261 = tpu.memref_slice %arg8[%c9_i32_155, %c0_i32_156] : memref<36x128xf32, #tpu.memory_space<vmem>> -> memref<1x128xf32, #tpu.memory_space<vmem>>
    %262 = tpu.memref_slice %arg9[%c10_i32_153] : memref<37x!tpu.dma_semaphore, #tpu.memory_space<semaphore_mem>> -> memref<1x!tpu.dma_semaphore, #tpu.memory_space<semaphore_mem>>
    %263 = tpu.memref_squeeze %262 : memref<1x!tpu.dma_semaphore, #tpu.memory_space<semaphore_mem>> -> memref<!tpu.dma_semaphore, #tpu.memory_space<semaphore_mem>>
    tpu.wait_dma2 semaphore(%263 : memref<!tpu.dma_semaphore, #tpu.memory_space<semaphore_mem>>) src(%260 : memref<1x128xf32, #tpu.memory_space<any>>) dst(%261 : memref<1x128xf32, #tpu.memory_space<vmem>>)
    %c11_i32_157 = arith.constant 11 : i32
    %c0_i32_158 = arith.constant 0 : i32
    %264 = tpu.memref_slice %arg5[%66, %c0_i32_158] : memref<512x128xf32, #tpu.memory_space<any>> -> memref<1x128xf32, #tpu.memory_space<any>>
    %c10_i32_159 = arith.constant 10 : i32
    %c0_i32_160 = arith.constant 0 : i32
    %265 = tpu.memref_slice %arg8[%c10_i32_159, %c0_i32_160] : memref<36x128xf32, #tpu.memory_space<vmem>> -> memref<1x128xf32, #tpu.memory_space<vmem>>
    %266 = tpu.memref_slice %arg9[%c11_i32_157] : memref<37x!tpu.dma_semaphore, #tpu.memory_space<semaphore_mem>> -> memref<1x!tpu.dma_semaphore, #tpu.memory_space<semaphore_mem>>
    %267 = tpu.memref_squeeze %266 : memref<1x!tpu.dma_semaphore, #tpu.memory_space<semaphore_mem>> -> memref<!tpu.dma_semaphore, #tpu.memory_space<semaphore_mem>>
    tpu.wait_dma2 semaphore(%267 : memref<!tpu.dma_semaphore, #tpu.memory_space<semaphore_mem>>) src(%264 : memref<1x128xf32, #tpu.memory_space<any>>) dst(%265 : memref<1x128xf32, #tpu.memory_space<vmem>>)
    %c12_i32_161 = arith.constant 12 : i32
    %c0_i32_162 = arith.constant 0 : i32
    %268 = tpu.memref_slice %arg5[%72, %c0_i32_162] : memref<512x128xf32, #tpu.memory_space<any>> -> memref<1x128xf32, #tpu.memory_space<any>>
    %c11_i32_163 = arith.constant 11 : i32
    %c0_i32_164 = arith.constant 0 : i32
    %269 = tpu.memref_slice %arg8[%c11_i32_163, %c0_i32_164] : memref<36x128xf32, #tpu.memory_space<vmem>> -> memref<1x128xf32, #tpu.memory_space<vmem>>
    %270 = tpu.memref_slice %arg9[%c12_i32_161] : memref<37x!tpu.dma_semaphore, #tpu.memory_space<semaphore_mem>> -> memref<1x!tpu.dma_semaphore, #tpu.memory_space<semaphore_mem>>
    %271 = tpu.memref_squeeze %270 : memref<1x!tpu.dma_semaphore, #tpu.memory_space<semaphore_mem>> -> memref<!tpu.dma_semaphore, #tpu.memory_space<semaphore_mem>>
    tpu.wait_dma2 semaphore(%271 : memref<!tpu.dma_semaphore, #tpu.memory_space<semaphore_mem>>) src(%268 : memref<1x128xf32, #tpu.memory_space<any>>) dst(%269 : memref<1x128xf32, #tpu.memory_space<vmem>>)
    %c13_i32_165 = arith.constant 13 : i32
    %c0_i32_166 = arith.constant 0 : i32
    %272 = tpu.memref_slice %arg5[%78, %c0_i32_166] : memref<512x128xf32, #tpu.memory_space<any>> -> memref<1x128xf32, #tpu.memory_space<any>>
    %c12_i32_167 = arith.constant 12 : i32
    %c0_i32_168 = arith.constant 0 : i32
    %273 = tpu.memref_slice %arg8[%c12_i32_167, %c0_i32_168] : memref<36x128xf32, #tpu.memory_space<vmem>> -> memref<1x128xf32, #tpu.memory_space<vmem>>
    %274 = tpu.memref_slice %arg9[%c13_i32_165] : memref<37x!tpu.dma_semaphore, #tpu.memory_space<semaphore_mem>> -> memref<1x!tpu.dma_semaphore, #tpu.memory_space<semaphore_mem>>
    %275 = tpu.memref_squeeze %274 : memref<1x!tpu.dma_semaphore, #tpu.memory_space<semaphore_mem>> -> memref<!tpu.dma_semaphore, #tpu.memory_space<semaphore_mem>>
    tpu.wait_dma2 semaphore(%275 : memref<!tpu.dma_semaphore, #tpu.memory_space<semaphore_mem>>) src(%272 : memref<1x128xf32, #tpu.memory_space<any>>) dst(%273 : memref<1x128xf32, #tpu.memory_space<vmem>>)
    %c14_i32_169 = arith.constant 14 : i32
    %c0_i32_170 = arith.constant 0 : i32
    %276 = tpu.memref_slice %arg5[%84, %c0_i32_170] : memref<512x128xf32, #tpu.memory_space<any>> -> memref<1x128xf32, #tpu.memory_space<any>>
    %c13_i32_171 = arith.constant 13 : i32
    %c0_i32_172 = arith.constant 0 : i32
    %277 = tpu.memref_slice %arg8[%c13_i32_171, %c0_i32_172] : memref<36x128xf32, #tpu.memory_space<vmem>> -> memref<1x128xf32, #tpu.memory_space<vmem>>
    %278 = tpu.memref_slice %arg9[%c14_i32_169] : memref<37x!tpu.dma_semaphore, #tpu.memory_space<semaphore_mem>> -> memref<1x!tpu.dma_semaphore, #tpu.memory_space<semaphore_mem>>
    %279 = tpu.memref_squeeze %278 : memref<1x!tpu.dma_semaphore, #tpu.memory_space<semaphore_mem>> -> memref<!tpu.dma_semaphore, #tpu.memory_space<semaphore_mem>>
    tpu.wait_dma2 semaphore(%279 : memref<!tpu.dma_semaphore, #tpu.memory_space<semaphore_mem>>) src(%276 : memref<1x128xf32, #tpu.memory_space<any>>) dst(%277 : memref<1x128xf32, #tpu.memory_space<vmem>>)
    %c15_i32_173 = arith.constant 15 : i32
    %c0_i32_174 = arith.constant 0 : i32
    %280 = tpu.memref_slice %arg5[%90, %c0_i32_174] : memref<512x128xf32, #tpu.memory_space<any>> -> memref<1x128xf32, #tpu.memory_space<any>>
    %c14_i32_175 = arith.constant 14 : i32
    %c0_i32_176 = arith.constant 0 : i32
    %281 = tpu.memref_slice %arg8[%c14_i32_175, %c0_i32_176] : memref<36x128xf32, #tpu.memory_space<vmem>> -> memref<1x128xf32, #tpu.memory_space<vmem>>
    %282 = tpu.memref_slice %arg9[%c15_i32_173] : memref<37x!tpu.dma_semaphore, #tpu.memory_space<semaphore_mem>> -> memref<1x!tpu.dma_semaphore, #tpu.memory_space<semaphore_mem>>
    %283 = tpu.memref_squeeze %282 : memref<1x!tpu.dma_semaphore, #tpu.memory_space<semaphore_mem>> -> memref<!tpu.dma_semaphore, #tpu.memory_space<semaphore_mem>>
    tpu.wait_dma2 semaphore(%283 : memref<!tpu.dma_semaphore, #tpu.memory_space<semaphore_mem>>) src(%280 : memref<1x128xf32, #tpu.memory_space<any>>) dst(%281 : memref<1x128xf32, #tpu.memory_space<vmem>>)
    %c16_i32_177 = arith.constant 16 : i32
    %c0_i32_178 = arith.constant 0 : i32
    %284 = tpu.memref_slice %arg5[%96, %c0_i32_178] : memref<512x128xf32, #tpu.memory_space<any>> -> memref<1x128xf32, #tpu.memory_space<any>>
    %c15_i32_179 = arith.constant 15 : i32
    %c0_i32_180 = arith.constant 0 : i32
    %285 = tpu.memref_slice %arg8[%c15_i32_179, %c0_i32_180] : memref<36x128xf32, #tpu.memory_space<vmem>> -> memref<1x128xf32, #tpu.memory_space<vmem>>
    %286 = tpu.memref_slice %arg9[%c16_i32_177] : memref<37x!tpu.dma_semaphore, #tpu.memory_space<semaphore_mem>> -> memref<1x!tpu.dma_semaphore, #tpu.memory_space<semaphore_mem>>
    %287 = tpu.memref_squeeze %286 : memref<1x!tpu.dma_semaphore, #tpu.memory_space<semaphore_mem>> -> memref<!tpu.dma_semaphore, #tpu.memory_space<semaphore_mem>>
    tpu.wait_dma2 semaphore(%287 : memref<!tpu.dma_semaphore, #tpu.memory_space<semaphore_mem>>) src(%284 : memref<1x128xf32, #tpu.memory_space<any>>) dst(%285 : memref<1x128xf32, #tpu.memory_space<vmem>>)
    %c17_i32_181 = arith.constant 17 : i32
    %c0_i32_182 = arith.constant 0 : i32
    %288 = tpu.memref_slice %arg5[%102, %c0_i32_182] : memref<512x128xf32, #tpu.memory_space<any>> -> memref<1x128xf32, #tpu.memory_space<any>>
    %c16_i32_183 = arith.constant 16 : i32
    %c0_i32_184 = arith.constant 0 : i32
    %289 = tpu.memref_slice %arg8[%c16_i32_183, %c0_i32_184] : memref<36x128xf32, #tpu.memory_space<vmem>> -> memref<1x128xf32, #tpu.memory_space<vmem>>
    %290 = tpu.memref_slice %arg9[%c17_i32_181] : memref<37x!tpu.dma_semaphore, #tpu.memory_space<semaphore_mem>> -> memref<1x!tpu.dma_semaphore, #tpu.memory_space<semaphore_mem>>
    %291 = tpu.memref_squeeze %290 : memref<1x!tpu.dma_semaphore, #tpu.memory_space<semaphore_mem>> -> memref<!tpu.dma_semaphore, #tpu.memory_space<semaphore_mem>>
    tpu.wait_dma2 semaphore(%291 : memref<!tpu.dma_semaphore, #tpu.memory_space<semaphore_mem>>) src(%288 : memref<1x128xf32, #tpu.memory_space<any>>) dst(%289 : memref<1x128xf32, #tpu.memory_space<vmem>>)
    %c18_i32_185 = arith.constant 18 : i32
    %c0_i32_186 = arith.constant 0 : i32
    %292 = tpu.memref_slice %arg5[%108, %c0_i32_186] : memref<512x128xf32, #tpu.memory_space<any>> -> memref<1x128xf32, #tpu.memory_space<any>>
    %c17_i32_187 = arith.constant 17 : i32
    %c0_i32_188 = arith.constant 0 : i32
    %293 = tpu.memref_slice %arg8[%c17_i32_187, %c0_i32_188] : memref<36x128xf32, #tpu.memory_space<vmem>> -> memref<1x128xf32, #tpu.memory_space<vmem>>
    %294 = tpu.memref_slice %arg9[%c18_i32_185] : memref<37x!tpu.dma_semaphore, #tpu.memory_space<semaphore_mem>> -> memref<1x!tpu.dma_semaphore, #tpu.memory_space<semaphore_mem>>
    %295 = tpu.memref_squeeze %294 : memref<1x!tpu.dma_semaphore, #tpu.memory_space<semaphore_mem>> -> memref<!tpu.dma_semaphore, #tpu.memory_space<semaphore_mem>>
    tpu.wait_dma2 semaphore(%295 : memref<!tpu.dma_semaphore, #tpu.memory_space<semaphore_mem>>) src(%292 : memref<1x128xf32, #tpu.memory_space<any>>) dst(%293 : memref<1x128xf32, #tpu.memory_space<vmem>>)
    %c19_i32_189 = arith.constant 19 : i32
    %c0_i32_190 = arith.constant 0 : i32
    %296 = tpu.memref_slice %arg5[%114, %c0_i32_190] : memref<512x128xf32, #tpu.memory_space<any>> -> memref<1x128xf32, #tpu.memory_space<any>>
    %c18_i32_191 = arith.constant 18 : i32
    %c0_i32_192 = arith.constant 0 : i32
    %297 = tpu.memref_slice %arg8[%c18_i32_191, %c0_i32_192] : memref<36x128xf32, #tpu.memory_space<vmem>> -> memref<1x128xf32, #tpu.memory_space<vmem>>
    %298 = tpu.memref_slice %arg9[%c19_i32_189] : memref<37x!tpu.dma_semaphore, #tpu.memory_space<semaphore_mem>> -> memref<1x!tpu.dma_semaphore, #tpu.memory_space<semaphore_mem>>
    %299 = tpu.memref_squeeze %298 : memref<1x!tpu.dma_semaphore, #tpu.memory_space<semaphore_mem>> -> memref<!tpu.dma_semaphore, #tpu.memory_space<semaphore_mem>>
    tpu.wait_dma2 semaphore(%299 : memref<!tpu.dma_semaphore, #tpu.memory_space<semaphore_mem>>) src(%296 : memref<1x128xf32, #tpu.memory_space<any>>) dst(%297 : memref<1x128xf32, #tpu.memory_space<vmem>>)
    %c20_i32_193 = arith.constant 20 : i32
    %c0_i32_194 = arith.constant 0 : i32
    %300 = tpu.memref_slice %arg5[%120, %c0_i32_194] : memref<512x128xf32, #tpu.memory_space<any>> -> memref<1x128xf32, #tpu.memory_space<any>>
    %c19_i32_195 = arith.constant 19 : i32
    %c0_i32_196 = arith.constant 0 : i32
    %301 = tpu.memref_slice %arg8[%c19_i32_195, %c0_i32_196] : memref<36x128xf32, #tpu.memory_space<vmem>> -> memref<1x128xf32, #tpu.memory_space<vmem>>
    %302 = tpu.memref_slice %arg9[%c20_i32_193] : memref<37x!tpu.dma_semaphore, #tpu.memory_space<semaphore_mem>> -> memref<1x!tpu.dma_semaphore, #tpu.memory_space<semaphore_mem>>
    %303 = tpu.memref_squeeze %302 : memref<1x!tpu.dma_semaphore, #tpu.memory_space<semaphore_mem>> -> memref<!tpu.dma_semaphore, #tpu.memory_space<semaphore_mem>>
    tpu.wait_dma2 semaphore(%303 : memref<!tpu.dma_semaphore, #tpu.memory_space<semaphore_mem>>) src(%300 : memref<1x128xf32, #tpu.memory_space<any>>) dst(%301 : memref<1x128xf32, #tpu.memory_space<vmem>>)
    %c21_i32_197 = arith.constant 21 : i32
    %c0_i32_198 = arith.constant 0 : i32
    %304 = tpu.memref_slice %arg5[%126, %c0_i32_198] : memref<512x128xf32, #tpu.memory_space<any>> -> memref<1x128xf32, #tpu.memory_space<any>>
    %c20_i32_199 = arith.constant 20 : i32
    %c0_i32_200 = arith.constant 0 : i32
    %305 = tpu.memref_slice %arg8[%c20_i32_199, %c0_i32_200] : memref<36x128xf32, #tpu.memory_space<vmem>> -> memref<1x128xf32, #tpu.memory_space<vmem>>
    %306 = tpu.memref_slice %arg9[%c21_i32_197] : memref<37x!tpu.dma_semaphore, #tpu.memory_space<semaphore_mem>> -> memref<1x!tpu.dma_semaphore, #tpu.memory_space<semaphore_mem>>
    %307 = tpu.memref_squeeze %306 : memref<1x!tpu.dma_semaphore, #tpu.memory_space<semaphore_mem>> -> memref<!tpu.dma_semaphore, #tpu.memory_space<semaphore_mem>>
    tpu.wait_dma2 semaphore(%307 : memref<!tpu.dma_semaphore, #tpu.memory_space<semaphore_mem>>) src(%304 : memref<1x128xf32, #tpu.memory_space<any>>) dst(%305 : memref<1x128xf32, #tpu.memory_space<vmem>>)
    %c22_i32_201 = arith.constant 22 : i32
    %c0_i32_202 = arith.constant 0 : i32
    %308 = tpu.memref_slice %arg5[%132, %c0_i32_202] : memref<512x128xf32, #tpu.memory_space<any>> -> memref<1x128xf32, #tpu.memory_space<any>>
    %c21_i32_203 = arith.constant 21 : i32
    %c0_i32_204 = arith.constant 0 : i32
    %309 = tpu.memref_slice %arg8[%c21_i32_203, %c0_i32_204] : memref<36x128xf32, #tpu.memory_space<vmem>> -> memref<1x128xf32, #tpu.memory_space<vmem>>
    %310 = tpu.memref_slice %arg9[%c22_i32_201] : memref<37x!tpu.dma_semaphore, #tpu.memory_space<semaphore_mem>> -> memref<1x!tpu.dma_semaphore, #tpu.memory_space<semaphore_mem>>
    %311 = tpu.memref_squeeze %310 : memref<1x!tpu.dma_semaphore, #tpu.memory_space<semaphore_mem>> -> memref<!tpu.dma_semaphore, #tpu.memory_space<semaphore_mem>>
    tpu.wait_dma2 semaphore(%311 : memref<!tpu.dma_semaphore, #tpu.memory_space<semaphore_mem>>) src(%308 : memref<1x128xf32, #tpu.memory_space<any>>) dst(%309 : memref<1x128xf32, #tpu.memory_space<vmem>>)
    %c23_i32_205 = arith.constant 23 : i32
    %c0_i32_206 = arith.constant 0 : i32
    %312 = tpu.memref_slice %arg5[%138, %c0_i32_206] : memref<512x128xf32, #tpu.memory_space<any>> -> memref<1x128xf32, #tpu.memory_space<any>>
    %c22_i32_207 = arith.constant 22 : i32
    %c0_i32_208 = arith.constant 0 : i32
    %313 = tpu.memref_slice %arg8[%c22_i32_207, %c0_i32_208] : memref<36x128xf32, #tpu.memory_space<vmem>> -> memref<1x128xf32, #tpu.memory_space<vmem>>
    %314 = tpu.memref_slice %arg9[%c23_i32_205] : memref<37x!tpu.dma_semaphore, #tpu.memory_space<semaphore_mem>> -> memref<1x!tpu.dma_semaphore, #tpu.memory_space<semaphore_mem>>
    %315 = tpu.memref_squeeze %314 : memref<1x!tpu.dma_semaphore, #tpu.memory_space<semaphore_mem>> -> memref<!tpu.dma_semaphore, #tpu.memory_space<semaphore_mem>>
    tpu.wait_dma2 semaphore(%315 : memref<!tpu.dma_semaphore, #tpu.memory_space<semaphore_mem>>) src(%312 : memref<1x128xf32, #tpu.memory_space<any>>) dst(%313 : memref<1x128xf32, #tpu.memory_space<vmem>>)
    %c24_i32_209 = arith.constant 24 : i32
    %c0_i32_210 = arith.constant 0 : i32
    %316 = tpu.memref_slice %arg5[%144, %c0_i32_210] : memref<512x128xf32, #tpu.memory_space<any>> -> memref<1x128xf32, #tpu.memory_space<any>>
    %c23_i32_211 = arith.constant 23 : i32
    %c0_i32_212 = arith.constant 0 : i32
    %317 = tpu.memref_slice %arg8[%c23_i32_211, %c0_i32_212] : memref<36x128xf32, #tpu.memory_space<vmem>> -> memref<1x128xf32, #tpu.memory_space<vmem>>
    %318 = tpu.memref_slice %arg9[%c24_i32_209] : memref<37x!tpu.dma_semaphore, #tpu.memory_space<semaphore_mem>> -> memref<1x!tpu.dma_semaphore, #tpu.memory_space<semaphore_mem>>
    %319 = tpu.memref_squeeze %318 : memref<1x!tpu.dma_semaphore, #tpu.memory_space<semaphore_mem>> -> memref<!tpu.dma_semaphore, #tpu.memory_space<semaphore_mem>>
    tpu.wait_dma2 semaphore(%319 : memref<!tpu.dma_semaphore, #tpu.memory_space<semaphore_mem>>) src(%316 : memref<1x128xf32, #tpu.memory_space<any>>) dst(%317 : memref<1x128xf32, #tpu.memory_space<vmem>>)
    %c25_i32_213 = arith.constant 25 : i32
    %c0_i32_214 = arith.constant 0 : i32
    %320 = tpu.memref_slice %arg5[%150, %c0_i32_214] : memref<512x128xf32, #tpu.memory_space<any>> -> memref<1x128xf32, #tpu.memory_space<any>>
    %c24_i32_215 = arith.constant 24 : i32
    %c0_i32_216 = arith.constant 0 : i32
    %321 = tpu.memref_slice %arg8[%c24_i32_215, %c0_i32_216] : memref<36x128xf32, #tpu.memory_space<vmem>> -> memref<1x128xf32, #tpu.memory_space<vmem>>
    %322 = tpu.memref_slice %arg9[%c25_i32_213] : memref<37x!tpu.dma_semaphore, #tpu.memory_space<semaphore_mem>> -> memref<1x!tpu.dma_semaphore, #tpu.memory_space<semaphore_mem>>
    %323 = tpu.memref_squeeze %322 : memref<1x!tpu.dma_semaphore, #tpu.memory_space<semaphore_mem>> -> memref<!tpu.dma_semaphore, #tpu.memory_space<semaphore_mem>>
    tpu.wait_dma2 semaphore(%323 : memref<!tpu.dma_semaphore, #tpu.memory_space<semaphore_mem>>) src(%320 : memref<1x128xf32, #tpu.memory_space<any>>) dst(%321 : memref<1x128xf32, #tpu.memory_space<vmem>>)
    %c26_i32_217 = arith.constant 26 : i32
    %c0_i32_218 = arith.constant 0 : i32
    %324 = tpu.memref_slice %arg5[%156, %c0_i32_218] : memref<512x128xf32, #tpu.memory_space<any>> -> memref<1x128xf32, #tpu.memory_space<any>>
    %c25_i32_219 = arith.constant 25 : i32
    %c0_i32_220 = arith.constant 0 : i32
    %325 = tpu.memref_slice %arg8[%c25_i32_219, %c0_i32_220] : memref<36x128xf32, #tpu.memory_space<vmem>> -> memref<1x128xf32, #tpu.memory_space<vmem>>
    %326 = tpu.memref_slice %arg9[%c26_i32_217] : memref<37x!tpu.dma_semaphore, #tpu.memory_space<semaphore_mem>> -> memref<1x!tpu.dma_semaphore, #tpu.memory_space<semaphore_mem>>
    %327 = tpu.memref_squeeze %326 : memref<1x!tpu.dma_semaphore, #tpu.memory_space<semaphore_mem>> -> memref<!tpu.dma_semaphore, #tpu.memory_space<semaphore_mem>>
    tpu.wait_dma2 semaphore(%327 : memref<!tpu.dma_semaphore, #tpu.memory_space<semaphore_mem>>) src(%324 : memref<1x128xf32, #tpu.memory_space<any>>) dst(%325 : memref<1x128xf32, #tpu.memory_space<vmem>>)
    %c27_i32_221 = arith.constant 27 : i32
    %c0_i32_222 = arith.constant 0 : i32
    %328 = tpu.memref_slice %arg5[%162, %c0_i32_222] : memref<512x128xf32, #tpu.memory_space<any>> -> memref<1x128xf32, #tpu.memory_space<any>>
    %c26_i32_223 = arith.constant 26 : i32
    %c0_i32_224 = arith.constant 0 : i32
    %329 = tpu.memref_slice %arg8[%c26_i32_223, %c0_i32_224] : memref<36x128xf32, #tpu.memory_space<vmem>> -> memref<1x128xf32, #tpu.memory_space<vmem>>
    %330 = tpu.memref_slice %arg9[%c27_i32_221] : memref<37x!tpu.dma_semaphore, #tpu.memory_space<semaphore_mem>> -> memref<1x!tpu.dma_semaphore, #tpu.memory_space<semaphore_mem>>
    %331 = tpu.memref_squeeze %330 : memref<1x!tpu.dma_semaphore, #tpu.memory_space<semaphore_mem>> -> memref<!tpu.dma_semaphore, #tpu.memory_space<semaphore_mem>>
    tpu.wait_dma2 semaphore(%331 : memref<!tpu.dma_semaphore, #tpu.memory_space<semaphore_mem>>) src(%328 : memref<1x128xf32, #tpu.memory_space<any>>) dst(%329 : memref<1x128xf32, #tpu.memory_space<vmem>>)
    %c28_i32_225 = arith.constant 28 : i32
    %c0_i32_226 = arith.constant 0 : i32
    %332 = tpu.memref_slice %arg5[%168, %c0_i32_226] : memref<512x128xf32, #tpu.memory_space<any>> -> memref<1x128xf32, #tpu.memory_space<any>>
    %c27_i32_227 = arith.constant 27 : i32
    %c0_i32_228 = arith.constant 0 : i32
    %333 = tpu.memref_slice %arg8[%c27_i32_227, %c0_i32_228] : memref<36x128xf32, #tpu.memory_space<vmem>> -> memref<1x128xf32, #tpu.memory_space<vmem>>
    %334 = tpu.memref_slice %arg9[%c28_i32_225] : memref<37x!tpu.dma_semaphore, #tpu.memory_space<semaphore_mem>> -> memref<1x!tpu.dma_semaphore, #tpu.memory_space<semaphore_mem>>
    %335 = tpu.memref_squeeze %334 : memref<1x!tpu.dma_semaphore, #tpu.memory_space<semaphore_mem>> -> memref<!tpu.dma_semaphore, #tpu.memory_space<semaphore_mem>>
    tpu.wait_dma2 semaphore(%335 : memref<!tpu.dma_semaphore, #tpu.memory_space<semaphore_mem>>) src(%332 : memref<1x128xf32, #tpu.memory_space<any>>) dst(%333 : memref<1x128xf32, #tpu.memory_space<vmem>>)
    %c29_i32_229 = arith.constant 29 : i32
    %c0_i32_230 = arith.constant 0 : i32
    %336 = tpu.memref_slice %arg5[%174, %c0_i32_230] : memref<512x128xf32, #tpu.memory_space<any>> -> memref<1x128xf32, #tpu.memory_space<any>>
    %c28_i32_231 = arith.constant 28 : i32
    %c0_i32_232 = arith.constant 0 : i32
    %337 = tpu.memref_slice %arg8[%c28_i32_231, %c0_i32_232] : memref<36x128xf32, #tpu.memory_space<vmem>> -> memref<1x128xf32, #tpu.memory_space<vmem>>
    %338 = tpu.memref_slice %arg9[%c29_i32_229] : memref<37x!tpu.dma_semaphore, #tpu.memory_space<semaphore_mem>> -> memref<1x!tpu.dma_semaphore, #tpu.memory_space<semaphore_mem>>
    %339 = tpu.memref_squeeze %338 : memref<1x!tpu.dma_semaphore, #tpu.memory_space<semaphore_mem>> -> memref<!tpu.dma_semaphore, #tpu.memory_space<semaphore_mem>>
    tpu.wait_dma2 semaphore(%339 : memref<!tpu.dma_semaphore, #tpu.memory_space<semaphore_mem>>) src(%336 : memref<1x128xf32, #tpu.memory_space<any>>) dst(%337 : memref<1x128xf32, #tpu.memory_space<vmem>>)
    %c30_i32_233 = arith.constant 30 : i32
    %c0_i32_234 = arith.constant 0 : i32
    %340 = tpu.memref_slice %arg5[%180, %c0_i32_234] : memref<512x128xf32, #tpu.memory_space<any>> -> memref<1x128xf32, #tpu.memory_space<any>>
    %c29_i32_235 = arith.constant 29 : i32
    %c0_i32_236 = arith.constant 0 : i32
    %341 = tpu.memref_slice %arg8[%c29_i32_235, %c0_i32_236] : memref<36x128xf32, #tpu.memory_space<vmem>> -> memref<1x128xf32, #tpu.memory_space<vmem>>
    %342 = tpu.memref_slice %arg9[%c30_i32_233] : memref<37x!tpu.dma_semaphore, #tpu.memory_space<semaphore_mem>> -> memref<1x!tpu.dma_semaphore, #tpu.memory_space<semaphore_mem>>
    %343 = tpu.memref_squeeze %342 : memref<1x!tpu.dma_semaphore, #tpu.memory_space<semaphore_mem>> -> memref<!tpu.dma_semaphore, #tpu.memory_space<semaphore_mem>>
    tpu.wait_dma2 semaphore(%343 : memref<!tpu.dma_semaphore, #tpu.memory_space<semaphore_mem>>) src(%340 : memref<1x128xf32, #tpu.memory_space<any>>) dst(%341 : memref<1x128xf32, #tpu.memory_space<vmem>>)
    %c31_i32_237 = arith.constant 31 : i32
    %c0_i32_238 = arith.constant 0 : i32
    %344 = tpu.memref_slice %arg5[%186, %c0_i32_238] : memref<512x128xf32, #tpu.memory_space<any>> -> memref<1x128xf32, #tpu.memory_space<any>>
    %c30_i32_239 = arith.constant 30 : i32
    %c0_i32_240 = arith.constant 0 : i32
    %345 = tpu.memref_slice %arg8[%c30_i32_239, %c0_i32_240] : memref<36x128xf32, #tpu.memory_space<vmem>> -> memref<1x128xf32, #tpu.memory_space<vmem>>
    %346 = tpu.memref_slice %arg9[%c31_i32_237] : memref<37x!tpu.dma_semaphore, #tpu.memory_space<semaphore_mem>> -> memref<1x!tpu.dma_semaphore, #tpu.memory_space<semaphore_mem>>
    %347 = tpu.memref_squeeze %346 : memref<1x!tpu.dma_semaphore, #tpu.memory_space<semaphore_mem>> -> memref<!tpu.dma_semaphore, #tpu.memory_space<semaphore_mem>>
    tpu.wait_dma2 semaphore(%347 : memref<!tpu.dma_semaphore, #tpu.memory_space<semaphore_mem>>) src(%344 : memref<1x128xf32, #tpu.memory_space<any>>) dst(%345 : memref<1x128xf32, #tpu.memory_space<vmem>>)
    %c32_i32_241 = arith.constant 32 : i32
    %c0_i32_242 = arith.constant 0 : i32
    %348 = tpu.memref_slice %arg5[%192, %c0_i32_242] : memref<512x128xf32, #tpu.memory_space<any>> -> memref<1x128xf32, #tpu.memory_space<any>>
    %c31_i32_243 = arith.constant 31 : i32
    %c0_i32_244 = arith.constant 0 : i32
    %349 = tpu.memref_slice %arg8[%c31_i32_243, %c0_i32_244] : memref<36x128xf32, #tpu.memory_space<vmem>> -> memref<1x128xf32, #tpu.memory_space<vmem>>
    %350 = tpu.memref_slice %arg9[%c32_i32_241] : memref<37x!tpu.dma_semaphore, #tpu.memory_space<semaphore_mem>> -> memref<1x!tpu.dma_semaphore, #tpu.memory_space<semaphore_mem>>
    %351 = tpu.memref_squeeze %350 : memref<1x!tpu.dma_semaphore, #tpu.memory_space<semaphore_mem>> -> memref<!tpu.dma_semaphore, #tpu.memory_space<semaphore_mem>>
    tpu.wait_dma2 semaphore(%351 : memref<!tpu.dma_semaphore, #tpu.memory_space<semaphore_mem>>) src(%348 : memref<1x128xf32, #tpu.memory_space<any>>) dst(%349 : memref<1x128xf32, #tpu.memory_space<vmem>>)
    %c33_i32_245 = arith.constant 33 : i32
    %c0_i32_246 = arith.constant 0 : i32
    %352 = tpu.memref_slice %arg5[%198, %c0_i32_246] : memref<512x128xf32, #tpu.memory_space<any>> -> memref<1x128xf32, #tpu.memory_space<any>>
    %c32_i32_247 = arith.constant 32 : i32
    %c0_i32_248 = arith.constant 0 : i32
    %353 = tpu.memref_slice %arg8[%c32_i32_247, %c0_i32_248] : memref<36x128xf32, #tpu.memory_space<vmem>> -> memref<1x128xf32, #tpu.memory_space<vmem>>
    %354 = tpu.memref_slice %arg9[%c33_i32_245] : memref<37x!tpu.dma_semaphore, #tpu.memory_space<semaphore_mem>> -> memref<1x!tpu.dma_semaphore, #tpu.memory_space<semaphore_mem>>
    %355 = tpu.memref_squeeze %354 : memref<1x!tpu.dma_semaphore, #tpu.memory_space<semaphore_mem>> -> memref<!tpu.dma_semaphore, #tpu.memory_space<semaphore_mem>>
    tpu.wait_dma2 semaphore(%355 : memref<!tpu.dma_semaphore, #tpu.memory_space<semaphore_mem>>) src(%352 : memref<1x128xf32, #tpu.memory_space<any>>) dst(%353 : memref<1x128xf32, #tpu.memory_space<vmem>>)
    %c34_i32_249 = arith.constant 34 : i32
    %c0_i32_250 = arith.constant 0 : i32
    %356 = tpu.memref_slice %arg5[%204, %c0_i32_250] : memref<512x128xf32, #tpu.memory_space<any>> -> memref<1x128xf32, #tpu.memory_space<any>>
    %c33_i32_251 = arith.constant 33 : i32
    %c0_i32_252 = arith.constant 0 : i32
    %357 = tpu.memref_slice %arg8[%c33_i32_251, %c0_i32_252] : memref<36x128xf32, #tpu.memory_space<vmem>> -> memref<1x128xf32, #tpu.memory_space<vmem>>
    %358 = tpu.memref_slice %arg9[%c34_i32_249] : memref<37x!tpu.dma_semaphore, #tpu.memory_space<semaphore_mem>> -> memref<1x!tpu.dma_semaphore, #tpu.memory_space<semaphore_mem>>
    %359 = tpu.memref_squeeze %358 : memref<1x!tpu.dma_semaphore, #tpu.memory_space<semaphore_mem>> -> memref<!tpu.dma_semaphore, #tpu.memory_space<semaphore_mem>>
    tpu.wait_dma2 semaphore(%359 : memref<!tpu.dma_semaphore, #tpu.memory_space<semaphore_mem>>) src(%356 : memref<1x128xf32, #tpu.memory_space<any>>) dst(%357 : memref<1x128xf32, #tpu.memory_space<vmem>>)
    %c35_i32_253 = arith.constant 35 : i32
    %c0_i32_254 = arith.constant 0 : i32
    %360 = tpu.memref_slice %arg5[%210, %c0_i32_254] : memref<512x128xf32, #tpu.memory_space<any>> -> memref<1x128xf32, #tpu.memory_space<any>>
    %c34_i32_255 = arith.constant 34 : i32
    %c0_i32_256 = arith.constant 0 : i32
    %361 = tpu.memref_slice %arg8[%c34_i32_255, %c0_i32_256] : memref<36x128xf32, #tpu.memory_space<vmem>> -> memref<1x128xf32, #tpu.memory_space<vmem>>
    %362 = tpu.memref_slice %arg9[%c35_i32_253] : memref<37x!tpu.dma_semaphore, #tpu.memory_space<semaphore_mem>> -> memref<1x!tpu.dma_semaphore, #tpu.memory_space<semaphore_mem>>
    %363 = tpu.memref_squeeze %362 : memref<1x!tpu.dma_semaphore, #tpu.memory_space<semaphore_mem>> -> memref<!tpu.dma_semaphore, #tpu.memory_space<semaphore_mem>>
    tpu.wait_dma2 semaphore(%363 : memref<!tpu.dma_semaphore, #tpu.memory_space<semaphore_mem>>) src(%360 : memref<1x128xf32, #tpu.memory_space<any>>) dst(%361 : memref<1x128xf32, #tpu.memory_space<vmem>>)
    %c36_i32_257 = arith.constant 36 : i32
    %c0_i32_258 = arith.constant 0 : i32
    %364 = tpu.memref_slice %arg5[%216, %c0_i32_258] : memref<512x128xf32, #tpu.memory_space<any>> -> memref<1x128xf32, #tpu.memory_space<any>>
    %c35_i32_259 = arith.constant 35 : i32
    %c0_i32_260 = arith.constant 0 : i32
    %365 = tpu.memref_slice %arg8[%c35_i32_259, %c0_i32_260] : memref<36x128xf32, #tpu.memory_space<vmem>> -> memref<1x128xf32, #tpu.memory_space<vmem>>
    %366 = tpu.memref_slice %arg9[%c36_i32_257] : memref<37x!tpu.dma_semaphore, #tpu.memory_space<semaphore_mem>> -> memref<1x!tpu.dma_semaphore, #tpu.memory_space<semaphore_mem>>
    %367 = tpu.memref_squeeze %366 : memref<1x!tpu.dma_semaphore, #tpu.memory_space<semaphore_mem>> -> memref<!tpu.dma_semaphore, #tpu.memory_space<semaphore_mem>>
    tpu.wait_dma2 semaphore(%367 : memref<!tpu.dma_semaphore, #tpu.memory_space<semaphore_mem>>) src(%364 : memref<1x128xf32, #tpu.memory_space<any>>) dst(%365 : memref<1x128xf32, #tpu.memory_space<vmem>>)
    %c0_261 = arith.constant 0 : index
    %c0_262 = arith.constant 0 : index
    %368 = vector.load %arg7[%c0_261, %c0_262] : memref<1x128xf32, #tpu.memory_space<vmem>>, vector<1x128xf32>
    %c0_263 = arith.constant 0 : index
    %c0_264 = arith.constant 0 : index
    %369 = vector.load %arg8[%c0_263, %c0_264] : memref<36x128xf32, #tpu.memory_space<vmem>>, vector<36x128xf32>
    %370 = vector.broadcast %368 : vector<1x128xf32> to vector<36x128xf32>
    %371 = arith.mulf %369, %370 : vector<36x128xf32>
    %cst = arith.constant dense<0.000000e+00> : vector<36xf32>
    %372 = vector.multi_reduction <add>, %371, %cst [1] : vector<36x128xf32> to vector<36xf32>
    %373 = vector.shape_cast %372 : vector<36xf32> to vector<36x1xf32>
    %374 = tpu.iota {dimensions = array<i32: 0>} : vector<36x1xi32>
    %c6_i32_265 = arith.constant 6 : i32
    %375 = vector.broadcast %c6_i32_265 : i32 to vector<36x1xi32>
    %376 = arith.cmpi slt, %374, %375 : vector<36x1xi32>
    %cst_266 = arith.constant 1.000000e+00 : f32
    %cst_267 = arith.constant -1.000000e+00 : f32
    %377 = vector.broadcast %cst_266 : f32 to vector<36x1xf32>
    %378 = vector.broadcast %cst_267 : f32 to vector<36x1xf32>
    %379 = arith.select %376, %377, %378 : vector<36x1xi1>, vector<36x1xf32>
    %380 = arith.mulf %379, %373 : vector<36x1xf32>
    %cst_268 = arith.constant 0.000000e+00 : f32
    %381 = vector.broadcast %cst_268 : f32 to vector<36x1xf32>
    %382 = arith.minimumf %380, %381 : vector<36x1xf32>
    %383 = math.absf %380 : vector<36x1xf32>
    %cst_269 = arith.constant 0.000000e+00 : f32
    %384 = vector.broadcast %cst_269 : f32 to vector<36x1xf32>
    %385 = arith.subf %384, %383 : vector<36x1xf32>
    %386 = math.exp %385 : vector<36x1xf32>
    %387 = math.log1p %386 : vector<36x1xf32>
    %388 = arith.subf %382, %387 : vector<36x1xf32>
    %cst_270 = arith.constant dense<0.000000e+00> : vector<1xf32>
    %389 = vector.multi_reduction <add>, %388, %cst_270 [0] : vector<36x1xf32> to vector<1xf32>
    %390 = vector.shape_cast %389 : vector<1xf32> to vector<1x1xf32>
    %cst_271 = arith.constant 0.000000e+00 : f32
    %391 = vector.broadcast %cst_271 : f32 to vector<1x1xf32>
    %392 = arith.subf %391, %390 : vector<1x1xf32>
    %393 = vector.shape_cast %392 : vector<1x1xf32> to vector<1x1x1xf32>
    %394 = vector.shape_cast %393 : vector<1x1x1xf32> to vector<1x1x1xf32>
    %395 = vector.broadcast %394 : vector<1x1x1xf32> to vector<1x1x128xf32>
    %c0_272 = arith.constant 0 : index
    %c0_273 = arith.constant 0 : index
    %c0_274 = arith.constant 0 : index
    %396 = vector.load %arg6[%c0_272, %c0_273, %c0_274] : memref<1x1x128xf32, #tpu.memory_space<vmem>>, vector<1x1x128xf32>
    tpu.vector_store %arg6[%c0_272, %c0_273, %c0_274], %395 {strides = array<i32>} : memref<1x1x128xf32, #tpu.memory_space<vmem>>, vector<1x1x128xf32>,
    return
  }
  func.func @transform_2(%arg0: i32, %arg1: memref<4xi32, #tpu.memory_space<smem>>, %arg2: memref<4x6xi32, #tpu.memory_space<smem>>, %arg3: memref<4x30xi32, #tpu.memory_space<smem>>) -> (i32, i32, i32) {
    %c0_i32 = arith.constant 0 : i32
    %c0_i32_0 = arith.constant 0 : i32
    %c0_i32_1 = arith.constant 0 : i32
    return %arg0, %c0_i32, %c0_i32_0 : i32, i32, i32
  }
}

</mosaic_0001>

<llo_original>
// kernel: tpu_custom_call.1
$region0: #{tpu_custom_call.1}
  #allocation0 [shape = 'u32[]', space=smem, size = 0x4, offset = 0x4, fixed_abs, tag = 'smem constant byte address 0x4 - core index']
  #allocation1 [shape = 'u32[144,128]{1,0:T(1,128)}', space=vmem, size = 0x12000, scoped, tag = 'internal scratch']
  #allocation2 [shape = 'f32[1,128]{1,0:T(1,128)}', space=vmem, size = 0x200, scoped, tag = 'scratch operand']
  #allocation3 [shape = 'f32[36,128]{1,0:T(8,128)}', space=vmem, size = 0x5000, scoped, tag = 'scratch operand']
  #allocation4 [shape = 's32[37]{0}', space=sflag, size = 0x94, scoped, tag = 'scratch operand']
  #allocation5 [shape = 's32[1]{0}', space=sflag, size = 0x4, scoped, tag = 'scoped memory for tpu_custom_call.1']
  #allocation6 [shape = 'u8[512]{0}', space=smem, size = 0x200, scoped, tag = 'prefetched SMEM operand 0']
  #allocation7 [shape = 'u8[2048]{0}', space=smem, size = 0x800, scoped, tag = 'prefetched SMEM operand 1']
  #allocation8 [shape = 'u8[2048]{0}', space=smem, size = 0x800, scoped, tag = 'prefetched SMEM operand 2']
  #allocation11 [shape = 's32[]', space=sflag, size = 0x4, offset = 0, fixed_abs, tag = 'sflag constant byte address 0x0 - dummy sync flag']
  #allocation12 [shape = 's32[]', space=sflag, size = 0x4, offset = 0, fixed_abs, tag = 'sflag constant byte address 0x0 - dummy sync flag']
  #allocation13 [shape = 'u32[]', space=smem, size = 0x4, offset = 0x44, fixed_abs, tag = 'smem constant byte address 0x44 - assertion arg 0']
  #allocation14 [shape = 'u32[]', space=smem, size = 0x4, offset = 0x48, fixed_abs, tag = 'smem constant byte address 0x48 - assertion arg 1']
  #allocation15 [shape = 's32[]', space=sflag, size = 0x4, offset = 0, fixed_abs, tag = 'sflag constant byte address 0x0 - dummy sync flag']
  #allocation16 [shape = 's32[]', space=sflag, size = 0x4, offset = 0, fixed_abs, tag = 'sflag constant byte address 0x0 - dummy sync flag']
  #allocation17 [shape = 's32[]', space=sflag, size = 0x4, offset = 0, fixed_abs, tag = 'sflag constant byte address 0x0 - dummy sync flag']
  #allocation18 [shape = 's32[]', space=sflag, size = 0x4, offset = 0, fixed_abs, tag = 'sflag constant byte address 0x0 - dummy sync flag']
  #allocation19 [shape = 's32[]', space=sflag, size = 0x4, offset = 0, fixed_abs, tag = 'sflag constant byte address 0x0 - dummy sync flag']
  #allocation20 [shape = 's32[]', space=sflag, size = 0x4, offset = 0, fixed_abs, tag = 'sflag constant byte address 0x0 - dummy sync flag']
  #allocation21 [shape = 's32[]', space=sflag, size = 0x4, offset = 0, fixed_abs, tag = 'sflag constant byte address 0x0 - dummy sync flag']
  #allocation22 [shape = 's32[]', space=sflag, size = 0x4, offset = 0, fixed_abs, tag = 'sflag constant byte address 0x0 - dummy sync flag']
  #allocation23 [shape = 's32[]', space=sflag, size = 0x4, offset = 0, fixed_abs, tag = 'sflag constant byte address 0x0 - dummy sync flag']
  #allocation24 [shape = 's32[]', space=sflag, size = 0x4, offset = 0, fixed_abs, tag = 'sflag constant byte address 0x0 - dummy sync flag']
  #allocation25 [shape = 's32[]', space=sflag, size = 0x4, offset = 0, fixed_abs, tag = 'sflag constant byte address 0x0 - dummy sync flag']
  #allocation26 [shape = 's32[]', space=sflag, size = 0x4, offset = 0, fixed_abs, tag = 'sflag constant byte address 0x0 - dummy sync flag']
  #allocation27 [shape = 's32[]', space=sflag, size = 0x4, offset = 0, fixed_abs, tag = 'sflag constant byte address 0x0 - dummy sync flag']
  #allocation28 [shape = 's32[]', space=sflag, size = 0x4, offset = 0, fixed_abs, tag = 'sflag constant byte address 0x0 - dummy sync flag']
  #allocation29 [shape = 's32[]', space=sflag, size = 0x4, offset = 0, fixed_abs, tag = 'sflag constant byte address 0x0 - dummy sync flag']
  #allocation30 [shape = 's32[]', space=sflag, size = 0x4, offset = 0, fixed_abs, tag = 'sflag constant byte address 0x0 - dummy sync flag']
  #allocation31 [shape = 's32[]', space=sflag, size = 0x4, offset = 0, fixed_abs, tag = 'sflag constant byte address 0x0 - dummy sync flag']
  #allocation32 [shape = 's32[]', space=sflag, size = 0x4, offset = 0, fixed_abs, tag = 'sflag constant byte address 0x0 - dummy sync flag']
  #allocation33 [shape = 's32[]', space=sflag, size = 0x4, offset = 0, fixed_abs, tag = 'sflag constant byte address 0x0 - dummy sync flag']
  #allocation34 [shape = 's32[]', space=sflag, size = 0x4, offset = 0, fixed_abs, tag = 'sflag constant byte address 0x0 - dummy sync flag']
  #allocation35 [shape = 's32[]', space=sflag, size = 0x4, offset = 0, fixed_abs, tag = 'sflag constant byte address 0x0 - dummy sync flag']
  #allocation36 [shape = 's32[]', space=sflag, size = 0x4, offset = 0, fixed_abs, tag = 'sflag constant byte address 0x0 - dummy sync flag']
  #allocation37 [shape = 's32[]', space=sflag, size = 0x4, offset = 0, fixed_abs, tag = 'sflag constant byte address 0x0 - dummy sync flag']
  #allocation38 [shape = 's32[]', space=sflag, size = 0x4, offset = 0, fixed_abs, tag = 'sflag constant byte address 0x0 - dummy sync flag']
  #allocation39 [shape = 's32[]', space=sflag, size = 0x4, offset = 0, fixed_abs, tag = 'sflag constant byte address 0x0 - dummy sync flag']
  #allocation40 [shape = 's32[]', space=sflag, size = 0x4, offset = 0, fixed_abs, tag = 'sflag constant byte address 0x0 - dummy sync flag']
  #allocation41 [shape = 's32[]', space=sflag, size = 0x4, offset = 0, fixed_abs, tag = 'sflag constant byte address 0x0 - dummy sync flag']
  #allocation42 [shape = 's32[]', space=sflag, size = 0x4, offset = 0, fixed_abs, tag = 'sflag constant byte address 0x0 - dummy sync flag']
  #allocation43 [shape = 's32[]', space=sflag, size = 0x4, offset = 0, fixed_abs, tag = 'sflag constant byte address 0x0 - dummy sync flag']
  #allocation44 [shape = 's32[]', space=sflag, size = 0x4, offset = 0, fixed_abs, tag = 'sflag constant byte address 0x0 - dummy sync flag']
  #allocation45 [shape = 's32[]', space=sflag, size = 0x4, offset = 0, fixed_abs, tag = 'sflag constant byte address 0x0 - dummy sync flag']
  #allocation46 [shape = 's32[]', space=sflag, size = 0x4, offset = 0, fixed_abs, tag = 'sflag constant byte address 0x0 - dummy sync flag']
  #allocation47 [shape = 's32[]', space=sflag, size = 0x4, offset = 0, fixed_abs, tag = 'sflag constant byte address 0x0 - dummy sync flag']
  #allocation48 [shape = 's32[]', space=sflag, size = 0x4, offset = 0, fixed_abs, tag = 'sflag constant byte address 0x0 - dummy sync flag']
  #allocation49 [shape = 's32[]', space=sflag, size = 0x4, offset = 0, fixed_abs, tag = 'sflag constant byte address 0x0 - dummy sync flag']
  #allocation50 [shape = 's32[]', space=sflag, size = 0x4, offset = 0, fixed_abs, tag = 'sflag constant byte address 0x0 - dummy sync flag']
  #allocation51 [shape = 's32[]', space=sflag, size = 0x4, offset = 0, fixed_abs, tag = 'sflag constant byte address 0x0 - dummy sync flag']
  #allocation52 [shape = 's32[]', space=sflag, size = 0x4, offset = 0, fixed_abs, tag = 'sflag constant byte address 0x0 - dummy sync flag']
  #allocation53 [shape = 's32[]', space=sflag, size = 0x4, offset = 0, fixed_abs, tag = 'sflag constant byte address 0x0 - dummy sync flag']
  #allocation54 [shape = 's32[]', space=sflag, size = 0x4, offset = 0, fixed_abs, tag = 'sflag constant byte address 0x0 - dummy sync flag']
  #allocation55 [shape = 's32[]', space=sflag, size = 0x4, offset = 0, fixed_abs, tag = 'sflag constant byte address 0x0 - dummy sync flag']
  #allocation56 [shape = 's32[]', space=sflag, size = 0x4, offset = 0, fixed_abs, tag = 'sflag constant byte address 0x0 - dummy sync flag']
  #allocation57 [shape = 's32[]', space=sflag, size = 0x4, offset = 0, fixed_abs, tag = 'sflag constant byte address 0x0 - dummy sync flag']
  #allocation58 [shape = 's32[]', space=sflag, size = 0x4, offset = 0, fixed_abs, tag = 'sflag constant byte address 0x0 - dummy sync flag']
  #allocation59 [shape = 's32[]', space=sflag, size = 0x4, offset = 0, fixed_abs, tag = 'sflag constant byte address 0x0 - dummy sync flag']
  #allocation60 [shape = 's32[]', space=sflag, size = 0x4, offset = 0, fixed_abs, tag = 'sflag constant byte address 0x0 - dummy sync flag']
  #allocation61 [shape = 's32[]', space=sflag, size = 0x4, offset = 0, fixed_abs, tag = 'sflag constant byte address 0x0 - dummy sync flag']
  #allocation62 [shape = 's32[]', space=sflag, size = 0x4, offset = 0, fixed_abs, tag = 'sflag constant byte address 0x0 - dummy sync flag']
  #allocation63 [shape = 's32[]', space=sflag, size = 0x4, offset = 0, fixed_abs, tag = 'sflag constant byte address 0x0 - dummy sync flag']
  #allocation64 [shape = 's32[]', space=sflag, size = 0x4, offset = 0, fixed_abs, tag = 'sflag constant byte address 0x0 - dummy sync flag']
  #allocation65 [shape = 's32[]', space=sflag, size = 0x4, offset = 0, fixed_abs, tag = 'sflag constant byte address 0x0 - dummy sync flag']
  #allocation66 [shape = 's32[]', space=sflag, size = 0x4, offset = 0, fixed_abs, tag = 'sflag constant byte address 0x0 - dummy sync flag']
  #allocation67 [shape = 's32[]', space=sflag, size = 0x4, offset = 0, fixed_abs, tag = 'sflag constant byte address 0x0 - dummy sync flag']
  #allocation68 [shape = 's32[]', space=sflag, size = 0x4, offset = 0, fixed_abs, tag = 'sflag constant byte address 0x0 - dummy sync flag']
  #allocation69 [shape = 's32[]', space=sflag, size = 0x4, offset = 0, fixed_abs, tag = 'sflag constant byte address 0x0 - dummy sync flag']
  #allocation70 [shape = 's32[]', space=sflag, size = 0x4, offset = 0, fixed_abs, tag = 'sflag constant byte address 0x0 - dummy sync flag']
  #allocation71 [shape = 's32[]', space=sflag, size = 0x4, offset = 0, fixed_abs, tag = 'sflag constant byte address 0x0 - dummy sync flag']
  #allocation72 [shape = 's32[]', space=sflag, size = 0x4, offset = 0, fixed_abs, tag = 'sflag constant byte address 0x0 - dummy sync flag']
  #allocation73 [shape = 's32[]', space=sflag, size = 0x4, offset = 0, fixed_abs, tag = 'sflag constant byte address 0x0 - dummy sync flag']
  #allocation74 [shape = 's32[]', space=sflag, size = 0x4, offset = 0, fixed_abs, tag = 'sflag constant byte address 0x0 - dummy sync flag']
  #allocation75 [shape = 's32[]', space=sflag, size = 0x4, offset = 0, fixed_abs, tag = 'sflag constant byte address 0x0 - dummy sync flag']
  #allocation76 [shape = 's32[]', space=sflag, size = 0x4, offset = 0, fixed_abs, tag = 'sflag constant byte address 0x0 - dummy sync flag']
  #allocation77 [shape = 's32[]', space=sflag, size = 0x4, offset = 0, fixed_abs, tag = 'sflag constant byte address 0x0 - dummy sync flag']
  #allocation78 [shape = 's32[]', space=sflag, size = 0x4, offset = 0, fixed_abs, tag = 'sflag constant byte address 0x0 - dummy sync flag']
  #allocation79 [shape = 's32[]', space=sflag, size = 0x4, offset = 0, fixed_abs, tag = 'sflag constant byte address 0x0 - dummy sync flag']
  #allocation80 [shape = 's32[]', space=sflag, size = 0x4, offset = 0, fixed_abs, tag = 'sflag constant byte address 0x0 - dummy sync flag']
  #allocation81 [shape = 's32[]', space=sflag, size = 0x4, offset = 0, fixed_abs, tag = 'sflag constant byte address 0x0 - dummy sync flag']
  #allocation82 [shape = 's32[]', space=sflag, size = 0x4, offset = 0, fixed_abs, tag = 'sflag constant byte address 0x0 - dummy sync flag']
  #allocation83 [shape = 's32[]', space=sflag, size = 0x4, offset = 0, fixed_abs, tag = 'sflag constant byte address 0x0 - dummy sync flag']
  #allocation84 [shape = 's32[]', space=sflag, size = 0x4, offset = 0, fixed_abs, tag = 'sflag constant byte address 0x0 - dummy sync flag']
  #allocation85 [shape = 's32[]', space=sflag, size = 0x4, offset = 0, fixed_abs, tag = 'sflag constant byte address 0x0 - dummy sync flag']
  #allocation86 [shape = 's32[]', space=sflag, size = 0x4, offset = 0, fixed_abs, tag = 'sflag constant byte address 0x0 - dummy sync flag']
  %s0 = inlined_call_operand.hbm [shape: s32[4], index: 0, kind: input, shape index: {}]
  %s1 = inlined_call_operand.hbm [shape: s32[4,6], index: 1, kind: input, shape index: {}]
  %s2 = inlined_call_operand.vmem [shape: s32[4,30], index: 2, kind: input, shape index: {}]
  %s3 = inlined_call_operand.hbm [shape: f32[512,128], index: 3, kind: input, shape index: {}]
  %s4 = inlined_call_operand.hbm [shape: f32[512,128], index: 4, kind: input, shape index: {}]
  %s5 = inlined_call_operand.hbm [shape: f32[4,1,128], index: 5, kind: output, shape index: {}]
  %s6 = sld [smem:[#allocation0]]
  $region173: #{tpu_custom_call.1} parent=0
    _
  %s8 = ssub.s32 1, %s6
  %s9 = scalar_select 0, %s8, %s6
  %11 = dma.hbm_to_smem %s0, 16, [#allocation6], [#allocation5]
  %13 = dma.hbm_to_smem %s1, 64, [#allocation7], [#allocation5]
  %s14 = sshll.u32 %s2, 4
  %s15 = int_to_ptr.vmem [resolvable:$true] %s14
  %17 = dma.vmem_to_smem %s15, 64, [#allocation8], [#allocation5]
  %18 = dma.done [#allocation5], 144
  %19 = sfence
  $region1: #{tpu_custom_call.1} parent=0
    #allocation9 [shape = 'u8[1024]{0}', space=vmem, size = 0x400, scoped, tag = 'output window, operand 0']
    #allocation10 [shape = 's32[2]{0}', space=sflag, size = 0x8, scoped, tag = 'scoped memory for tpu_custom_call.1']
    %20 = vsyncpa [#allocation10], 0
    %s21 = scalar_lea.sflag [#allocation10], 1
    %22 = vsyncpa %s21, 0
    loop: start=0, step=1, limit=5
    $region2: #{tpu_custom_call.1} parent=1 // loop_pre_header
      _
    $region3: #{tpu_custom_call.1} parent=1 // loop_header
      %s24 = sphi 0, %s28
      %p25 = scmp.ge.s32.totalorder %s24, 5
      %s33 = sphi 0, %s35
      %s36 = sphi 0, %s33
      %s46 = sphi 0, %s36
    $region4: #{tpu_custom_call.1} parent=1 // loop_header_branch
      %27 = sbr.rel (%p25) target = $region8
    $region5: #{tpu_custom_call.1} parent=1 // loop_body
      %s29 = ssub.s32 %s24, 1
      %s30 = sadd.s32 %s24, 1
      %s31 = ssub.s32 %s24, %s30
      %p32 = scmp.eq.s32.totalorder %s31, 0
      %s34 = sadd.s32 %s33, 1
      %s35 = scalar_select %p32, %s33, %s34
      %p37 = pneg %p32
      %p38 = scmp.eq.s32.totalorder %s24, 3
      %p39 = por %p37, %p38
      %p40 = scmp.ne.s32.totalorder %s33, %s36
      %p41 = scmp.eq.s32.totalorder %s24, 0
      %p42 = por %p40, %p41
      %p43 = scmp.ne.s32.totalorder %s33, %s36
      %p44 = scmp.eq.s32.totalorder %s29, 3
      %p45 = por %p43, %p44
      %p47 = scmp.ne.s32.totalorder %s36, %s46
      %p48 = scmp.eq.s32.totalorder %s29, 0
      %p49 = por %p47, %p48
      %p50 = scmp.lt.s32.totalorder %s24, 4
      // Predicated region
      $region9: #{tpu_custom_call.1} parent=5 // pred_check
        %p51 = pneg %p50
      $region10: #{tpu_custom_call.1} parent=5 // pred_check_branch
        %53 = sbr.rel (%p51) target = $region12
      $region11: #{tpu_custom_call.1} parent=5 // pred_region
        %p54 = pneg %p42
        %p55 = pneg %p39
        %s56 = sand.u32 %s33, 1
        %s57 = scalar_lea.sflag [#allocation10], %s56
        %s58 = sand.u32 %s33, 1
        %s59 = scalar_lea.vmem [#allocation9], %s58
        %s60 = sld [smem:[#allocation6 + %s24]]
        %s61 = smul.addr %s60, 16
        %s62 = scalar_lea.hbm %s3, %s61
        // Predicated region
        $region13: #{tpu_custom_call.1} parent=11 // pred_check
          _
        $region14: #{tpu_custom_call.1} parent=11 // pred_check_branch
          %64 = sbr.rel target = $region16
        $region15: #{tpu_custom_call.1} parent=11 // pred_region
          %65 = sst [smem:[#allocation13]] [#allocation12]
          %66 = sst [smem:[#allocation14]] [#allocation11]
        $region16: #{tpu_custom_call.1} parent=11 // pred_fallthru
          _
        %68 = shalt.err (0)
        %s70 = sshll.u32 [#allocation2], 4
        %s71 = int_to_ptr.vmem [resolvable:$true] %s70
        %73 = dma.hbm_to_vmem [thread:$0]  %s62, 16, %s71, [#allocation4]
        %s74 = smul.u32 %s24, 128
        %s75 = sld [smem:[#allocation7 + %s74]]
        %s76 = smul.addr %s75, 16
        %s77 = scalar_lea.hbm %s4, %s76
        %s78 = scalar_lea.sflag [#allocation4], 1
        // Predicated region
        $region17: #{tpu_custom_call.1} parent=11 // pred_check
          _
        $region18: #{tpu_custom_call.1} parent=11 // pred_check_branch
          %80 = sbr.rel target = $region20
        $region19: #{tpu_custom_call.1} parent=11 // pred_region
          %81 = sst [smem:[#allocation13]] [#allocation16]
          %82 = sst [smem:[#allocation14]] [#allocation15]
        $region20: #{tpu_custom_call.1} parent=11 // pred_fallthru
          _
        %84 = shalt.err (0)
        %s86 = sshll.u32 [#allocation3], 4
        %s87 = int_to_ptr.vmem [resolvable:$true] %s86
        %89 = dma.hbm_to_vmem [thread:$0]  %s77, 16, %s87, %s78
        %s90 = sadd.s32 %s74, 1
        %s91 = sld [smem:[#allocation7 + %s90]]
        %s92 = smul.addr %s91, 16
        %s93 = scalar_lea.hbm %s4, %s92
        %s94 = scalar_lea.vmem [#allocation3], 1
        %s95 = scalar_lea.sflag [#allocation4], 2
        // Predicated region
        $region21: #{tpu_custom_call.1} parent=11 // pred_check
          _
        $region22: #{tpu_custom_call.1} parent=11 // pred_check_branch
          %97 = sbr.rel target = $region24
        $region23: #{tpu_custom_call.1} parent=11 // pred_region
          %98 = sst [smem:[#allocation13]] [#allocation18]
          %99 = sst [smem:[#allocation14]] [#allocation17]
        $region24: #{tpu_custom_call.1} parent=11 // pred_fallthru
          _
        %101 = shalt.err (0)
        %s103 = sshll.u32 %s94, 4
        %s104 = int_to_ptr.vmem [resolvable:$true] %s103
        %106 = dma.hbm_to_vmem [thread:$0]  %s93, 16, %s104, %s95
        %s107 = sadd.s32 %s74, 2
        %s108 = sld [smem:[#allocation7 + %s107]]
        %s109 = smul.addr %s108, 16
        %s110 = scalar_lea.hbm %s4, %s109
        %s111 = scalar_lea.vmem [#allocation3], 2
        %s112 = scalar_lea.sflag [#allocation4], 3
        // Predicated region
        $region25: #{tpu_custom_call.1} parent=11 // pred_check
          _
        $region26: #{tpu_custom_call.1} parent=11 // pred_check_branch
          %114 = sbr.rel target = $region28
        $region27: #{tpu_custom_call.1} parent=11 // pred_region
          %115 = sst [smem:[#allocation13]] [#allocation20]
          %116 = sst [smem:[#allocation14]] [#allocation19]
        $region28: #{tpu_custom_call.1} parent=11 // pred_fallthru
          _
        %118 = shalt.err (0)
        %s120 = sshll.u32 %s111, 4
        %s121 = int_to_ptr.vmem [resolvable:$true] %s120
        %123 = dma.hbm_to_vmem [thread:$0]  %s110, 16, %s121, %s112
        %s124 = sadd.s32 %s74, 3
        %s125 = sld [smem:[#allocation7 + %s124]]
        %s126 = smul.addr %s125, 16
        %s127 = scalar_lea.hbm %s4, %s126
        %s128 = scalar_lea.vmem [#allocation3], 3
        %s129 = scalar_lea.sflag [#allocation4], 4
        // Predicated region
        $region29: #{tpu_custom_call.1} parent=11 // pred_check
          _
        $region30: #{tpu_custom_call.1} parent=11 // pred_check_branch
          %131 = sbr.rel target = $region32
        $region31: #{tpu_custom_call.1} parent=11 // pred_region
          %132 = sst [smem:[#allocation13]] [#allocation22]
          %133 = sst [smem:[#allocation14]] [#allocation21]
        $region32: #{tpu_custom_call.1} parent=11 // pred_fallthru
          _
        %135 = shalt.err (0)
        %s137 = sshll.u32 %s128, 4
        %s138 = int_to_ptr.vmem [resolvable:$true] %s137
        %140 = dma.hbm_to_vmem [thread:$0]  %s127, 16, %s138, %s129
        %s141 = sadd.s32 %s74, 4
        %s142 = sld [smem:[#allocation7 + %s141]]
        %s143 = smul.addr %s142, 16
        %s144 = scalar_lea.hbm %s4, %s143
        %s145 = scalar_lea.vmem [#allocation3], 4
        %s146 = scalar_lea.sflag [#allocation4], 5
        // Predicated region
        $region33: #{tpu_custom_call.1} parent=11 // pred_check
          _
        $region34: #{tpu_custom_call.1} parent=11 // pred_check_branch
          %148 = sbr.rel target = $region36
        $region35: #{tpu_custom_call.1} parent=11 // pred_region
          %149 = sst [smem:[#allocation13]] [#allocation24]
          %150 = sst [smem:[#allocation14]] [#allocation23]
        $region36: #{tpu_custom_call.1} parent=11 // pred_fallthru
          _
        %152 = shalt.err (0)
        %s154 = sshll.u32 %s145, 4
        %s155 = int_to_ptr.vmem [resolvable:$true] %s154
        %157 = dma.hbm_to_vmem [thread:$0]  %s144, 16, %s155, %s146
        %s158 = sadd.s32 %s74, 5
        %s159 = sld [smem:[#allocation7 + %s158]]
        %s160 = smul.addr %s159, 16
        %s161 = scalar_lea.hbm %s4, %s160
        %s162 = scalar_lea.vmem [#allocation3], 5
        %s163 = scalar_lea.sflag [#allocation4], 6
        // Predicated region
        $region37: #{tpu_custom_call.1} parent=11 // pred_check
          _
        $region38: #{tpu_custom_call.1} parent=11 // pred_check_branch
          %165 = sbr.rel target = $region40
        $region39: #{tpu_custom_call.1} parent=11 // pred_region
          %166 = sst [smem:[#allocation13]] [#allocation26]
          %167 = sst [smem:[#allocation14]] [#allocation25]
        $region40: #{tpu_custom_call.1} parent=11 // pred_fallthru
          _
        %169 = shalt.err (0)
        %s171 = sshll.u32 %s162, 4
        %s172 = int_to_ptr.vmem [resolvable:$true] %s171
        %174 = dma.hbm_to_vmem [thread:$0]  %s161, 16, %s172, %s163
        %s175 = sld [smem:[#allocation8 + %s74]]
        %s176 = smul.addr %s175, 16
        %s177 = scalar_lea.hbm %s4, %s176
        %s178 = scalar_lea.vmem [#allocation3], 6
        %s179 = scalar_lea.sflag [#allocation4], 7
        // Predicated region
        $region41: #{tpu_custom_call.1} parent=11 // pred_check
          _
        $region42: #{tpu_custom_call.1} parent=11 // pred_check_branch
          %181 = sbr.rel target = $region44
        $region43: #{tpu_custom_call.1} parent=11 // pred_region
          %182 = sst [smem:[#allocation13]] [#allocation28]
          %183 = sst [smem:[#allocation14]] [#allocation27]
        $region44: #{tpu_custom_call.1} parent=11 // pred_fallthru
          _
        %185 = shalt.err (0)
        %s187 = sshll.u32 %s178, 4
        %s188 = int_to_ptr.vmem [resolvable:$true] %s187
        %190 = dma.hbm_to_vmem [thread:$0]  %s177, 16, %s188, %s179
        %s191 = sld [smem:[#allocation8 + %s90]]
        %s192 = smul.addr %s191, 16
        %s193 = scalar_lea.hbm %s4, %s192
        %s194 = scalar_lea.vmem [#allocation3], 7
        %s195 = scalar_lea.sflag [#allocation4], 8
        // Predicated region
        $region45: #{tpu_custom_call.1} parent=11 // pred_check
          _
        $region46: #{tpu_custom_call.1} parent=11 // pred_check_branch
          %197 = sbr.rel target = $region48
        $region47: #{tpu_custom_call.1} parent=11 // pred_region
          %198 = sst [smem:[#allocation13]] [#allocation30]
          %199 = sst [smem:[#allocation14]] [#allocation29]
        $region48: #{tpu_custom_call.1} parent=11 // pred_fallthru
          _
        %201 = shalt.err (0)
        %s203 = sshll.u32 %s194, 4
        %s204 = int_to_ptr.vmem [resolvable:$true] %s203
        %206 = dma.hbm_to_vmem [thread:$0]  %s193, 16, %s204, %s195
        %s207 = sld [smem:[#allocation8 + %s107]]
        %s208 = smul.addr %s207, 16
        %s209 = scalar_lea.hbm %s4, %s208
        %s210 = scalar_lea.vmem [#allocation3], 8
        %s211 = scalar_lea.sflag [#allocation4], 9
        // Predicated region
        $region49: #{tpu_custom_call.1} parent=11 // pred_check
          _
        $region50: #{tpu_custom_call.1} parent=11 // pred_check_branch
          %213 = sbr.rel target = $region52
        $region51: #{tpu_custom_call.1} parent=11 // pred_region
          %214 = sst [smem:[#allocation13]] [#allocation32]
          %215 = sst [smem:[#allocation14]] [#allocation31]
        $region52: #{tpu_custom_call.1} parent=11 // pred_fallthru
          _
        %217 = shalt.err (0)
        %s219 = sshll.u32 %s210, 4
        %s220 = int_to_ptr.vmem [resolvable:$true] %s219
        %222 = dma.hbm_to_vmem [thread:$0]  %s209, 16, %s220, %s211
        %s223 = sld [smem:[#allocation8 + %s124]]
        %s224 = smul.addr %s223, 16
        %s225 = scalar_lea.hbm %s4, %s224
        %s226 = scalar_lea.vmem [#allocation3], 9
        %s227 = scalar_lea.sflag [#allocation4], 10
        // Predicated region
        $region53: #{tpu_custom_call.1} parent=11 // pred_check
          _
        $region54: #{tpu_custom_call.1} parent=11 // pred_check_branch
          %229 = sbr.rel target = $region56
        $region55: #{tpu_custom_call.1} parent=11 // pred_region
          %230 = sst [smem:[#allocation13]] [#allocation34]
          %231 = sst [smem:[#allocation14]] [#allocation33]
        $region56: #{tpu_custom_call.1} parent=11 // pred_fallthru
          _
        %233 = shalt.err (0)
        %s235 = sshll.u32 %s226, 4
        %s236 = int_to_ptr.vmem [resolvable:$true] %s235
        %238 = dma.hbm_to_vmem [thread:$0]  %s225, 16, %s236, %s227
        %s239 = sld [smem:[#allocation8 + %s141]]
        %s240 = smul.addr %s239, 16
        %s241 = scalar_lea.hbm %s4, %s240
        %s242 = scalar_lea.vmem [#allocation3], 10
        %s243 = scalar_lea.sflag [#allocation4], 11
        // Predicated region
        $region57: #{tpu_custom_call.1} parent=11 // pred_check
          _
        $region58: #{tpu_custom_call.1} parent=11 // pred_check_branch
          %245 = sbr.rel target = $region60
        $region59: #{tpu_custom_call.1} parent=11 // pred_region
          %246 = sst [smem:[#allocation13]] [#allocation36]
          %247 = sst [smem:[#allocation14]] [#allocation35]
        $region60: #{tpu_custom_call.1} parent=11 // pred_fallthru
          _
        %249 = shalt.err (0)
        %s251 = sshll.u32 %s242, 4
        %s252 = int_to_ptr.vmem [resolvable:$true] %s251
        %254 = dma.hbm_to_vmem [thread:$0]  %s241, 16, %s252, %s243
        %s255 = sld [smem:[#allocation8 + %s158]]
        %s256 = smul.addr %s255, 16
        %s257 = scalar_lea.hbm %s4, %s256
        %s258 = scalar_lea.vmem [#allocation3], 11
        %s259 = scalar_lea.sflag [#allocation4], 12
        // Predicated region
        $region61: #{tpu_custom_call.1} parent=11 // pred_check
          _
        $region62: #{tpu_custom_call.1} parent=11 // pred_check_branch
          %261 = sbr.rel target = $region64
        $region63: #{tpu_custom_call.1} parent=11 // pred_region
          %262 = sst [smem:[#allocation13]] [#allocation38]
          %263 = sst [smem:[#allocation14]] [#allocation37]
        $region64: #{tpu_custom_call.1} parent=11 // pred_fallthru
          _
        %265 = shalt.err (0)
        %s267 = sshll.u32 %s258, 4
        %s268 = int_to_ptr.vmem [resolvable:$true] %s267
        %270 = dma.hbm_to_vmem [thread:$0]  %s257, 16, %s268, %s259
        %s271 = sadd.s32 %s74, 6
        %s272 = sld [smem:[#allocation8 + %s271]]
        %s273 = smul.addr %s272, 16
        %s274 = scalar_lea.hbm %s4, %s273
        %s275 = scalar_lea.vmem [#allocation3], 12
        %s276 = scalar_lea.sflag [#allocation4], 13
        // Predicated region
        $region65: #{tpu_custom_call.1} parent=11 // pred_check
          _
        $region66: #{tpu_custom_call.1} parent=11 // pred_check_branch
          %278 = sbr.rel target = $region68
        $region67: #{tpu_custom_call.1} parent=11 // pred_region
          %279 = sst [smem:[#allocation13]] [#allocation40]
          %280 = sst [smem:[#allocation14]] [#allocation39]
        $region68: #{tpu_custom_call.1} parent=11 // pred_fallthru
          _
        %282 = shalt.err (0)
        %s284 = sshll.u32 %s275, 4
        %s285 = int_to_ptr.vmem [resolvable:$true] %s284
        %287 = dma.hbm_to_vmem [thread:$0]  %s274, 16, %s285, %s276
        %s288 = sadd.s32 %s74, 7
        %s289 = sld [smem:[#allocation8 + %s288]]
        %s290 = smul.addr %s289, 16
        %s291 = scalar_lea.hbm %s4, %s290
        %s292 = scalar_lea.vmem [#allocation3], 13
        %s293 = scalar_lea.sflag [#allocation4], 14
        // Predicated region
        $region69: #{tpu_custom_call.1} parent=11 // pred_check
          _
        $region70: #{tpu_custom_call.1} parent=11 // pred_check_branch
          %295 = sbr.rel target = $region72
        $region71: #{tpu_custom_call.1} parent=11 // pred_region
          %296 = sst [smem:[#allocation13]] [#allocation42]
          %297 = sst [smem:[#allocation14]] [#allocation41]
        $region72: #{tpu_custom_call.1} parent=11 // pred_fallthru
          _
        %299 = shalt.err (0)
        %s301 = sshll.u32 %s292, 4
        %s302 = int_to_ptr.vmem [resolvable:$true] %s301
        %304 = dma.hbm_to_vmem [thread:$0]  %s291, 16, %s302, %s293
        %s305 = sadd.s32 %s74, 8
        %s306 = sld [smem:[#allocation8 + %s305]]
        %s307 = smul.addr %s306, 16
        %s308 = scalar_lea.hbm %s4, %s307
        %s309 = scalar_lea.vmem [#allocation3], 14
        %s310 = scalar_lea.sflag [#allocation4], 15
        // Predicated region
        $region73: #{tpu_custom_call.1} parent=11 // pred_check
          _
        $region74: #{tpu_custom_call.1} parent=11 // pred_check_branch
          %312 = sbr.rel target = $region76
        $region75: #{tpu_custom_call.1} parent=11 // pred_region
          %313 = sst [smem:[#allocation13]] [#allocation44]
          %314 = sst [smem:[#allocation14]] [#allocation43]
        $region76: #{tpu_custom_call.1} parent=11 // pred_fallthru
          _
        %316 = shalt.err (0)
        %s318 = sshll.u32 %s309, 4
        %s319 = int_to_ptr.vmem [resolvable:$true] %s318
        %321 = dma.hbm_to_vmem [thread:$0]  %s308, 16, %s319, %s310
        %s322 = sadd.s32 %s74, 9
        %s323 = sld [smem:[#allocation8 + %s322]]
        %s324 = smul.addr %s323, 16
        %s325 = scalar_lea.hbm %s4, %s324
        %s326 = scalar_lea.vmem [#allocation3], 15
        %s327 = scalar_lea.sflag [#allocation4], 16
        // Predicated region
        $region77: #{tpu_custom_call.1} parent=11 // pred_check
          _
        $region78: #{tpu_custom_call.1} parent=11 // pred_check_branch
          %329 = sbr.rel target = $region80
        $region79: #{tpu_custom_call.1} parent=11 // pred_region
          %330 = sst [smem:[#allocation13]] [#allocation46]
          %331 = sst [smem:[#allocation14]] [#allocation45]
        $region80: #{tpu_custom_call.1} parent=11 // pred_fallthru
          _
        %333 = shalt.err (0)
        %s335 = sshll.u32 %s326, 4
        %s336 = int_to_ptr.vmem [resolvable:$true] %s335
        %338 = dma.hbm_to_vmem [thread:$0]  %s325, 16, %s336, %s327
        %s339 = sadd.s32 %s74, 10
        %s340 = sld [smem:[#allocation8 + %s339]]
        %s341 = smul.addr %s340, 16
        %s342 = scalar_lea.hbm %s4, %s341
        %s343 = scalar_lea.vmem [#allocation3], 16
        %s344 = scalar_lea.sflag [#allocation4], 17
        // Predicated region
        $region81: #{tpu_custom_call.1} parent=11 // pred_check
          _
        $region82: #{tpu_custom_call.1} parent=11 // pred_check_branch
          %346 = sbr.rel target = $region84
        $region83: #{tpu_custom_call.1} parent=11 // pred_region
          %347 = sst [smem:[#allocation13]] [#allocation48]
          %348 = sst [smem:[#allocation14]] [#allocation47]
        $region84: #{tpu_custom_call.1} parent=11 // pred_fallthru
          _
        %350 = shalt.err (0)
        %s352 = sshll.u32 %s343, 4
        %s353 = int_to_ptr.vmem [resolvable:$true] %s352
        %355 = dma.hbm_to_vmem [thread:$0]  %s342, 16, %s353, %s344
        %s356 = sadd.s32 %s74, 11
        %s357 = sld [smem:[#allocation8 + %s356]]
        %s358 = smul.addr %s357, 16
        %s359 = scalar_lea.hbm %s4, %s358
        %s360 = scalar_lea.vmem [#allocation3], 17
        %s361 = scalar_lea.sflag [#allocation4], 18
        // Predicated region
        $region85: #{tpu_custom_call.1} parent=11 // pred_check
          _
        $region86: #{tpu_custom_call.1} parent=11 // pred_check_branch
          %363 = sbr.rel target = $region88
        $region87: #{tpu_custom_call.1} parent=11 // pred_region
          %364 = sst [smem:[#allocation13]] [#allocation50]
          %365 = sst [smem:[#allocation14]] [#allocation49]
        $region88: #{tpu_custom_call.1} parent=11 // pred_fallthru
          _
        %367 = shalt.err (0)
        %s369 = sshll.u32 %s360, 4
        %s370 = int_to_ptr.vmem [resolvable:$true] %s369
        %372 = dma.hbm_to_vmem [thread:$0]  %s359, 16, %s370, %s361
        %s373 = sadd.s32 %s74, 12
        %s374 = sld [smem:[#allocation8 + %s373]]
        %s375 = smul.addr %s374, 16
        %s376 = scalar_lea.hbm %s4, %s375
        %s377 = scalar_lea.vmem [#allocation3], 18
        %s378 = scalar_lea.sflag [#allocation4], 19
        // Predicated region
        $region89: #{tpu_custom_call.1} parent=11 // pred_check
          _
        $region90: #{tpu_custom_call.1} parent=11 // pred_check_branch
          %380 = sbr.rel target = $region92
        $region91: #{tpu_custom_call.1} parent=11 // pred_region
          %381 = sst [smem:[#allocation13]] [#allocation52]
          %382 = sst [smem:[#allocation14]] [#allocation51]
        $region92: #{tpu_custom_call.1} parent=11 // pred_fallthru
          _
        %384 = shalt.err (0)
        %s386 = sshll.u32 %s377, 4
        %s387 = int_to_ptr.vmem [resolvable:$true] %s386
        %389 = dma.hbm_to_vmem [thread:$0]  %s376, 16, %s387, %s378
        %s390 = sadd.s32 %s74, 13
        %s391 = sld [smem:[#allocation8 + %s390]]
        %s392 = smul.addr %s391, 16
        %s393 = scalar_lea.hbm %s4, %s392
        %s394 = scalar_lea.vmem [#allocation3], 19
        %s395 = scalar_lea.sflag [#allocation4], 20
        // Predicated region
        $region93: #{tpu_custom_call.1} parent=11 // pred_check
          _
        $region94: #{tpu_custom_call.1} parent=11 // pred_check_branch
          %397 = sbr.rel target = $region96
        $region95: #{tpu_custom_call.1} parent=11 // pred_region
          %398 = sst [smem:[#allocation13]] [#allocation54]
          %399 = sst [smem:[#allocation14]] [#allocation53]
        $region96: #{tpu_custom_call.1} parent=11 // pred_fallthru
          _
        %401 = shalt.err (0)
        %s403 = sshll.u32 %s394, 4
        %s404 = int_to_ptr.vmem [resolvable:$true] %s403
        %406 = dma.hbm_to_vmem [thread:$0]  %s393, 16, %s404, %s395
        %s407 = sadd.s32 %s74, 14
        %s408 = sld [smem:[#allocation8 + %s407]]
        %s409 = smul.addr %s408, 16
        %s410 = scalar_lea.hbm %s4, %s409
        %s411 = scalar_lea.vmem [#allocation3], 20
        %s412 = scalar_lea.sflag [#allocation4], 21
        // Predicated region
        $region97: #{tpu_custom_call.1} parent=11 // pred_check
          _
        $region98: #{tpu_custom_call.1} parent=11 // pred_check_branch
          %414 = sbr.rel target = $region100
        $region99: #{tpu_custom_call.1} parent=11 // pred_region
          %415 = sst [smem:[#allocation13]] [#allocation56]
          %416 = sst [smem:[#allocation14]] [#allocation55]
        $region100: #{tpu_custom_call.1} parent=11 // pred_fallthru
          _
        %418 = shalt.err (0)
        %s420 = sshll.u32 %s411, 4
        %s421 = int_to_ptr.vmem [resolvable:$true] %s420
        %423 = dma.hbm_to_vmem [thread:$0]  %s410, 16, %s421, %s412
        %s424 = sadd.s32 %s74, 15
        %s425 = sld [smem:[#allocation8 + %s424]]
        %s426 = smul.addr %s425, 16
        %s427 = scalar_lea.hbm %s4, %s426
        %s428 = scalar_lea.vmem [#allocation3], 21
        %s429 = scalar_lea.sflag [#allocation4], 22
        // Predicated region
        $region101: #{tpu_custom_call.1} parent=11 // pred_check
          _
        $region102: #{tpu_custom_call.1} parent=11 // pred_check_branch
          %431 = sbr.rel target = $region104
        $region103: #{tpu_custom_call.1} parent=11 // pred_region
          %432 = sst [smem:[#allocation13]] [#allocation58]
          %433 = sst [smem:[#allocation14]] [#allocation57]
        $region104: #{tpu_custom_call.1} parent=11 // pred_fallthru
          _
        %435 = shalt.err (0)
        %s437 = sshll.u32 %s428, 4
        %s438 = int_to_ptr.vmem [resolvable:$true] %s437
        %440 = dma.hbm_to_vmem [thread:$0]  %s427, 16, %s438, %s429
        %s441 = sadd.s32 %s74, 16
        %s442 = sld [smem:[#allocation8 + %s441]]
        %s443 = smul.addr %s442, 16
        %s444 = scalar_lea.hbm %s4, %s443
        %s445 = scalar_lea.vmem [#allocation3], 22
        %s446 = scalar_lea.sflag [#allocation4], 23
        // Predicated region
        $region105: #{tpu_custom_call.1} parent=11 // pred_check
          _
        $region106: #{tpu_custom_call.1} parent=11 // pred_check_branch
          %448 = sbr.rel target = $region108
        $region107: #{tpu_custom_call.1} parent=11 // pred_region
          %449 = sst [smem:[#allocation13]] [#allocation60]
          %450 = sst [smem:[#allocation14]] [#allocation59]
        $region108: #{tpu_custom_call.1} parent=11 // pred_fallthru
          _
        %452 = shalt.err (0)
        %s454 = sshll.u32 %s445, 4
        %s455 = int_to_ptr.vmem [resolvable:$true] %s454
        %457 = dma.hbm_to_vmem [thread:$0]  %s444, 16, %s455, %s446
        %s458 = sadd.s32 %s74, 17
        %s459 = sld [smem:[#allocation8 + %s458]]
        %s460 = smul.addr %s459, 16
        %s461 = scalar_lea.hbm %s4, %s460
        %s462 = scalar_lea.vmem [#allocation3], 23
        %s463 = scalar_lea.sflag [#allocation4], 24
        // Predicated region
        $region109: #{tpu_custom_call.1} parent=11 // pred_check
          _
        $region110: #{tpu_custom_call.1} parent=11 // pred_check_branch
          %465 = sbr.rel target = $region112
        $region111: #{tpu_custom_call.1} parent=11 // pred_region
          %466 = sst [smem:[#allocation13]] [#allocation62]
          %467 = sst [smem:[#allocation14]] [#allocation61]
        $region112: #{tpu_custom_call.1} parent=11 // pred_fallthru
          _
        %469 = shalt.err (0)
        %s471 = sshll.u32 %s462, 4
        %s472 = int_to_ptr.vmem [resolvable:$true] %s471
        %474 = dma.hbm_to_vmem [thread:$0]  %s461, 16, %s472, %s463
        %s475 = sadd.s32 %s74, 18
        %s476 = sld [smem:[#allocation8 + %s475]]
        %s477 = smul.addr %s476, 16
        %s478 = scalar_lea.hbm %s4, %s477
        %s479 = scalar_lea.vmem [#allocation3], 24
        %s480 = scalar_lea.sflag [#allocation4], 25
        // Predicated region
        $region113: #{tpu_custom_call.1} parent=11 // pred_check
          _
        $region114: #{tpu_custom_call.1} parent=11 // pred_check_branch
          %482 = sbr.rel target = $region116
        $region115: #{tpu_custom_call.1} parent=11 // pred_region
          %483 = sst [smem:[#allocation13]] [#allocation64]
          %484 = sst [smem:[#allocation14]] [#allocation63]
        $region116: #{tpu_custom_call.1} parent=11 // pred_fallthru
          _
        %486 = shalt.err (0)
        %s488 = sshll.u32 %s479, 4
        %s489 = int_to_ptr.vmem [resolvable:$true] %s488
        %491 = dma.hbm_to_vmem [thread:$0]  %s478, 16, %s489, %s480
        %s492 = sadd.s32 %s74, 19
        %s493 = sld [smem:[#allocation8 + %s492]]
        %s494 = smul.addr %s493, 16
        %s495 = scalar_lea.hbm %s4, %s494
        %s496 = scalar_lea.vmem [#allocation3], 25
        %s497 = scalar_lea.sflag [#allocation4], 26
        // Predicated region
        $region117: #{tpu_custom_call.1} parent=11 // pred_check
          _
        $region118: #{tpu_custom_call.1} parent=11 // pred_check_branch
          %499 = sbr.rel target = $region120
        $region119: #{tpu_custom_call.1} parent=11 // pred_region
          %500 = sst [smem:[#allocation13]] [#allocation66]
          %501 = sst [smem:[#allocation14]] [#allocation65]
        $region120: #{tpu_custom_call.1} parent=11 // pred_fallthru
          _
        %503 = shalt.err (0)
        %s505 = sshll.u32 %s496, 4
        %s506 = int_to_ptr.vmem [resolvable:$true] %s505
        %508 = dma.hbm_to_vmem [thread:$0]  %s495, 16, %s506, %s497
        %s509 = sadd.s32 %s74, 20
        %s510 = sld [smem:[#allocation8 + %s509]]
        %s511 = smul.addr %s510, 16
        %s512 = scalar_lea.hbm %s4, %s511
        %s513 = scalar_lea.vmem [#allocation3], 26
        %s514 = scalar_lea.sflag [#allocation4], 27
        // Predicated region
        $region121: #{tpu_custom_call.1} parent=11 // pred_check
          _
        $region122: #{tpu_custom_call.1} parent=11 // pred_check_branch
          %516 = sbr.rel target = $region124
        $region123: #{tpu_custom_call.1} parent=11 // pred_region
          %517 = sst [smem:[#allocation13]] [#allocation68]
          %518 = sst [smem:[#allocation14]] [#allocation67]
        $region124: #{tpu_custom_call.1} parent=11 // pred_fallthru
          _
        %520 = shalt.err (0)
        %s522 = sshll.u32 %s513, 4
        %s523 = int_to_ptr.vmem [resolvable:$true] %s522
        %525 = dma.hbm_to_vmem [thread:$0]  %s512, 16, %s523, %s514
        %s526 = sadd.s32 %s74, 21
        %s527 = sld [smem:[#allocation8 + %s526]]
        %s528 = smul.addr %s527, 16
        %s529 = scalar_lea.hbm %s4, %s528
        %s530 = scalar_lea.vmem [#allocation3], 27
        %s531 = scalar_lea.sflag [#allocation4], 28
        // Predicated region
        $region125: #{tpu_custom_call.1} parent=11 // pred_check
          _
        $region126: #{tpu_custom_call.1} parent=11 // pred_check_branch
          %533 = sbr.rel target = $region128
        $region127: #{tpu_custom_call.1} parent=11 // pred_region
          %534 = sst [smem:[#allocation13]] [#allocation70]
          %535 = sst [smem:[#allocation14]] [#allocation69]
        $region128: #{tpu_custom_call.1} parent=11 // pred_fallthru
          _
        %537 = shalt.err (0)
        %s539 = sshll.u32 %s530, 4
        %s540 = int_to_ptr.vmem [resolvable:$true] %s539
        %542 = dma.hbm_to_vmem [thread:$0]  %s529, 16, %s540, %s531
        %s543 = sadd.s32 %s74, 22
        %s544 = sld [smem:[#allocation8 + %s543]]
        %s545 = smul.addr %s544, 16
        %s546 = scalar_lea.hbm %s4, %s545
        %s547 = scalar_lea.vmem [#allocation3], 28
        %s548 = scalar_lea.sflag [#allocation4], 29
        // Predicated region
        $region129: #{tpu_custom_call.1} parent=11 // pred_check
          _
        $region130: #{tpu_custom_call.1} parent=11 // pred_check_branch
          %550 = sbr.rel target = $region132
        $region131: #{tpu_custom_call.1} parent=11 // pred_region
          %551 = sst [smem:[#allocation13]] [#allocation72]
          %552 = sst [smem:[#allocation14]] [#allocation71]
        $region132: #{tpu_custom_call.1} parent=11 // pred_fallthru
          _
        %554 = shalt.err (0)
        %s556 = sshll.u32 %s547, 4
        %s557 = int_to_ptr.vmem [resolvable:$true] %s556
        %559 = dma.hbm_to_vmem [thread:$0]  %s546, 16, %s557, %s548
        %s560 = sadd.s32 %s74, 23
        %s561 = sld [smem:[#allocation8 + %s560]]
        %s562 = smul.addr %s561, 16
        %s563 = scalar_lea.hbm %s4, %s562
        %s564 = scalar_lea.vmem [#allocation3], 29
        %s565 = scalar_lea.sflag [#allocation4], 30
        // Predicated region
        $region133: #{tpu_custom_call.1} parent=11 // pred_check
          _
        $region134: #{tpu_custom_call.1} parent=11 // pred_check_branch
          %567 = sbr.rel target = $region136
        $region135: #{tpu_custom_call.1} parent=11 // pred_region
          %568 = sst [smem:[#allocation13]] [#allocation74]
          %569 = sst [smem:[#allocation14]] [#allocation73]
        $region136: #{tpu_custom_call.1} parent=11 // pred_fallthru
          _
        %571 = shalt.err (0)
        %s573 = sshll.u32 %s564, 4
        %s574 = int_to_ptr.vmem [resolvable:$true] %s573
        %576 = dma.hbm_to_vmem [thread:$0]  %s563, 16, %s574, %s565
        %s577 = sadd.s32 %s74, 24
        %s578 = sld [smem:[#allocation8 + %s577]]
        %s579 = smul.addr %s578, 16
        %s580 = scalar_lea.hbm %s4, %s579
        %s581 = scalar_lea.vmem [#allocation3], 30
        %s582 = scalar_lea.sflag [#allocation4], 31
        // Predicated region
        $region137: #{tpu_custom_call.1} parent=11 // pred_check
          _
        $region138: #{tpu_custom_call.1} parent=11 // pred_check_branch
          %584 = sbr.rel target = $region140
        $region139: #{tpu_custom_call.1} parent=11 // pred_region
          %585 = sst [smem:[#allocation13]] [#allocation76]
          %586 = sst [smem:[#allocation14]] [#allocation75]
        $region140: #{tpu_custom_call.1} parent=11 // pred_fallthru
          _
        %588 = shalt.err (0)
        %s590 = sshll.u32 %s581, 4
        %s591 = int_to_ptr.vmem [resolvable:$true] %s590
        %593 = dma.hbm_to_vmem [thread:$0]  %s580, 16, %s591, %s582
        %s594 = sadd.s32 %s74, 25
        %s595 = sld [smem:[#allocation8 + %s594]]
        %s596 = smul.addr %s595, 16
        %s597 = scalar_lea.hbm %s4, %s596
        %s598 = scalar_lea.vmem [#allocation3], 31
        %s599 = scalar_lea.sflag [#allocation4], 32
        // Predicated region
        $region141: #{tpu_custom_call.1} parent=11 // pred_check
          _
        $region142: #{tpu_custom_call.1} parent=11 // pred_check_branch
          %601 = sbr.rel target = $region144
        $region143: #{tpu_custom_call.1} parent=11 // pred_region
          %602 = sst [smem:[#allocation13]] [#allocation78]
          %603 = sst [smem:[#allocation14]] [#allocation77]
        $region144: #{tpu_custom_call.1} parent=11 // pred_fallthru
          _
        %605 = shalt.err (0)
        %s607 = sshll.u32 %s598, 4
        %s608 = int_to_ptr.vmem [resolvable:$true] %s607
        %610 = dma.hbm_to_vmem [thread:$0]  %s597, 16, %s608, %s599
        %s611 = sadd.s32 %s74, 26
        %s612 = sld [smem:[#allocation8 + %s611]]
        %s613 = smul.addr %s612, 16
        %s614 = scalar_lea.hbm %s4, %s613
        %s615 = scalar_lea.vmem [#allocation3], 32
        %s616 = scalar_lea.sflag [#allocation4], 33
        // Predicated region
        $region145: #{tpu_custom_call.1} parent=11 // pred_check
          _
        $region146: #{tpu_custom_call.1} parent=11 // pred_check_branch
          %618 = sbr.rel target = $region148
        $region147: #{tpu_custom_call.1} parent=11 // pred_region
          %619 = sst [smem:[#allocation13]] [#allocation80]
          %620 = sst [smem:[#allocation14]] [#allocation79]
        $region148: #{tpu_custom_call.1} parent=11 // pred_fallthru
          _
        %622 = shalt.err (0)
        %s624 = sshll.u32 %s615, 4
        %s625 = int_to_ptr.vmem [resolvable:$true] %s624
        %627 = dma.hbm_to_vmem [thread:$0]  %s614, 16, %s625, %s616
        %s628 = sadd.s32 %s74, 27
        %s629 = sld [smem:[#allocation8 + %s628]]
        %s630 = smul.addr %s629, 16
        %s631 = scalar_lea.hbm %s4, %s630
        %s632 = scalar_lea.vmem [#allocation3], 33
        %s633 = scalar_lea.sflag [#allocation4], 34
        // Predicated region
        $region149: #{tpu_custom_call.1} parent=11 // pred_check
          _
        $region150: #{tpu_custom_call.1} parent=11 // pred_check_branch
          %635 = sbr.rel target = $region152
        $region151: #{tpu_custom_call.1} parent=11 // pred_region
          %636 = sst [smem:[#allocation13]] [#allocation82]
          %637 = sst [smem:[#allocation14]] [#allocation81]
        $region152: #{tpu_custom_call.1} parent=11 // pred_fallthru
          _
        %639 = shalt.err (0)
        %s641 = sshll.u32 %s632, 4
        %s642 = int_to_ptr.vmem [resolvable:$true] %s641
        %644 = dma.hbm_to_vmem [thread:$0]  %s631, 16, %s642, %s633
        %s645 = sadd.s32 %s74, 28
        %s646 = sld [smem:[#allocation8 + %s645]]
        %s647 = smul.addr %s646, 16
        %s648 = scalar_lea.hbm %s4, %s647
        %s649 = scalar_lea.vmem [#allocation3], 34
        %s650 = scalar_lea.sflag [#allocation4], 35
        // Predicated region
        $region153: #{tpu_custom_call.1} parent=11 // pred_check
          _
        $region154: #{tpu_custom_call.1} parent=11 // pred_check_branch
          %652 = sbr.rel target = $region156
        $region155: #{tpu_custom_call.1} parent=11 // pred_region
          %653 = sst [smem:[#allocation13]] [#allocation84]
          %654 = sst [smem:[#allocation14]] [#allocation83]
        $region156: #{tpu_custom_call.1} parent=11 // pred_fallthru
          _
        %656 = shalt.err (0)
        %s658 = sshll.u32 %s649, 4
        %s659 = int_to_ptr.vmem [resolvable:$true] %s658
        %661 = dma.hbm_to_vmem [thread:$0]  %s648, 16, %s659, %s650
        %s662 = sadd.s32 %s74, 29
        %s663 = sld [smem:[#allocation8 + %s662]]
        %s664 = smul.addr %s663, 16
        %s665 = scalar_lea.hbm %s4, %s664
        %s666 = scalar_lea.vmem [#allocation3], 35
        %s667 = scalar_lea.sflag [#allocation4], 36
        // Predicated region
        $region157: #{tpu_custom_call.1} parent=11 // pred_check
          _
        $region158: #{tpu_custom_call.1} parent=11 // pred_check_branch
          %669 = sbr.rel target = $region160
        $region159: #{tpu_custom_call.1} parent=11 // pred_region
          %670 = sst [smem:[#allocation13]] [#allocation86]
          %671 = sst [smem:[#allocation14]] [#allocation85]
        $region160: #{tpu_custom_call.1} parent=11 // pred_fallthru
          _
        %673 = shalt.err (0)
        %s675 = sshll.u32 %s666, 4
        %s676 = int_to_ptr.vmem [resolvable:$true] %s675
        %678 = dma.hbm_to_vmem [thread:$0]  %s665, 16, %s676, %s667
        %s679 = smul.u32 1, 1
        %s680 = sshll.u32 %s679, 4
        %681 = dma.done [#allocation4], %s680
        %s682 = sshll.u32 %s679, 4
        %683 = dma.done %s78, %s682
        %s684 = sshll.u32 %s679, 4
        %685 = dma.done %s95, %s684
        %s686 = sshll.u32 %s679, 4
        %687 = dma.done %s112, %s686
        %s688 = sshll.u32 %s679, 4
        %689 = dma.done %s129, %s688
        %s690 = sshll.u32 %s679, 4
        %691 = dma.done %s146, %s690
        %s692 = sshll.u32 %s679, 4
        %693 = dma.done %s163, %s692
        %s694 = sshll.u32 %s679, 4
        %695 = dma.done %s179, %s694
        %s696 = sshll.u32 %s679, 4
        %697 = dma.done %s195, %s696
        %s698 = sshll.u32 %s679, 4
        %699 = dma.done %s211, %s698
        %s700 = sshll.u32 %s679, 4
        %701 = dma.done %s227, %s700
        %s702 = sshll.u32 %s679, 4
        %703 = dma.done %s243, %s702
        %s704 = sshll.u32 %s679, 4
        %705 = dma.done %s259, %s704
        %s706 = sshll.u32 %s679, 4
        %707 = dma.done %s276, %s706
        %s708 = sshll.u32 %s679, 4
        %709 = dma.done %s293, %s708
        %s710 = sshll.u32 %s679, 4
        %711 = dma.done %s310, %s710
        %s712 = sshll.u32 %s679, 4
        %713 = dma.done %s327, %s712
        %s714 = sshll.u32 %s679, 4
        %715 = dma.done %s344, %s714
        %s716 = sshll.u32 %s679, 4
        %717 = dma.done %s361, %s716
        %s718 = sshll.u32 %s679, 4
        %719 = dma.done %s378, %s718
        %s720 = sshll.u32 %s679, 4
        %721 = dma.done %s395, %s720
        %s722 = sshll.u32 %s679, 4
        %723 = dma.done %s412, %s722
        %s724 = sshll.u32 %s679, 4
        %725 = dma.done %s429, %s724
        %s726 = sshll.u32 %s679, 4
        %727 = dma.done %s446, %s726
        %s728 = sshll.u32 %s679, 4
        %729 = dma.done %s463, %s728
        %s730 = sshll.u32 %s679, 4
        %731 = dma.done %s480, %s730
        %s732 = sshll.u32 %s679, 4
        %733 = dma.done %s497, %s732
        %s734 = sshll.u32 %s679, 4
        %735 = dma.done %s514, %s734
        %s736 = sshll.u32 %s679, 4
        %737 = dma.done %s531, %s736
        %s738 = sshll.u32 %s679, 4
        %739 = dma.done %s548, %s738
        %s740 = sshll.u32 %s679, 4
        %741 = dma.done %s565, %s740
        %s742 = sshll.u32 %s679, 4
        %743 = dma.done %s582, %s742
        %s744 = sshll.u32 %s679, 4
        %745 = dma.done %s599, %s744
        %s746 = sshll.u32 %s679, 4
        %747 = dma.done %s616, %s746
        %s748 = sshll.u32 %s679, 4
        %749 = dma.done %s633, %s748
        %s750 = sshll.u32 %s679, 4
        %751 = dma.done %s650, %s750
        %s752 = sshll.u32 %s679, 4
        %753 = dma.done %s667, %s752
        %v754 = vld [vmem:[#allocation2] sm:$0x1]
        %v755 = vld [vmem:[#allocation3] sm:$0xff]
        %v756 = vld [vmem:[#allocation3 + $0x8] sm:$0xff]
        %v757 = vld [vmem:[#allocation3 + $0x10] sm:$0xff]
        %v758 = vld [vmem:[#allocation3 + $0x18] sm:$0xff]
        %v759 = vld [vmem:[#allocation3 + $0x20] sm:$0xf]
        %v761 = vlaneseq
        %v762 = vshrl.u32 %v761, 7
        %v763 = vsub.s32 0, %v762
        %v764 = vrot.slane %v754, %v763
        %v766 = vmul.f32 %v755, %v764
        %v767 = vmul.f32 %v756, %v764
        %v768 = vmul.f32 %v757, %v764
        %v769 = vmul.f32 %v758, %v764
        %v770 = vmul.f32 %v759, %v764
        %771 = vadd.xlane.f32.xlu0 %v766
        %v772 = vpop.xlane.xlu0 %771
        %773 = vadd.xlane.f32.xlu0 %v767
        %v774 = vpop.xlane.xlu0 %773
        %775 = vadd.xlane.f32.xlu0 %v768
        %v776 = vpop.xlane.xlu0 %775
        %777 = vadd.xlane.f32.xlu0 %v769
        %v778 = vpop.xlane.xlu0 %777
        %vm779 = vcmask 1043456
        %v780 = vsel %vm779, %v770, 0.0
        %781 = vadd.xlane.f32.xlu0 %v780
        %v782 = vpop.xlane.xlu0 %781
        %v783 = vlaneseq
        %v784 = vshrl.u32 %v783, 7
        %v785 = vadd.s32 %v784, 8
        %v786 = vadd.s32 %v784, 16
        %v787 = vadd.s32 %v784, 24
        %v788 = vadd.s32 %v784, 32
        %vm789 = vcmp.lt.s32.totalorder %v784, 6
        %vm790 = vcmp.lt.s32.totalorder %v785, 6
        %vm791 = vcmp.lt.s32.totalorder %v786, 6
        %vm792 = vcmp.lt.s32.totalorder %v787, 6
        %vm793 = vcmp.lt.s32.totalorder %v788, 6
        %v794 = vsel %vm789, 1.0, -1.0
        %v795 = vsel %vm790, 1.0, -1.0
        %v796 = vsel %vm791, 1.0, -1.0
        %v797 = vsel %vm792, 1.0, -1.0
        %v798 = vsel %vm793, 1.0, -1.0
        %v799 = vmul.f32 %v794, %v772
        %v800 = vmul.f32 %v795, %v774
        %v801 = vmul.f32 %v796, %v776
        %v802 = vmul.f32 %v797, %v778
        %v803 = vmul.f32 %v798, %v782
        %v804 = vmin.f32 %v799, 0.0
        %v805 = vmin.f32 %v800, 0.0
        %v806 = vmin.f32 %v801, 0.0
        %v807 = vmin.f32 %v802, 0.0
        %v808 = vmin.f32 %v803, 0.0
        %v809 = vand.u32 2147483647, %v799
        %v810 = vand.u32 2147483647, %v800
        %v811 = vand.u32 2147483647, %v801
        %v812 = vand.u32 2147483647, %v802
        %v813 = vand.u32 2147483647, %v803
        %v814 = vsub.f32 0.0, %v809
        %v815 = vsub.f32 0.0, %v810
        %v816 = vsub.f32 0.0, %v811
        %v817 = vsub.f32 0.0, %v812
        %v818 = vsub.f32 0.0, %v813
        %v819 = vmul.f32 %v814, 1.442695
        %v820 = vpow.pop %v819
        %v821 = vmul.f32 %v815, 1.442695
        %v822 = vpow.pop %v821
        %v823 = vmul.f32 %v816, 1.442695
        %v824 = vpow.pop %v823
        %v825 = vmul.f32 %v817, 1.442695
        %v826 = vpow.pop %v825
        %v827 = vmul.f32 %v818, 1.442695
        %v828 = vpow.pop %v827
        %v829 = vadd.f32 %v820, 1.0
        %v830 = vlog2.pop %v829
        %v831 = vmul.f32 %v830, 0.6931472
        %v832 = vmul.f32 -0.5, %v820
        %v833 = vadd.f32 %v832, 1.0
        %v834 = vmul.f32 %v833, %v820
        %v835 = vand.u32 2147483647, %v820
        %vm836 = vcmp.lt.f32.partialorder %v835, 0.0004427343
        %v837 = vsel %vm836, %v834, %v831
        %v838 = vadd.f32 %v822, 1.0
        %v839 = vlog2.pop %v838
        %v840 = vmul.f32 %v839, 0.6931472
        %v841 = vmul.f32 -0.5, %v822
        %v842 = vadd.f32 %v841, 1.0
        %v843 = vmul.f32 %v842, %v822
        %v844 = vand.u32 2147483647, %v822
        %vm845 = vcmp.lt.f32.partialorder %v844, 0.0004427343
        %v846 = vsel %vm845, %v843, %v840
        %v847 = vadd.f32 %v824, 1.0
        %v848 = vlog2.pop %v847
        %v849 = vmul.f32 %v848, 0.6931472
        %v850 = vmul.f32 -0.5, %v824
        %v851 = vadd.f32 %v850, 1.0
        %v852 = vmul.f32 %v851, %v824
        %v853 = vand.u32 2147483647, %v824
        %vm854 = vcmp.lt.f32.partialorder %v853, 0.0004427343
        %v855 = vsel %vm854, %v852, %v849
        %v856 = vadd.f32 %v826, 1.0
        %v857 = vlog2.pop %v856
        %v858 = vmul.f32 %v857, 0.6931472
        %v859 = vmul.f32 -0.5, %v826
        %v860 = vadd.f32 %v859, 1.0
        %v861 = vmul.f32 %v860, %v826
        %v862 = vand.u32 2147483647, %v826
        %vm863 = vcmp.lt.f32.partialorder %v862, 0.0004427343
        %v864 = vsel %vm863, %v861, %v858
        %v865 = vadd.f32 %v828, 1.0
        %v866 = vlog2.pop %v865
        %v867 = vmul.f32 %v866, 0.6931472
        %v868 = vmul.f32 -0.5, %v828
        %v869 = vadd.f32 %v868, 1.0
        %v870 = vmul.f32 %v869, %v828
        %v871 = vand.u32 2147483647, %v828
        %vm872 = vcmp.lt.f32.partialorder %v871, 0.0004427343
        %v873 = vsel %vm872, %v870, %v867
        %v874 = vsub.f32 %v804, %v837
        %v875 = vsub.f32 %v805, %v846
        %v876 = vsub.f32 %v806, %v855
        %v877 = vsub.f32 %v807, %v864
        %v878 = vsub.f32 %v808, %v873
        %v879 = vadd.f32 %v874, %v875
        %v880 = vadd.f32 %v879, %v876
        %v881 = vadd.f32 %v880, %v877
        %v882 = vsel %vm779, %v878, 0.0
        %v883 = vadd.f32 %v881, %v882
        %v884 = vrot.slane %v883, 4
        %v885 = vadd.f32 %v883, %v884
        %v886 = vrot.slane %v885, 2
        %v887 = vadd.f32 %v885, %v886
        %v888 = vrot.slane %v887, 1
        %v889 = vadd.f32 %v887, %v888
        %v890 = vsub.f32 0.0, %v889
        %891 = vst [vmem:[%s59] sm:$0x1] %v890
        %s892 = sand.u32 %s33, 1
        %s893 = scalar_lea.sflag [#allocation10], %s892
        %s894 = sand.u32 %s33, 1
        %s895 = scalar_lea.vmem [#allocation9], %s894
        // Predicated region
        $region161: #{tpu_custom_call.1} parent=11 // pred_check
          %p896 = pneg %p39
        $region162: #{tpu_custom_call.1} parent=11 // pred_check_branch
          %898 = sbr.rel (%p896) target = $region164
        $region163: #{tpu_custom_call.1} parent=11 // pred_region
          %s900 = ssub.s32 16, 16
          %901 = vsyncadd %s893, %s900
          %s902 = smul.addr %s24, 16
          %s903 = scalar_lea.hbm %s5, %s902
          %s905 = sshll.u32 %s895, 4
          %s906 = int_to_ptr.vmem [resolvable:$true] %s905
          %908 = dma.vmem_to_hbm [thread:$0]  %s906, 16, %s903, %s893
        $region164: #{tpu_custom_call.1} parent=11 // pred_fallthru
          _
      $region12: #{tpu_custom_call.1} parent=5 // pred_fallthru
        _
      %p909 = scmp.le.s32.totalorder 1, %s24
      // Predicated region
      $region165: #{tpu_custom_call.1} parent=5 // pred_check
        %p910 = pneg %p909
      $region166: #{tpu_custom_call.1} parent=5 // pred_check_branch
        %912 = sbr.rel (%p910) target = $region168
      $region167: #{tpu_custom_call.1} parent=5 // pred_region
        %s913 = ssub.s32 %s24, 1
        // Predicated region
        $region169: #{tpu_custom_call.1} parent=167 // pred_check
          %p914 = pneg %p45
        $region170: #{tpu_custom_call.1} parent=167 // pred_check_branch
          %916 = sbr.rel (%p914) target = $region172
        $region171: #{tpu_custom_call.1} parent=167 // pred_region
          %s917 = sand.u32 %s36, 1
          %s918 = scalar_lea.sflag [#allocation10], %s917
          %s919 = sand.u32 %s36, 1
          %s920 = scalar_lea.vmem [#allocation9], %s919
          %921 = dma.done %s918, 16
        $region172: #{tpu_custom_call.1} parent=167 // pred_fallthru
          _
      $region168: #{tpu_custom_call.1} parent=5 // pred_fallthru
        _
    $region6: #{tpu_custom_call.1} parent=1 // loop_footer
      %s28 = sadd.s32 1, %s24
    $region7: #{tpu_custom_call.1} parent=1 // loop_footer_branch
      %23 = sbr.rel target = $region3
    $region8: #{tpu_custom_call.1} parent=1 // loop_exit
      _
    %922 = vsyncpa [#allocation10], 1
    %s923 = scalar_lea.sflag [#allocation10], 1
    %924 = vsyncpa %s923, 1
  %925 = vsyncmov [#allocation4]
  %s926 = vpop.sfrf %925
  %p927 = scmp.eq.s32.totalorder %s926, 0
  %p928 = pneg %p927
  %930 = shalt.err (%p928)
  %s931 = scalar_lea.sflag [#allocation4], 1
  %932 = vsyncmov %s931
  %s933 = vpop.sfrf %932
  %p934 = scmp.eq.s32.totalorder %s933, 0
  %p935 = pneg %p934
  %937 = shalt.err (%p935)
  %s938 = scalar_lea.sflag [#allocation4], 2
  %939 = vsyncmov %s938
  %s940 = vpop.sfrf %939
  %p941 = scmp.eq.s32.totalorder %s940, 0
  %p942 = pneg %p941
  %944 = shalt.err (%p942)
  %s945 = scalar_lea.sflag [#allocation4], 3
  %946 = vsyncmov %s945
  %s947 = vpop.sfrf %946
  %p948 = scmp.eq.s32.totalorder %s947, 0
  %p949 = pneg %p948
  %951 = shalt.err (%p949)
  %s952 = scalar_lea.sflag [#allocation4], 4
  %953 = vsyncmov %s952
  %s954 = vpop.sfrf %953
  %p955 = scmp.eq.s32.totalorder %s954, 0
  %p956 = pneg %p955
  %958 = shalt.err (%p956)
  %s959 = scalar_lea.sflag [#allocation4], 5
  %960 = vsyncmov %s959
  %s961 = vpop.sfrf %960
  %p962 = scmp.eq.s32.totalorder %s961, 0
  %p963 = pneg %p962
  %965 = shalt.err (%p963)
  %s966 = scalar_lea.sflag [#allocation4], 6
  %967 = vsyncmov %s966
  %s968 = vpop.sfrf %967
  %p969 = scmp.eq.s32.totalorder %s968, 0
  %p970 = pneg %p969
  %972 = shalt.err (%p970)
  %s973 = scalar_lea.sflag [#allocation4], 7
  %974 = vsyncmov %s973
  %s975 = vpop.sfrf %974
  %p976 = scmp.eq.s32.totalorder %s975, 0
  %p977 = pneg %p976
  %979 = shalt.err (%p977)
  %s980 = scalar_lea.sflag [#allocation4], 8
  %981 = vsyncmov %s980
  %s982 = vpop.sfrf %981
  %p983 = scmp.eq.s32.totalorder %s982, 0
  %p984 = pneg %p983
  %986 = shalt.err (%p984)
  %s987 = scalar_lea.sflag [#allocation4], 9
  %988 = vsyncmov %s987
  %s989 = vpop.sfrf %988
  %p990 = scmp.eq.s32.totalorder %s989, 0
  %p991 = pneg %p990
  %993 = shalt.err (%p991)
  %s994 = scalar_lea.sflag [#allocation4], 10
  %995 = vsyncmov %s994
  %s996 = vpop.sfrf %995
  %p997 = scmp.eq.s32.totalorder %s996, 0
  %p998 = pneg %p997
  %1000 = shalt.err (%p998)
  %s1001 = scalar_lea.sflag [#allocation4], 11
  %1002 = vsyncmov %s1001
  %s1003 = vpop.sfrf %1002
  %p1004 = scmp.eq.s32.totalorder %s1003, 0
  %p1005 = pneg %p1004
  %1007 = shalt.err (%p1005)
  %s1008 = scalar_lea.sflag [#allocation4], 12
  %1009 = vsyncmov %s1008
  %s1010 = vpop.sfrf %1009
  %p1011 = scmp.eq.s32.totalorder %s1010, 0
  %p1012 = pneg %p1011
  %1014 = shalt.err (%p1012)
  %s1015 = scalar_lea.sflag [#allocation4], 13
  %1016 = vsyncmov %s1015
  %s1017 = vpop.sfrf %1016
  %p1018 = scmp.eq.s32.totalorder %s1017, 0
  %p1019 = pneg %p1018
  %1021 = shalt.err (%p1019)
  %s1022 = scalar_lea.sflag [#allocation4], 14
  %1023 = vsyncmov %s1022
  %s1024 = vpop.sfrf %1023
  %p1025 = scmp.eq.s32.totalorder %s1024, 0
  %p1026 = pneg %p1025
  %1028 = shalt.err (%p1026)
  %s1029 = scalar_lea.sflag [#allocation4], 15
  %1030 = vsyncmov %s1029
  %s1031 = vpop.sfrf %1030
  %p1032 = scmp.eq.s32.totalorder %s1031, 0
  %p1033 = pneg %p1032
  %1035 = shalt.err (%p1033)
  %s1036 = scalar_lea.sflag [#allocation4], 16
  %1037 = vsyncmov %s1036
  %s1038 = vpop.sfrf %1037
  %p1039 = scmp.eq.s32.totalorder %s1038, 0
  %p1040 = pneg %p1039
  %1042 = shalt.err (%p1040)
  %s1043 = scalar_lea.sflag [#allocation4], 17
  %1044 = vsyncmov %s1043
  %s1045 = vpop.sfrf %1044
  %p1046 = scmp.eq.s32.totalorder %s1045, 0
  %p1047 = pneg %p1046
  %1049 = shalt.err (%p1047)
  %s1050 = scalar_lea.sflag [#allocation4], 18
  %1051 = vsyncmov %s1050
  %s1052 = vpop.sfrf %1051
  %p1053 = scmp.eq.s32.totalorder %s1052, 0
  %p1054 = pneg %p1053
  %1056 = shalt.err (%p1054)
  %s1057 = scalar_lea.sflag [#allocation4], 19
  %1058 = vsyncmov %s1057
  %s1059 = vpop.sfrf %1058
  %p1060 = scmp.eq.s32.totalorder %s1059, 0
  %p1061 = pneg %p1060
  %1063 = shalt.err (%p1061)
  %s1064 = scalar_lea.sflag [#allocation4], 20
  %1065 = vsyncmov %s1064
  %s1066 = vpop.sfrf %1065
  %p1067 = scmp.eq.s32.totalorder %s1066, 0
  %p1068 = pneg %p1067
  %1070 = shalt.err (%p1068)
  %s1071 = scalar_lea.sflag [#allocation4], 21
  %1072 = vsyncmov %s1071
  %s1073 = vpop.sfrf %1072
  %p1074 = scmp.eq.s32.totalorder %s1073, 0
  %p1075 = pneg %p1074
  %1077 = shalt.err (%p1075)
  %s1078 = scalar_lea.sflag [#allocation4], 22
  %1079 = vsyncmov %s1078
  %s1080 = vpop.sfrf %1079
  %p1081 = scmp.eq.s32.totalorder %s1080, 0
  %p1082 = pneg %p1081
  %1084 = shalt.err (%p1082)
  %s1085 = scalar_lea.sflag [#allocation4], 23
  %1086 = vsyncmov %s1085
  %s1087 = vpop.sfrf %1086
  %p1088 = scmp.eq.s32.totalorder %s1087, 0
  %p1089 = pneg %p1088
  %1091 = shalt.err (%p1089)
  %s1092 = scalar_lea.sflag [#allocation4], 24
  %1093 = vsyncmov %s1092
  %s1094 = vpop.sfrf %1093
  %p1095 = scmp.eq.s32.totalorder %s1094, 0
  %p1096 = pneg %p1095
  %1098 = shalt.err (%p1096)
  %s1099 = scalar_lea.sflag [#allocation4], 25
  %1100 = vsyncmov %s1099
  %s1101 = vpop.sfrf %1100
  %p1102 = scmp.eq.s32.totalorder %s1101, 0
  %p1103 = pneg %p1102
  %1105 = shalt.err (%p1103)
  %s1106 = scalar_lea.sflag [#allocation4], 26
  %1107 = vsyncmov %s1106
  %s1108 = vpop.sfrf %1107
  %p1109 = scmp.eq.s32.totalorder %s1108, 0
  %p1110 = pneg %p1109
  %1112 = shalt.err (%p1110)
  %s1113 = scalar_lea.sflag [#allocation4], 27
  %1114 = vsyncmov %s1113
  %s1115 = vpop.sfrf %1114
  %p1116 = scmp.eq.s32.totalorder %s1115, 0
  %p1117 = pneg %p1116
  %1119 = shalt.err (%p1117)
  %s1120 = scalar_lea.sflag [#allocation4], 28
  %1121 = vsyncmov %s1120
  %s1122 = vpop.sfrf %1121
  %p1123 = scmp.eq.s32.totalorder %s1122, 0
  %p1124 = pneg %p1123
  %1126 = shalt.err (%p1124)
  %s1127 = scalar_lea.sflag [#allocation4], 29
  %1128 = vsyncmov %s1127
  %s1129 = vpop.sfrf %1128
  %p1130 = scmp.eq.s32.totalorder %s1129, 0
  %p1131 = pneg %p1130
  %1133 = shalt.err (%p1131)
  %s1134 = scalar_lea.sflag [#allocation4], 30
  %1135 = vsyncmov %s1134
  %s1136 = vpop.sfrf %1135
  %p1137 = scmp.eq.s32.totalorder %s1136, 0
  %p1138 = pneg %p1137
  %1140 = shalt.err (%p1138)
  %s1141 = scalar_lea.sflag [#allocation4], 31
  %1142 = vsyncmov %s1141
  %s1143 = vpop.sfrf %1142
  %p1144 = scmp.eq.s32.totalorder %s1143, 0
  %p1145 = pneg %p1144
  %1147 = shalt.err (%p1145)
  %s1148 = scalar_lea.sflag [#allocation4], 32
  %1149 = vsyncmov %s1148
  %s1150 = vpop.sfrf %1149
  %p1151 = scmp.eq.s32.totalorder %s1150, 0
  %p1152 = pneg %p1151
  %1154 = shalt.err (%p1152)
  %s1155 = scalar_lea.sflag [#allocation4], 33
  %1156 = vsyncmov %s1155
  %s1157 = vpop.sfrf %1156
  %p1158 = scmp.eq.s32.totalorder %s1157, 0
  %p1159 = pneg %p1158
  %1161 = shalt.err (%p1159)
  %s1162 = scalar_lea.sflag [#allocation4], 34
  %1163 = vsyncmov %s1162
  %s1164 = vpop.sfrf %1163
  %p1165 = scmp.eq.s32.totalorder %s1164, 0
  %p1166 = pneg %p1165
  %1168 = shalt.err (%p1166)
  %s1169 = scalar_lea.sflag [#allocation4], 35
  %1170 = vsyncmov %s1169
  %s1171 = vpop.sfrf %1170
  %p1172 = scmp.eq.s32.totalorder %s1171, 0
  %p1173 = pneg %p1172
  %1175 = shalt.err (%p1173)
  %s1176 = scalar_lea.sflag [#allocation4], 36
  %1177 = vsyncmov %s1176
  %s1178 = vpop.sfrf %1177
  %p1179 = scmp.eq.s32.totalorder %s1178, 0
  %p1180 = pneg %p1179
  %1182 = shalt.err (%p1180)

</llo_original>
